<compile_context>
chip_gen: v5e
topology: v5e:2x2
jax: 0.10.0
libtpu: 0.0.40
codegen_flags: <defaults>
</compile_context>

<pallas_src>
import jax
import jax.numpy as jnp
from jax.experimental import pallas as pl
from jax.experimental.pallas import tpu as pltpu

NEG_SLOPE = 0.2
BN_EPS = 1e-5


# ---------------------------------------------------------------------------
# Tiling helpers
# ---------------------------------------------------------------------------
def _round_up(x, m):
    return (x + m - 1) // m * m


def _choose_m_tiling(M, K):
    """Pick (M_pad, TM) with TM % 8 == 0 and TM dividing M_pad.

    Large tiles (target up to 1024 rows, capped so a bf16 patch tile stays
    <= ~4 MiB per pipeline buffer) amortize per-step overhead; when there is
    enough work we force at least two tiles so both v7x TensorCores are used
    (harmless on single-core v5e/v6e)."""
    target = max(128, min(1024, _round_up(max(8, (4 << 20) // (2 * K)), 8)))
    m_pad = _round_up(M, 8)
    if m_pad <= 16:                              # too small to split
        return m_pad, m_pad
    if m_pad <= 2 * target:                      # two tiles -> both v7x cores
        tm = _round_up((m_pad + 1) // 2, 8)
        return _round_up(m_pad, tm), tm
    return _round_up(m_pad, target), target


# ---------------------------------------------------------------------------
# Pallas kernels
# ---------------------------------------------------------------------------
def _conv_matmul(patches, w, b, *, tm, apply_act, with_stats, out_dtype):
    """(M_pad, K)bf16 @ (K, CoutP)bf16 + bias with fp32 MXU accumulation.

    Single "parallel" grid axis over M tiles; weights/bias are fully resident
    (constant index map), so there is no K reduction axis, no accumulator
    scratch and no predication.  Bias, LeakyReLU and (optionally) per-tile
    BatchNorm sum / sum-of-squares are fused into the epilogue; the output is
    stored in `out_dtype` (bf16 for intermediate layers)."""
    M_pad, K = patches.shape
    _, CoutP = w.shape
    nm = M_pad // tm

    def kernel(p_ref, w_ref, b_ref, o_ref, *stat_refs):
        acc = jnp.dot(p_ref[...], w_ref[...],
                      preferred_element_type=jnp.float32)
        y = acc + b_ref[...]
        if apply_act:
            y = jnp.maximum(y, NEG_SLOPE * y)            # LeakyReLU(0.2)
        o_ref[...] = y.astype(o_ref.dtype)
        if with_stats:
            ssum_ref, ssq_ref = stat_refs
            ssum_ref[...] = jnp.sum(y, axis=0, keepdims=True)[None]
            ssq_ref[...] = jnp.sum(y * y, axis=0, keepdims=True)[None]

    out_shapes = [jax.ShapeDtypeStruct((M_pad, CoutP), out_dtype)]
    out_specs = [pl.BlockSpec((tm, CoutP), lambda m: (m, 0))]
    if with_stats:
        out_shapes += [jax.ShapeDtypeStruct((nm, 1, CoutP), jnp.float32)] * 2
        out_specs += [pl.BlockSpec((1, 1, CoutP), lambda m: (m, 0, 0))] * 2

    out_bytes = tm * CoutP * jnp.dtype(out_dtype).itemsize
    vmem_bytes = (2 * tm * K * 2          # double-buffered bf16 patch tiles
                  + 2 * K * CoutP * 2     # resident bf16 weights
                  + 2 * CoutP * 4         # bias
                  + 2 * out_bytes         # double-buffered output tiles
                  + tm * CoutP * 4        # fp32 accumulator values
                  + 4 * CoutP * 4)        # per-tile stats
    vmem_limit = int(min(48 << 20, max(32 << 20, 2 * vmem_bytes)))  # v7x-safe

    outs = pl.pallas_call(
        kernel,
        out_shape=tuple(out_shapes),
        grid_spec=pltpu.PrefetchScalarGridSpec(
            num_scalar_prefetch=0,
            grid=(nm,),
            in_specs=[
                pl.BlockSpec((tm, K), lambda m: (m, 0)),
                pl.BlockSpec((K, CoutP), lambda m: (0, 0)),   # resident weights
                pl.BlockSpec((1, CoutP), lambda m: (0, 0)),   # resident bias
            ],
            out_specs=tuple(out_specs),
        ),
        compiler_params=pltpu.CompilerParams(
            dimension_semantics=("parallel",),
            vmem_limit_bytes=vmem_limit),
    )(patches, w, b)

    if with_stats:
        return outs[0], (outs[1], outs[2])
    return outs[0], None


def bn_affine_act(y, scale, shift, *, tm):
    """(y * scale + shift) -> LeakyReLU(0.2); M-tiled, bf16 in / bf16 out."""
    M_pad, C = y.shape
    nm = M_pad // tm

    def kernel(y_ref, sc_ref, sh_ref, o_ref):
        v = y_ref[...].astype(jnp.float32) * sc_ref[...] + sh_ref[...]
        o_ref[...] = jnp.maximum(v, NEG_SLOPE * v).astype(o_ref.dtype)

    return pl.pallas_call(
        kernel,
        out_shape=jax.ShapeDtypeStruct((M_pad, C), jnp.bfloat16),
        grid_spec=pltpu.PrefetchScalarGridSpec(
            num_scalar_prefetch=0,
            grid=(nm,),
            in_specs=[
                pl.BlockSpec((tm, C), lambda m: (m, 0)),
                pl.BlockSpec((1, C), lambda m: (0, 0)),
                pl.BlockSpec((1, C), lambda m: (0, 0)),
            ],
            out_specs=pl.BlockSpec((tm, C), lambda m: (m, 0)),
        ),
        compiler_params=pltpu.CompilerParams(
            dimension_semantics=("parallel",)),
    )(y, scale, shift)


# ---------------------------------------------------------------------------
# Glue: im2col patch extraction (plain XLA slices/reshapes, in bf16)
# ---------------------------------------------------------------------------
# TODO(synk): replace the materialized im2col with a tap-based kernel (loop
# over the 16 kh*kw taps with strided DMA from the un-expanded NHWC
# activation) to remove the 16x activation HBM expansion per layer.
def im2col(x_nhwc, kh, kw, stride, pad):
    N, H, W, C = x_nhwc.shape
    xp = jnp.pad(x_nhwc, ((0, 0), (pad, pad), (pad, pad), (0, 0)))
    OH = (H + 2 * pad - kh) // stride + 1
    OW = (W + 2 * pad - kw) // stride + 1
    taps = []
    for i in range(kh):
        for j in range(kw):
            taps.append(
                xp[:, i:i + stride * OH:stride, j:j + stride * OW:stride, :])
    p = jnp.stack(taps, axis=3)                  # (N, OH, OW, kh*kw, C)
    return p.reshape(N * OH * OW, kh * kw * C), OH, OW


# ---------------------------------------------------------------------------
# Layer wrappers
# ---------------------------------------------------------------------------
def conv_layer(x_nhwc, w, b, *, stride, apply_act, with_stats=False,
               out_dtype=jnp.bfloat16):
    """One conv layer: im2col (bf16) -> M-tiled MXU matmul with fused epilogue."""
    Cout = w.shape[1]
    p, OH, OW = im2col(x_nhwc.astype(jnp.bfloat16), 4, 4, stride, 1)
    M, K = p.shape
    CoutP = _round_up(Cout, 128)          # lane-dense (unmasked) output stores
    if with_stats:
        assert CoutP == Cout              # BN layers: no padded stat channels
    M_pad, tm = _choose_m_tiling(M, K)

    if M_pad != M:
        p = jnp.pad(p, ((0, M_pad - M), (0, 0)))   # note: no K zero-padding
    w_p = w if CoutP == Cout else jnp.pad(w, ((0, 0), (0, CoutP - Cout)))
    w_p = w_p.astype(jnp.bfloat16)
    b_p = b if CoutP == Cout else jnp.pad(b, ((0, 0), (0, CoutP - Cout)))
    b_p = b_p.astype(jnp.float32)

    y_pad, stats = _conv_matmul(p, w_p, b_p, tm=tm, apply_act=apply_act,
                                with_stats=with_stats, out_dtype=out_dtype)
    return y_pad, stats, (M, M_pad, tm), OH, OW, Cout


def _bn_block(y_pad, stats, *, M, M_pad, tm, bias, gamma, beta):
    """Training-mode BatchNorm (batch stats, biased variance, like PyTorch's
    training forward) + LeakyReLU on a padded (M_pad, C) slab.

    Padded patch rows contribute exactly `bias` to the conv output (zero
    patches, no activation applied), so their statically-known contribution is
    subtracted here instead of masking inside the conv kernel."""
    ssum, ssq = stats
    n_pad = M_pad - M
    bvec = bias[0].astype(jnp.float32)
    s = jnp.sum(ssum, axis=(0, 1)) - n_pad * bvec
    ss = jnp.sum(ssq, axis=(0, 1)) - n_pad * bvec * bvec
    mean = s / M
    var = ss / M - mean * mean
    scale = gamma * jax.lax.rsqrt(var + BN_EPS)
    shift = beta - mean * scale
    return bn_affine_act(y_pad, scale[None, :], shift[None, :], tm=tm)


# ---------------------------------------------------------------------------
# Parameters (deterministic synthetic init; HWIO weight layout, flattened)
# ---------------------------------------------------------------------------
def init_params(key, input_channels):
    ks = jax.random.split(key, 12)

    def w(k, shape, scale=0.05):
        return scale * jax.random.normal(k, shape, dtype=jnp.float32)

    return {
        "w1": w(ks[0], (4, 4, input_channels, 64)).reshape(-1, 64),
        "b1": w(ks[1], (1, 64)),
        "w2": w(ks[2], (4, 4, 64, 128)).reshape(-1, 128),
        "b2": w(ks[3], (1, 128)),
        "g2": 1.0 + 0.1 * jax.random.normal(ks[4], (128,), dtype=jnp.float32),
        "be2": w(ks[5], (128,)),
        "w3": w(ks[6], (4, 4, 128, 256)).reshape(-1, 256),
        "b3": w(ks[7], (1, 256)),
        "g3": 1.0 + 0.1 * jax.random.normal(ks[8], (256,), dtype=jnp.float32),
        "be3": w(ks[9], (256,)),
        "w4": w(ks[10], (4, 4, 256, 1)).reshape(-1, 1),
        "b4": w(ks[11], (1, 1)),
    }


# ---------------------------------------------------------------------------
# Forward pass
# ---------------------------------------------------------------------------
@jax.jit
def discriminator_forward(x_nchw, params):
    x = jnp.transpose(x_nchw, (0, 2, 3, 1))               # NCHW -> NHWC
    N = x.shape[0]

    # Block 1: conv s2 + LeakyReLU (fused epilogue), bf16 out
    y, _, dims, OH, OW, C = conv_layer(x, params["w1"], params["b1"],
                                       stride=2, apply_act=True)
    M = dims[0]
    x = y[:M, :C].reshape(N, OH, OW, C)

    # Block 2: conv s2 (+ fused BN-stats) -> BN(batch stats) + LeakyReLU
    y, st, dims, OH, OW, C = conv_layer(x, params["w2"], params["b2"],
                                        stride=2, apply_act=False,
                                        with_stats=True)
    M, M_pad, tm = dims
    y = _bn_block(y, st, M=M, M_pad=M_pad, tm=tm, bias=params["b2"],
                  gamma=params["g2"], beta=params["be2"])
    x = y[:M].reshape(N, OH, OW, C)

    # Block 3: conv s2 (+ fused BN-stats) -> BN(batch stats) + LeakyReLU
    y, st, dims, OH, OW, C = conv_layer(x, params["w3"], params["b3"],
                                        stride=2, apply_act=False,
                                        with_stats=True)
    M, M_pad, tm = dims
    y = _bn_block(y, st, M=M, M_pad=M_pad, tm=tm, bias=params["b3"],
                  gamma=params["g3"], beta=params["be3"])
    x = y[:M].reshape(N, OH, OW, C)

    # Block 4: conv s1, no activation (Cout=1 computed in a lane-dense 128 tile)
    y, _, dims, OH, OW, C = conv_layer(x, params["w4"], params["b4"],
                                       stride=1, apply_act=False,
                                       out_dtype=jnp.float32)
    M = dims[0]
    out = y[:M, :C].reshape(N, OH, OW, C)

    return jnp.transpose(out, (0, 3, 1, 2))                # NHWC -> NCHW


# ---------------------------------------------------------------------------
if __name__ == "__main__":
    key = jax.random.PRNGKey(0)
    k_x, k_p = jax.random.split(key)

    input_channels = 4
    x = jax.random.normal(k_x, (2, input_channels, 16, 16), dtype=jnp.float32)
    params = init_params(k_p, input_channels)

    out = discriminator_forward(x, params)
    out = jax.block_until_ready(out)

    assert out.shape == (2, 1, 1, 1), out.shape
    assert bool(jnp.all(jnp.isfinite(out)))
    print("KERNEL_OK")
</pallas_src>

<mosaic_0001>
module attributes {stable_mosaic.version = 11 : i64} {
  func.func @kernel(%arg0: i32, %arg1: memref<64x64xbf16, #tpu.memory_space<vmem>>, %arg2: memref<64x128xbf16, #tpu.memory_space<vmem>>, %arg3: memref<1x128xf32, #tpu.memory_space<vmem>>, %arg4: memref<64x128xbf16, #tpu.memory_space<vmem>>) attributes {dimension_semantics = [#tpu.dimension_semantics<parallel>], iteration_bounds = array<i64: 2>, scalar_prefetch = 0 : i64, scratch_operands = 0 : i64, tpu.core_type = #tpu.core_type<tc>, window_params = [{transform_indices = @transform_0, window_bounds = array<i64: 64, 64>}, {pipeline_mode = #tpu.pipeline_mode<synchronous>, transform_indices = @transform_1, window_bounds = array<i64: 64, 128>}, {pipeline_mode = #tpu.pipeline_mode<synchronous>, transform_indices = @transform_2, window_bounds = array<i64: 1, 128>}, {transform_indices = @transform_3, window_bounds = array<i64: 64, 128>}]} {
    %c0 = arith.constant 0 : index
    %c0_0 = arith.constant 0 : index
    %0 = vector.load %arg1[%c0, %c0_0] : memref<64x64xbf16, #tpu.memory_space<vmem>>, vector<64x64xbf16>
    %c0_1 = arith.constant 0 : index
    %c0_2 = arith.constant 0 : index
    %1 = vector.load %arg2[%c0_1, %c0_2] : memref<64x128xbf16, #tpu.memory_space<vmem>>, vector<64x128xbf16>
    %cst = arith.constant dense<0.000000e+00> : vector<64x128xf32>
    %2 = tpu.matmul %0, %1, %cst {dimension_numbers = #tpu.dot_dimension_numbers<[1], [0], [0], [1], [0, 0, 1, 1], [], []>} : vector<64x64xbf16>, vector<64x128xbf16>, vector<64x128xf32> -> vector<64x128xf32>
    %c0_3 = arith.constant 0 : index
    %c0_4 = arith.constant 0 : index
    %3 = vector.load %arg3[%c0_3, %c0_4] : memref<1x128xf32, #tpu.memory_space<vmem>>, vector<1x128xf32>
    %4 = vector.broadcast %3 : vector<1x128xf32> to vector<64x128xf32>
    %5 = arith.addf %2, %4 : vector<64x128xf32>
    %cst_5 = arith.constant 2.000000e-01 : f32
    %6 = vector.broadcast %cst_5 : f32 to vector<64x128xf32>
    %7 = arith.mulf %6, %5 : vector<64x128xf32>
    %8 = arith.maximumf %5, %7 : vector<64x128xf32>
    %9 = arith.truncf %8 : vector<64x128xf32> to vector<64x128xbf16>
    %c0_6 = arith.constant 0 : index
    %c0_7 = arith.constant 0 : index
    %10 = vector.load %arg4[%c0_6, %c0_7] : memref<64x128xbf16, #tpu.memory_space<vmem>>, vector<64x128xbf16>
    tpu.vector_store %arg4[%c0_6, %c0_7], %9 {strides = array<i32>} : memref<64x128xbf16, #tpu.memory_space<vmem>>, vector<64x128xbf16>,
    return
  }
  func.func @transform_0(%arg0: i32) -> (i32, i32) {
    %c0_i32 = arith.constant 0 : i32
    %c0_i32_0 = arith.constant 0 : i32
    return %arg0, %c0_i32 : i32, i32
  }
  func.func @transform_1(%arg0: i32) -> (i32, i32) {
    %c0_i32 = arith.constant 0 : i32
    %c0_i32_0 = arith.constant 0 : i32
    %c0_i32_1 = arith.constant 0 : i32
    return %c0_i32, %c0_i32_0 : i32, i32
  }
  func.func @transform_2(%arg0: i32) -> (i32, i32) {
    %c0_i32 = arith.constant 0 : i32
    %c0_i32_0 = arith.constant 0 : i32
    %c0_i32_1 = arith.constant 0 : i32
    return %c0_i32, %c0_i32_0 : i32, i32
  }
  func.func @transform_3(%arg0: i32) -> (i32, i32) {
    %c0_i32 = arith.constant 0 : i32
    %c0_i32_0 = arith.constant 0 : i32
    return %arg0, %c0_i32 : i32, i32
  }
}

module attributes {stable_mosaic.version = 11 : i64} {
  func.func @kernel(%arg0: i32, %arg1: memref<16x1024xbf16, #tpu.memory_space<vmem>>, %arg2: memref<1024x128xbf16, #tpu.memory_space<vmem>>, %arg3: memref<1x128xf32, #tpu.memory_space<vmem>>, %arg4: memref<16x128xbf16, #tpu.memory_space<vmem>>, %arg5: memref<1x1x128xf32, #tpu.memory_space<vmem>>, %arg6: memref<1x1x128xf32, #tpu.memory_space<vmem>>) attributes {dimension_semantics = [#tpu.dimension_semantics<parallel>], iteration_bounds = array<i64: 2>, scalar_prefetch = 0 : i64, scratch_operands = 0 : i64, tpu.core_type = #tpu.core_type<tc>, window_params = [{transform_indices = @transform_0, window_bounds = array<i64: 16, 1024>}, {pipeline_mode = #tpu.pipeline_mode<synchronous>, transform_indices = @transform_1, window_bounds = array<i64: 1024, 128>}, {pipeline_mode = #tpu.pipeline_mode<synchronous>, transform_indices = @transform_2, window_bounds = array<i64: 1, 128>}, {transform_indices = @transform_3, window_bounds = array<i64: 16, 128>}, {transform_indices = @transform_4, window_bounds = array<i64: 1, 1, 128>}, {transform_indices = @transform_5, window_bounds = array<i64: 1, 1, 128>}]} {
    %c0 = arith.constant 0 : index
    %c0_0 = arith.constant 0 : index
    %0 = vector.load %arg1[%c0, %c0_0] : memref<16x1024xbf16, #tpu.memory_space<vmem>>, vector<16x1024xbf16>
    %c0_1 = arith.constant 0 : index
    %c0_2 = arith.constant 0 : index
    %1 = vector.load %arg2[%c0_1, %c0_2] : memref<1024x128xbf16, #tpu.memory_space<vmem>>, vector<1024x128xbf16>
    %cst = arith.constant dense<0.000000e+00> : vector<16x128xf32>
    %2 = tpu.matmul %0, %1, %cst {dimension_numbers = #tpu.dot_dimension_numbers<[1], [0], [0], [1], [0, 0, 1, 1], [], []>} : vector<16x1024xbf16>, vector<1024x128xbf16>, vector<16x128xf32> -> vector<16x128xf32>
    %c0_3 = arith.constant 0 : index
    %c0_4 = arith.constant 0 : index
    %3 = vector.load %arg3[%c0_3, %c0_4] : memref<1x128xf32, #tpu.memory_space<vmem>>, vector<1x128xf32>
    %4 = vector.broadcast %3 : vector<1x128xf32> to vector<16x128xf32>
    %5 = arith.addf %2, %4 : vector<16x128xf32>
    %6 = arith.truncf %5 : vector<16x128xf32> to vector<16x128xbf16>
    %c0_5 = arith.constant 0 : index
    %c0_6 = arith.constant 0 : index
    %7 = vector.load %arg4[%c0_5, %c0_6] : memref<16x128xbf16, #tpu.memory_space<vmem>>, vector<16x128xbf16>
    tpu.vector_store %arg4[%c0_5, %c0_6], %6 {strides = array<i32>} : memref<16x128xbf16, #tpu.memory_space<vmem>>, vector<16x128xbf16>,
    %cst_7 = arith.constant dense<0.000000e+00> : vector<128xf32>
    %8 = vector.multi_reduction <add>, %5, %cst_7 [0] : vector<16x128xf32> to vector<128xf32>
    %9 = vector.shape_cast %8 : vector<128xf32> to vector<1x128xf32>
    %10 = vector.shape_cast %9 : vector<1x128xf32> to vector<1x1x128xf32>
    %c0_8 = arith.constant 0 : index
    %c0_9 = arith.constant 0 : index
    %c0_10 = arith.constant 0 : index
    %11 = vector.load %arg5[%c0_8, %c0_9, %c0_10] : memref<1x1x128xf32, #tpu.memory_space<vmem>>, vector<1x1x128xf32>
    tpu.vector_store %arg5[%c0_8, %c0_9, %c0_10], %10 {strides = array<i32>} : memref<1x1x128xf32, #tpu.memory_space<vmem>>, vector<1x1x128xf32>,
    %12 = arith.mulf %5, %5 : vector<16x128xf32>
    %cst_11 = arith.constant dense<0.000000e+00> : vector<128xf32>
    %13 = vector.multi_reduction <add>, %12, %cst_11 [0] : vector<16x128xf32> to vector<128xf32>
    %14 = vector.shape_cast %13 : vector<128xf32> to vector<1x128xf32>
    %15 = vector.shape_cast %14 : vector<1x128xf32> to vector<1x1x128xf32>
    %c0_12 = arith.constant 0 : index
    %c0_13 = arith.constant 0 : index
    %c0_14 = arith.constant 0 : index
    %16 = vector.load %arg6[%c0_12, %c0_13, %c0_14] : memref<1x1x128xf32, #tpu.memory_space<vmem>>, vector<1x1x128xf32>
    tpu.vector_store %arg6[%c0_12, %c0_13, %c0_14], %15 {strides = array<i32>} : memref<1x1x128xf32, #tpu.memory_space<vmem>>, vector<1x1x128xf32>,
    return
  }
  func.func @transform_0(%arg0: i32) -> (i32, i32) {
    %c0_i32 = arith.constant 0 : i32
    %c0_i32_0 = arith.constant 0 : i32
    return %arg0, %c0_i32 : i32, i32
  }
  func.func @transform_1(%arg0: i32) -> (i32, i32) {
    %c0_i32 = arith.constant 0 : i32
    %c0_i32_0 = arith.constant 0 : i32
    %c0_i32_1 = arith.constant 0 : i32
    return %c0_i32, %c0_i32_0 : i32, i32
  }
  func.func @transform_2(%arg0: i32) -> (i32, i32) {
    %c0_i32 = arith.constant 0 : i32
    %c0_i32_0 = arith.constant 0 : i32
    %c0_i32_1 = arith.constant 0 : i32
    return %c0_i32, %c0_i32_0 : i32, i32
  }
  func.func @transform_3(%arg0: i32) -> (i32, i32) {
    %c0_i32 = arith.constant 0 : i32
    %c0_i32_0 = arith.constant 0 : i32
    return %arg0, %c0_i32 : i32, i32
  }
  func.func @transform_4(%arg0: i32) -> (i32, i32, i32) {
    %c0_i32 = arith.constant 0 : i32
    %c0_i32_0 = arith.constant 0 : i32
    %c0_i32_1 = arith.constant 0 : i32
    return %arg0, %c0_i32, %c0_i32_0 : i32, i32, i32
  }
  func.func @transform_5(%arg0: i32) -> (i32, i32, i32) {
    %c0_i32 = arith.constant 0 : i32
    %c0_i32_0 = arith.constant 0 : i32
    %c0_i32_1 = arith.constant 0 : i32
    return %arg0, %c0_i32, %c0_i32_0 : i32, i32, i32
  }
}

module attributes {stable_mosaic.version = 11 : i64} {
  func.func @kernel(%arg0: i32, %arg1: memref<16x128xbf16, #tpu.memory_space<vmem>>, %arg2: memref<1x128xf32, #tpu.memory_space<vmem>>, %arg3: memref<1x128xf32, #tpu.memory_space<vmem>>, %arg4: memref<16x128xbf16, #tpu.memory_space<vmem>>) attributes {dimension_semantics = [#tpu.dimension_semantics<parallel>], iteration_bounds = array<i64: 2>, scalar_prefetch = 0 : i64, scratch_operands = 0 : i64, tpu.core_type = #tpu.core_type<tc>, window_params = [{transform_indices = @transform_0, window_bounds = array<i64: 16, 128>}, {pipeline_mode = #tpu.pipeline_mode<synchronous>, transform_indices = @transform_1, window_bounds = array<i64: 1, 128>}, {pipeline_mode = #tpu.pipeline_mode<synchronous>, transform_indices = @transform_2, window_bounds = array<i64: 1, 128>}, {transform_indices = @transform_3, window_bounds = array<i64: 16, 128>}]} {
    %c0 = arith.constant 0 : index
    %c0_0 = arith.constant 0 : index
    %0 = vector.load %arg1[%c0, %c0_0] : memref<16x128xbf16, #tpu.memory_space<vmem>>, vector<16x128xbf16>
    %1 = arith.extf %0 : vector<16x128xbf16> to vector<16x128xf32>
    %c0_1 = arith.constant 0 : index
    %c0_2 = arith.constant 0 : index
    %2 = vector.load %arg2[%c0_1, %c0_2] : memref<1x128xf32, #tpu.memory_space<vmem>>, vector<1x128xf32>
    %3 = vector.broadcast %2 : vector<1x128xf32> to vector<16x128xf32>
    %4 = arith.mulf %1, %3 : vector<16x128xf32>
    %c0_3 = arith.constant 0 : index
    %c0_4 = arith.constant 0 : index
    %5 = vector.load %arg3[%c0_3, %c0_4] : memref<1x128xf32, #tpu.memory_space<vmem>>, vector<1x128xf32>
    %6 = vector.broadcast %5 : vector<1x128xf32> to vector<16x128xf32>
    %7 = arith.addf %4, %6 : vector<16x128xf32>
    %cst = arith.constant 2.000000e-01 : f32
    %8 = vector.broadcast %cst : f32 to vector<16x128xf32>
    %9 = arith.mulf %8, %7 : vector<16x128xf32>
    %10 = arith.maximumf %7, %9 : vector<16x128xf32>
    %11 = arith.truncf %10 : vector<16x128xf32> to vector<16x128xbf16>
    %c0_5 = arith.constant 0 : index
    %c0_6 = arith.constant 0 : index
    %12 = vector.load %arg4[%c0_5, %c0_6] : memref<16x128xbf16, #tpu.memory_space<vmem>>, vector<16x128xbf16>
    tpu.vector_store %arg4[%c0_5, %c0_6], %11 {strides = array<i32>} : memref<16x128xbf16, #tpu.memory_space<vmem>>, vector<16x128xbf16>,
    return
  }
  func.func @transform_0(%arg0: i32) -> (i32, i32) {
    %c0_i32 = arith.constant 0 : i32
    %c0_i32_0 = arith.constant 0 : i32
    return %arg0, %c0_i32 : i32, i32
  }
  func.func @transform_1(%arg0: i32) -> (i32, i32) {
    %c0_i32 = arith.constant 0 : i32
    %c0_i32_0 = arith.constant 0 : i32
    %c0_i32_1 = arith.constant 0 : i32
    return %c0_i32, %c0_i32_0 : i32, i32
  }
  func.func @transform_2(%arg0: i32) -> (i32, i32) {
    %c0_i32 = arith.constant 0 : i32
    %c0_i32_0 = arith.constant 0 : i32
    %c0_i32_1 = arith.constant 0 : i32
    return %c0_i32, %c0_i32_0 : i32, i32
  }
  func.func @transform_3(%arg0: i32) -> (i32, i32) {
    %c0_i32 = arith.constant 0 : i32
    %c0_i32_0 = arith.constant 0 : i32
    return %arg0, %c0_i32 : i32, i32
  }
}

module attributes {stable_mosaic.version = 11 : i64} {
  func.func @kernel(%arg0: i32, %arg1: memref<8x2048xbf16, #tpu.memory_space<vmem>>, %arg2: memref<2048x256xbf16, #tpu.memory_space<vmem>>, %arg3: memref<1x256xf32, #tpu.memory_space<vmem>>, %arg4: memref<8x256xbf16, #tpu.memory_space<vmem>>, %arg5: memref<1x1x256xf32, #tpu.memory_space<vmem>>, %arg6: memref<1x1x256xf32, #tpu.memory_space<vmem>>) attributes {dimension_semantics = [#tpu.dimension_semantics<parallel>], iteration_bounds = array<i64: 1>, scalar_prefetch = 0 : i64, scratch_operands = 0 : i64, tpu.core_type = #tpu.core_type<tc>, window_params = [{transform_indices = @transform_0, window_bounds = array<i64: 8, 2048>}, {pipeline_mode = #tpu.pipeline_mode<synchronous>, transform_indices = @transform_1, window_bounds = array<i64: 2048, 256>}, {pipeline_mode = #tpu.pipeline_mode<synchronous>, transform_indices = @transform_2, window_bounds = array<i64: 1, 256>}, {transform_indices = @transform_3, window_bounds = array<i64: 8, 256>}, {transform_indices = @transform_4, window_bounds = array<i64: 1, 1, 256>}, {transform_indices = @transform_5, window_bounds = array<i64: 1, 1, 256>}]} {
    %c0 = arith.constant 0 : index
    %c0_0 = arith.constant 0 : index
    %0 = vector.load %arg1[%c0, %c0_0] : memref<8x2048xbf16, #tpu.memory_space<vmem>>, vector<8x2048xbf16>
    %c0_1 = arith.constant 0 : index
    %c0_2 = arith.constant 0 : index
    %1 = vector.load %arg2[%c0_1, %c0_2] : memref<2048x256xbf16, #tpu.memory_space<vmem>>, vector<2048x256xbf16>
    %cst = arith.constant dense<0.000000e+00> : vector<8x256xf32>
    %2 = tpu.matmul %0, %1, %cst {dimension_numbers = #tpu.dot_dimension_numbers<[1], [0], [0], [1], [0, 0, 1, 1], [], []>} : vector<8x2048xbf16>, vector<2048x256xbf16>, vector<8x256xf32> -> vector<8x256xf32>
    %c0_3 = arith.constant 0 : index
    %c0_4 = arith.constant 0 : index
    %3 = vector.load %arg3[%c0_3, %c0_4] : memref<1x256xf32, #tpu.memory_space<vmem>>, vector<1x256xf32>
    %4 = vector.broadcast %3 : vector<1x256xf32> to vector<8x256xf32>
    %5 = arith.addf %2, %4 : vector<8x256xf32>
    %6 = arith.truncf %5 : vector<8x256xf32> to vector<8x256xbf16>
    %c0_5 = arith.constant 0 : index
    %c0_6 = arith.constant 0 : index
    %7 = vector.load %arg4[%c0_5, %c0_6] : memref<8x256xbf16, #tpu.memory_space<vmem>>, vector<8x256xbf16>
    tpu.vector_store %arg4[%c0_5, %c0_6], %6 {strides = array<i32>} : memref<8x256xbf16, #tpu.memory_space<vmem>>, vector<8x256xbf16>,
    %cst_7 = arith.constant dense<0.000000e+00> : vector<256xf32>
    %8 = vector.multi_reduction <add>, %5, %cst_7 [0] : vector<8x256xf32> to vector<256xf32>
    %9 = vector.shape_cast %8 : vector<256xf32> to vector<1x256xf32>
    %10 = vector.shape_cast %9 : vector<1x256xf32> to vector<1x1x256xf32>
    %c0_8 = arith.constant 0 : index
    %c0_9 = arith.constant 0 : index
    %c0_10 = arith.constant 0 : index
    %11 = vector.load %arg5[%c0_8, %c0_9, %c0_10] : memref<1x1x256xf32, #tpu.memory_space<vmem>>, vector<1x1x256xf32>
    tpu.vector_store %arg5[%c0_8, %c0_9, %c0_10], %10 {strides = array<i32>} : memref<1x1x256xf32, #tpu.memory_space<vmem>>, vector<1x1x256xf32>,
    %12 = arith.mulf %5, %5 : vector<8x256xf32>
    %cst_11 = arith.constant dense<0.000000e+00> : vector<256xf32>
    %13 = vector.multi_reduction <add>, %12, %cst_11 [0] : vector<8x256xf32> to vector<256xf32>
    %14 = vector.shape_cast %13 : vector<256xf32> to vector<1x256xf32>
    %15 = vector.shape_cast %14 : vector<1x256xf32> to vector<1x1x256xf32>
    %c0_12 = arith.constant 0 : index
    %c0_13 = arith.constant 0 : index
    %c0_14 = arith.constant 0 : index
    %16 = vector.load %arg6[%c0_12, %c0_13, %c0_14] : memref<1x1x256xf32, #tpu.memory_space<vmem>>, vector<1x1x256xf32>
    tpu.vector_store %arg6[%c0_12, %c0_13, %c0_14], %15 {strides = array<i32>} : memref<1x1x256xf32, #tpu.memory_space<vmem>>, vector<1x1x256xf32>,
    return
  }
  func.func @transform_0(%arg0: i32) -> (i32, i32) {
    %c0_i32 = arith.constant 0 : i32
    %c0_i32_0 = arith.constant 0 : i32
    return %arg0, %c0_i32 : i32, i32
  }
  func.func @transform_1(%arg0: i32) -> (i32, i32) {
    %c0_i32 = arith.constant 0 : i32
    %c0_i32_0 = arith.constant 0 : i32
    %c0_i32_1 = arith.constant 0 : i32
    return %c0_i32, %c0_i32_0 : i32, i32
  }
  func.func @transform_2(%arg0: i32) -> (i32, i32) {
    %c0_i32 = arith.constant 0 : i32
    %c0_i32_0 = arith.constant 0 : i32
    %c0_i32_1 = arith.constant 0 : i32
    return %c0_i32, %c0_i32_0 : i32, i32
  }
  func.func @transform_3(%arg0: i32) -> (i32, i32) {
    %c0_i32 = arith.constant 0 : i32
    %c0_i32_0 = arith.constant 0 : i32
    return %arg0, %c0_i32 : i32, i32
  }
  func.func @transform_4(%arg0: i32) -> (i32, i32, i32) {
    %c0_i32 = arith.constant 0 : i32
    %c0_i32_0 = arith.constant 0 : i32
    %c0_i32_1 = arith.constant 0 : i32
    return %arg0, %c0_i32, %c0_i32_0 : i32, i32, i32
  }
  func.func @transform_5(%arg0: i32) -> (i32, i32, i32) {
    %c0_i32 = arith.constant 0 : i32
    %c0_i32_0 = arith.constant 0 : i32
    %c0_i32_1 = arith.constant 0 : i32
    return %arg0, %c0_i32, %c0_i32_0 : i32, i32, i32
  }
}

module attributes {stable_mosaic.version = 11 : i64} {
  func.func @kernel(%arg0: i32, %arg1: memref<8x256xbf16, #tpu.memory_space<vmem>>, %arg2: memref<1x256xf32, #tpu.memory_space<vmem>>, %arg3: memref<1x256xf32, #tpu.memory_space<vmem>>, %arg4: memref<8x256xbf16, #tpu.memory_space<vmem>>) attributes {dimension_semantics = [#tpu.dimension_semantics<parallel>], iteration_bounds = array<i64: 1>, scalar_prefetch = 0 : i64, scratch_operands = 0 : i64, tpu.core_type = #tpu.core_type<tc>, window_params = [{transform_indices = @transform_0, window_bounds = array<i64: 8, 256>}, {pipeline_mode = #tpu.pipeline_mode<synchronous>, transform_indices = @transform_1, window_bounds = array<i64: 1, 256>}, {pipeline_mode = #tpu.pipeline_mode<synchronous>, transform_indices = @transform_2, window_bounds = array<i64: 1, 256>}, {transform_indices = @transform_3, window_bounds = array<i64: 8, 256>}]} {
    %c0 = arith.constant 0 : index
    %c0_0 = arith.constant 0 : index
    %0 = vector.load %arg1[%c0, %c0_0] : memref<8x256xbf16, #tpu.memory_space<vmem>>, vector<8x256xbf16>
    %1 = arith.extf %0 : vector<8x256xbf16> to vector<8x256xf32>
    %c0_1 = arith.constant 0 : index
    %c0_2 = arith.constant 0 : index
    %2 = vector.load %arg2[%c0_1, %c0_2] : memref<1x256xf32, #tpu.memory_space<vmem>>, vector<1x256xf32>
    %3 = vector.broadcast %2 : vector<1x256xf32> to vector<8x256xf32>
    %4 = arith.mulf %1, %3 : vector<8x256xf32>
    %c0_3 = arith.constant 0 : index
    %c0_4 = arith.constant 0 : index
    %5 = vector.load %arg3[%c0_3, %c0_4] : memref<1x256xf32, #tpu.memory_space<vmem>>, vector<1x256xf32>
    %6 = vector.broadcast %5 : vector<1x256xf32> to vector<8x256xf32>
    %7 = arith.addf %4, %6 : vector<8x256xf32>
    %cst = arith.constant 2.000000e-01 : f32
    %8 = vector.broadcast %cst : f32 to vector<8x256xf32>
    %9 = arith.mulf %8, %7 : vector<8x256xf32>
    %10 = arith.maximumf %7, %9 : vector<8x256xf32>
    %11 = arith.truncf %10 : vector<8x256xf32> to vector<8x256xbf16>
    %c0_5 = arith.constant 0 : index
    %c0_6 = arith.constant 0 : index
    %12 = vector.load %arg4[%c0_5, %c0_6] : memref<8x256xbf16, #tpu.memory_space<vmem>>, vector<8x256xbf16>
    tpu.vector_store %arg4[%c0_5, %c0_6], %11 {strides = array<i32>} : memref<8x256xbf16, #tpu.memory_space<vmem>>, vector<8x256xbf16>,
    return
  }
  func.func @transform_0(%arg0: i32) -> (i32, i32) {
    %c0_i32 = arith.constant 0 : i32
    %c0_i32_0 = arith.constant 0 : i32
    return %arg0, %c0_i32 : i32, i32
  }
  func.func @transform_1(%arg0: i32) -> (i32, i32) {
    %c0_i32 = arith.constant 0 : i32
    %c0_i32_0 = arith.constant 0 : i32
    %c0_i32_1 = arith.constant 0 : i32
    return %c0_i32, %c0_i32_0 : i32, i32
  }
  func.func @transform_2(%arg0: i32) -> (i32, i32) {
    %c0_i32 = arith.constant 0 : i32
    %c0_i32_0 = arith.constant 0 : i32
    %c0_i32_1 = arith.constant 0 : i32
    return %c0_i32, %c0_i32_0 : i32, i32
  }
  func.func @transform_3(%arg0: i32) -> (i32, i32) {
    %c0_i32 = arith.constant 0 : i32
    %c0_i32_0 = arith.constant 0 : i32
    return %arg0, %c0_i32 : i32, i32
  }
}

module attributes {stable_mosaic.version = 11 : i64} {
  func.func @kernel(%arg0: i32, %arg1: memref<8x4096xbf16, #tpu.memory_space<vmem>>, %arg2: memref<4096x128xbf16, #tpu.memory_space<vmem>>, %arg3: memref<1x128xf32, #tpu.memory_space<vmem>>, %arg4: memref<8x128xf32, #tpu.memory_space<vmem>>) attributes {dimension_semantics = [#tpu.dimension_semantics<parallel>], iteration_bounds = array<i64: 1>, scalar_prefetch = 0 : i64, scratch_operands = 0 : i64, tpu.core_type = #tpu.core_type<tc>, window_params = [{transform_indices = @transform_0, window_bounds = array<i64: 8, 4096>}, {pipeline_mode = #tpu.pipeline_mode<synchronous>, transform_indices = @transform_1, window_bounds = array<i64: 4096, 128>}, {pipeline_mode = #tpu.pipeline_mode<synchronous>, transform_indices = @transform_2, window_bounds = array<i64: 1, 128>}, {transform_indices = @transform_3, window_bounds = array<i64: 8, 128>}]} {
    %c0 = arith.constant 0 : index
    %c0_0 = arith.constant 0 : index
    %0 = vector.load %arg1[%c0, %c0_0] : memref<8x4096xbf16, #tpu.memory_space<vmem>>, vector<8x4096xbf16>
    %c0_1 = arith.constant 0 : index
    %c0_2 = arith.constant 0 : index
    %1 = vector.load %arg2[%c0_1, %c0_2] : memref<4096x128xbf16, #tpu.memory_space<vmem>>, vector<4096x128xbf16>
    %cst = arith.constant dense<0.000000e+00> : vector<8x128xf32>
    %2 = tpu.matmul %0, %1, %cst {dimension_numbers = #tpu.dot_dimension_numbers<[1], [0], [0], [1], [0, 0, 1, 1], [], []>} : vector<8x4096xbf16>, vector<4096x128xbf16>, vector<8x128xf32> -> vector<8x128xf32>
    %c0_3 = arith.constant 0 : index
    %c0_4 = arith.constant 0 : index
    %3 = vector.load %arg3[%c0_3, %c0_4] : memref<1x128xf32, #tpu.memory_space<vmem>>, vector<1x128xf32>
    %4 = vector.broadcast %3 : vector<1x128xf32> to vector<8x128xf32>
    %5 = arith.addf %2, %4 : vector<8x128xf32>
    %c0_5 = arith.constant 0 : index
    %c0_6 = arith.constant 0 : index
    %6 = vector.load %arg4[%c0_5, %c0_6] : memref<8x128xf32, #tpu.memory_space<vmem>>, vector<8x128xf32>
    tpu.vector_store %arg4[%c0_5, %c0_6], %5 {strides = array<i32>} : memref<8x128xf32, #tpu.memory_space<vmem>>, vector<8x128xf32>,
    return
  }
  func.func @transform_0(%arg0: i32) -> (i32, i32) {
    %c0_i32 = arith.constant 0 : i32
    %c0_i32_0 = arith.constant 0 : i32
    return %arg0, %c0_i32 : i32, i32
  }
  func.func @transform_1(%arg0: i32) -> (i32, i32) {
    %c0_i32 = arith.constant 0 : i32
    %c0_i32_0 = arith.constant 0 : i32
    %c0_i32_1 = arith.constant 0 : i32
    return %c0_i32, %c0_i32_0 : i32, i32
  }
  func.func @transform_2(%arg0: i32) -> (i32, i32) {
    %c0_i32 = arith.constant 0 : i32
    %c0_i32_0 = arith.constant 0 : i32
    %c0_i32_1 = arith.constant 0 : i32
    return %c0_i32, %c0_i32_0 : i32, i32
  }
  func.func @transform_3(%arg0: i32) -> (i32, i32) {
    %c0_i32 = arith.constant 0 : i32
    %c0_i32_0 = arith.constant 0 : i32
    return %arg0, %c0_i32 : i32, i32
  }
}

</mosaic_0001>

<llo_original>
// kernel: discriminator_forward.6
$region0: #{discriminator_forward.6}
  #allocation0 [shape = 'u32[]', space=smem, size = 0x4, offset = 0x4, fixed_abs, tag = 'smem constant byte address 0x4 - core index']
  #allocation1 [shape = 'u32[72,128]{1,0:T(1,128)}', space=vmem, size = 0x9000, scoped, tag = 'internal scratch']
  %s0 = inlined_call_operand.vmem [shape: bf16[128,64], index: 0, kind: input, shape index: {}]
  %s1 = inlined_call_operand.vmem [shape: bf16[64,128], index: 1, kind: input, shape index: {}]
  %s2 = inlined_call_operand.vmem [shape: f32[1,128], index: 2, kind: input, shape index: {}]
  %s3 = inlined_call_operand.vmem [shape: bf16[128,128], index: 3, kind: output, shape index: {}]
  %s4 = sld [smem:[#allocation0]]
  $region45: #{discriminator_forward.6} parent=0
    _
  %s6 = ssub.s32 1, %s4
  %s7 = scalar_select 0, %s6, %s4
  loop: start=0, step=1, limit=4
  $region2: #{discriminator_forward.6} parent=0 // loop_pre_header
    _
  $region3: #{discriminator_forward.6} parent=0 // loop_header
    %s9 = sphi 0, %s13
    %p10 = scmp.ge.s32.totalorder %s9, 4
    %s19 = sphi 0, %s21
    %s22 = sphi 0, %s19
    %s23 = sphi 0, %s22
    %s39 = sphi 0, %s23
    %s43 = sphi 0, %s43
    %s45 = sphi 0, %s43
    %s46 = sphi 0, %s45
    %s60 = sphi 0, %s46
    %s64 = sphi 0, %s64
    %s66 = sphi 0, %s64
    %s67 = sphi 0, %s66
    %s81 = sphi 0, %s67
    %s87 = sphi 0, %s89
    %s90 = sphi 0, %s87
    %s91 = sphi 0, %s90
    %s107 = sphi 0, %s91
  $region4: #{discriminator_forward.6} parent=0 // loop_header_branch
    %12 = sbr.rel (%p10) target = $region8
  $region5: #{discriminator_forward.6} parent=0 // loop_body
    %s14 = ssub.s32 %s9, 1
    %s15 = ssub.s32 %s9, 2
    %s16 = sadd.s32 %s9, 1
    %s17 = ssub.s32 %s9, %s16
    %p18 = scmp.eq.s32.totalorder %s17, 0
    %s20 = sadd.s32 %s19, 1
    %s21 = scalar_select %p18, %s19, %s20
    %p24 = pneg %p18
    %p25 = scmp.eq.s32.totalorder %s9, 1
    %p26 = por %p24, %p25
    %p27 = scmp.ne.s32.totalorder %s19, %s22
    %p28 = scmp.eq.s32.totalorder %s9, 0
    %p29 = por %p27, %p28
    %p30 = scmp.ne.s32.totalorder %s19, %s22
    %p31 = scmp.eq.s32.totalorder %s14, 1
    %p32 = por %p30, %p31
    %p33 = scmp.ne.s32.totalorder %s22, %s23
    %p34 = scmp.eq.s32.totalorder %s14, 0
    %p35 = por %p33, %p34
    %p36 = scmp.ne.s32.totalorder %s22, %s23
    %p37 = scmp.eq.s32.totalorder %s15, 1
    %p38 = por %p36, %p37
    %p40 = scmp.ne.s32.totalorder %s23, %s39
    %p41 = scmp.eq.s32.totalorder %s15, 0
    %p42 = por %p40, %p41
    %s44 = sadd.s32 %s43, 1
    %p47 = scmp.eq.s32.totalorder %s9, 1
    %p48 = scmp.ne.s32.totalorder %s43, %s45
    %p49 = scmp.eq.s32.totalorder %s9, 0
    %p50 = por %p48, %p49
    %p51 = scmp.ne.s32.totalorder %s43, %s45
    %p52 = scmp.eq.s32.totalorder %s14, 1
    %p53 = por %p51, %p52
    %p54 = scmp.ne.s32.totalorder %s45, %s46
    %p55 = scmp.eq.s32.totalorder %s14, 0
    %p56 = por %p54, %p55
    %p57 = scmp.ne.s32.totalorder %s45, %s46
    %p58 = scmp.eq.s32.totalorder %s15, 1
    %p59 = por %p57, %p58
    %p61 = scmp.ne.s32.totalorder %s46, %s60
    %p62 = scmp.eq.s32.totalorder %s15, 0
    %p63 = por %p61, %p62
    %s65 = sadd.s32 %s64, 1
    %p68 = scmp.eq.s32.totalorder %s9, 1
    %p69 = scmp.ne.s32.totalorder %s64, %s66
    %p70 = scmp.eq.s32.totalorder %s9, 0
    %p71 = por %p69, %p70
    %p72 = scmp.ne.s32.totalorder %s64, %s66
    %p73 = scmp.eq.s32.totalorder %s14, 1
    %p74 = por %p72, %p73
    %p75 = scmp.ne.s32.totalorder %s66, %s67
    %p76 = scmp.eq.s32.totalorder %s14, 0
    %p77 = por %p75, %p76
    %p78 = scmp.ne.s32.totalorder %s66, %s67
    %p79 = scmp.eq.s32.totalorder %s15, 1
    %p80 = por %p78, %p79
    %p82 = scmp.ne.s32.totalorder %s67, %s81
    %p83 = scmp.eq.s32.totalorder %s15, 0
    %p84 = por %p82, %p83
    %s85 = ssub.s32 %s9, %s16
    %p86 = scmp.eq.s32.totalorder %s85, 0
    %s88 = sadd.s32 %s87, 1
    %s89 = scalar_select %p86, %s87, %s88
    %p92 = pneg %p86
    %p93 = scmp.eq.s32.totalorder %s9, 1
    %p94 = por %p92, %p93
    %p95 = scmp.ne.s32.totalorder %s87, %s90
    %p96 = scmp.eq.s32.totalorder %s9, 0
    %p97 = por %p95, %p96
    %p98 = scmp.ne.s32.totalorder %s87, %s90
    %p99 = scmp.eq.s32.totalorder %s14, 1
    %p100 = por %p98, %p99
    %p101 = scmp.ne.s32.totalorder %s90, %s91
    %p102 = scmp.eq.s32.totalorder %s14, 0
    %p103 = por %p101, %p102
    %p104 = scmp.ne.s32.totalorder %s90, %s91
    %p105 = scmp.eq.s32.totalorder %s15, 1
    %p106 = por %p104, %p105
    %p108 = scmp.ne.s32.totalorder %s91, %s107
    %p109 = scmp.eq.s32.totalorder %s15, 0
    %p110 = por %p108, %p109
    %p111 = scmp.le.s32.totalorder 1, %s9
    %p112 = scmp.lt.s32.totalorder %s9, 3
    %p113 = pnand %p111, %p112
    %p114 = pneg %p113
    // Predicated region
    $region9: #{discriminator_forward.6} parent=5 // pred_check
      _
    $region10: #{discriminator_forward.6} parent=5 // pred_check_branch
      %116 = sbr.rel (%p113) target = $region12
    $region11: #{discriminator_forward.6} parent=5 // pred_region
      %s117 = ssub.s32 %s9, 1
      // Predicated region
      $region13: #{discriminator_forward.6} parent=11 // pred_check
        %p118 = pneg %p56
      $region14: #{discriminator_forward.6} parent=11 // pred_check_branch
        %120 = sbr.rel (%p118) target = $region16
      $region15: #{discriminator_forward.6} parent=11 // pred_region
        _
      $region16: #{discriminator_forward.6} parent=11 // pred_fallthru
        _
      // Predicated region
      $region17: #{discriminator_forward.6} parent=11 // pred_check
        %p121 = pneg %p77
      $region18: #{discriminator_forward.6} parent=11 // pred_check_branch
        %123 = sbr.rel (%p121) target = $region20
      $region19: #{discriminator_forward.6} parent=11 // pred_region
        _
      $region20: #{discriminator_forward.6} parent=11 // pred_fallthru
        _
    $region12: #{discriminator_forward.6} parent=5 // pred_fallthru
      _
    %p124 = scmp.lt.s32.totalorder %s9, 2
    // Predicated region
    $region21: #{discriminator_forward.6} parent=5 // pred_check
      %p125 = pneg %p124
    $region22: #{discriminator_forward.6} parent=5 // pred_check_branch
      %127 = sbr.rel (%p125) target = $region24
    $region23: #{discriminator_forward.6} parent=5 // pred_region
      // Predicated region
      $region25: #{discriminator_forward.6} parent=23 // pred_check
        %p128 = pneg %p29
      $region26: #{discriminator_forward.6} parent=23 // pred_check_branch
        %130 = sbr.rel (%p128) target = $region28
      $region27: #{discriminator_forward.6} parent=23 // pred_region
        %s131 = smul.u32 8, %s9
        %p132 = scmp.lt.s32.totalorder %s131, 15
        %s133 = scalar_select %p132, %s131, 15
        %s134 = smul.addr %s133, 4
        %s135 = scalar_lea.vmem %s0, %s134
        %s136 = smul.u32 8, %s9
      $region28: #{discriminator_forward.6} parent=23 // pred_fallthru
        _
    $region24: #{discriminator_forward.6} parent=5 // pred_fallthru
      _
    %p137 = scmp.le.s32.totalorder 1, %s9
    %p138 = scmp.lt.s32.totalorder %s9, 3
    %p139 = pnand %p137, %p138
    %p140 = pneg %p139
    // Predicated region
    $region29: #{discriminator_forward.6} parent=5 // pred_check
      _
    $region30: #{discriminator_forward.6} parent=5 // pred_check_branch
      %142 = sbr.rel (%p139) target = $region32
    $region31: #{discriminator_forward.6} parent=5 // pred_region
      %s143 = ssub.s32 %s9, 1
      %s144 = smul.u32 8, %s14
      %p145 = scmp.lt.s32.totalorder %s144, 15
      %s146 = scalar_select %p145, %s144, 15
      %s147 = smul.addr %s146, 4
      %s148 = scalar_lea.vmem %s0, %s147
      %p149 = pneg %p35
      %p150 = pneg %p32
      %p151 = pneg %p56
      %p152 = pneg %p53
      %p153 = pneg %p77
      %p154 = pneg %p74
      %p155 = pneg %p103
      %p156 = pneg %p100
      %s157 = smul.u32 8, %s14
      %p158 = scmp.lt.s32.totalorder %s157, 15
      %s159 = scalar_select %p158, %s157, 15
      %s160 = smul.addr %s159, 4
      %s161 = scalar_lea.vmem %s3, %s160
      %s162 = smul.u32 8, %s14
      %p163 = scmp.lt.s32.totalorder %s162, 15
      %s164 = scalar_select %p163, %s162, 15
      %s165 = smul.addr %s164, 4
      %s166 = scalar_lea.vmem %s0, %s165
      %s167 = smul.u32 8, %s14
      %s168 = smul.u32 8, %s14
      %p169 = scmp.lt.s32.totalorder %s168, 15
      %s170 = scalar_select %p169, %s168, 15
      %s171 = smul.addr %s170, 4
      %s172 = scalar_lea.vmem %s3, %s171
      %s173 = smul.u32 8, %s14
      %v175 = vld [vmem:[%s166] sm:$0xf]
      %v176 = vld [vmem:[%s166 + $0x4] sm:$0xf]
      %v177 = vld [vmem:[%s166 + $0x8] sm:$0xf]
      %v178 = vld [vmem:[%s166 + $0xc] sm:$0xf]
      %v179 = vld [vmem:[%s166 + $0x10] sm:$0xf]
      %v180 = vld [vmem:[%s166 + $0x14] sm:$0xf]
      %v181 = vld [vmem:[%s166 + $0x18] sm:$0xf]
      %v182 = vld [vmem:[%s166 + $0x1c] sm:$0xf]
      %v183 = vld [vmem:[%s1] sm:$0xf]
      %v184 = vld [vmem:[%s1 + $0x4] sm:$0xf]
      %v185 = vld [vmem:[%s1 + $0x8] sm:$0xf]
      %v186 = vld [vmem:[%s1 + $0xc] sm:$0xf]
      %v187 = vld [vmem:[%s1 + $0x10] sm:$0xf]
      %v188 = vld [vmem:[%s1 + $0x14] sm:$0xf]
      %v189 = vld [vmem:[%s1 + $0x18] sm:$0xf]
      %v190 = vld [vmem:[%s1 + $0x1c] sm:$0xf]
      %v191 = vld [vmem:[%s2] sm:$0x1]
      %v193 = vperm.slane %v191, 0
      %v203 = vunpack.c.l.b16 %v175
      %v204 = vunpack.c.l.b16 %v176
      %v205 = vunpack.c.l.b16 %v177
      %v206 = vunpack.c.l.b16 %v178
      %v207 = vunpack.c.l.b16 %v179
      %v208 = vunpack.c.l.b16 %v180
      %v209 = vunpack.c.l.b16 %v181
      %v210 = vunpack.c.l.b16 %v182
      %v211 = vpack.c.b16 %v204, %v203
      %v212 = vpack.c.b16 %v206, %v205
      %v213 = vpack.c.b16 %v208, %v207
      %v214 = vpack.c.b16 %v210, %v209
      %v223 = vunpack.c.l.b16 %v183
      %v224 = vunpack.c.l.b16 %v184
      %v225 = vunpack.c.l.b16 %v185
      %v226 = vunpack.c.l.b16 %v186
      %v227 = vunpack.c.l.b16 %v187
      %v228 = vunpack.c.l.b16 %v188
      %v229 = vunpack.c.l.b16 %v189
      %v230 = vunpack.c.l.b16 %v190
      %v231 = vpack.c.b16 %v224, %v223
      %v232 = vpack.c.b16 %v226, %v225
      %v233 = vpack.c.b16 %v228, %v227
      %v234 = vpack.c.b16 %v230, %v229
      %vm239 = vcmask 523264
      %v241 = vsel %vm239, %v211, 0
      %v244 = vsel %vm239, %v212, 0
      %v247 = vsel %vm239, %v213, 0
      %v250 = vsel %vm239, %v214, 0
      %252 = vmatpush.bf16.msra.mxu0 0
      %253 = vmatpush.bf16.msra.mxu0 0
      %254 = vmatpush.bf16.msra.mxu0 0
      %255 = vmatpush.bf16.msra.mxu0 0
      %256 = vmatpush.bf16.msra.mxu0 %v234
      %257 = vmatpush.bf16.msra.mxu0 %v233
      %258 = vmatpush.bf16.msra.mxu0 %v232
      %259 = vmatpush.bf16.msra.mxu0 %v231
      %260 = vmatmul.bf16.gmra.mxu0 %v241
      %v261 = vpop.f32.mrf.mxu0
      %v262 = vadd.f32 %v193, %v261
      %v263 = vpop.f32.mrf.mxu0
      %v264 = vadd.f32 %v193, %v263
      %265 = vmatmul.bf16.gmra.mxu0 %v244
      %v266 = vpop.f32.mrf.mxu0
      %v267 = vadd.f32 %v193, %v266
      %v268 = vpop.f32.mrf.mxu0
      %v269 = vadd.f32 %v193, %v268
      %270 = vmatmul.bf16.gmra.mxu0 %v247
      %v271 = vpop.f32.mrf.mxu0
      %v272 = vadd.f32 %v193, %v271
      %v273 = vpop.f32.mrf.mxu0
      %v274 = vadd.f32 %v193, %v273
      %275 = vmatmul.bf16.gmra.mxu0 %v250
      %v276 = vpop.f32.mrf.mxu0
      %v277 = vadd.f32 %v193, %v276
      %v278 = vpop.f32.mrf.mxu0
      %v279 = vadd.f32 %v193, %v278
      %280 = vdwg.mxu0
      %v281 = vmul.f32 %v262, 0.2
      %v282 = vmul.f32 %v264, 0.2
      %v283 = vmul.f32 %v267, 0.2
      %v284 = vmul.f32 %v269, 0.2
      %v285 = vmul.f32 %v272, 0.2
      %v286 = vmul.f32 %v274, 0.2
      %v287 = vmul.f32 %v277, 0.2
      %v288 = vmul.f32 %v279, 0.2
      %v289 = vmax.f32 %v262, %v281
      %v290 = vmax.f32 %v264, %v282
      %v291 = vmax.f32 %v267, %v283
      %v292 = vmax.f32 %v269, %v284
      %v293 = vmax.f32 %v272, %v285
      %v294 = vmax.f32 %v274, %v286
      %v295 = vmax.f32 %v277, %v287
      %v296 = vmax.f32 %v279, %v288
      %v297 = vpack.c.bf16 %v289, %v289
      %v298 = vpack.c.bf16 %v290, %v290
      %v299 = vpack.c.bf16 %v291, %v291
      %v300 = vpack.c.bf16 %v292, %v292
      %v301 = vpack.c.bf16 %v293, %v293
      %v302 = vpack.c.bf16 %v294, %v294
      %v303 = vpack.c.bf16 %v295, %v295
      %v304 = vpack.c.bf16 %v296, %v296
      %305 = vst [vmem:[%s172] sm:$0xf] %v297
      %306 = vst [vmem:[%s172 + $0x4] sm:$0xf] %v298
      %307 = vst [vmem:[%s172 + $0x8] sm:$0xf] %v299
      %308 = vst [vmem:[%s172 + $0xc] sm:$0xf] %v300
      %309 = vst [vmem:[%s172 + $0x10] sm:$0xf] %v301
      %310 = vst [vmem:[%s172 + $0x14] sm:$0xf] %v302
      %311 = vst [vmem:[%s172 + $0x18] sm:$0xf] %v303
      %312 = vst [vmem:[%s172 + $0x1c] sm:$0xf] %v304
      %s313 = smul.u32 8, %s14
      %p314 = scmp.lt.s32.totalorder %s313, 15
      %s315 = scalar_select %p314, %s313, 15
      %s316 = smul.addr %s315, 4
      %s317 = scalar_lea.vmem %s3, %s316
      // Predicated region
      $region33: #{discriminator_forward.6} parent=31 // pred_check
        %p318 = pneg %p100
      $region34: #{discriminator_forward.6} parent=31 // pred_check_branch
        %320 = sbr.rel (%p318) target = $region36
      $region35: #{discriminator_forward.6} parent=31 // pred_region
        %s321 = smul.u32 8, %s14
      $region36: #{discriminator_forward.6} parent=31 // pred_fallthru
        _
    $region32: #{discriminator_forward.6} parent=5 // pred_fallthru
      _
    %p322 = scmp.le.s32.totalorder 2, %s9
    // Predicated region
    $region37: #{discriminator_forward.6} parent=5 // pred_check
      %p323 = pneg %p322
    $region38: #{discriminator_forward.6} parent=5 // pred_check_branch
      %325 = sbr.rel (%p323) target = $region40
    $region39: #{discriminator_forward.6} parent=5 // pred_region
      %s326 = ssub.s32 %s9, 2
      // Predicated region
      $region41: #{discriminator_forward.6} parent=39 // pred_check
        %p327 = pneg %p106
      $region42: #{discriminator_forward.6} parent=39 // pred_check_branch
        %329 = sbr.rel (%p327) target = $region44
      $region43: #{discriminator_forward.6} parent=39 // pred_region
        %s330 = smul.u32 8, %s15
        %p331 = scmp.lt.s32.totalorder %s330, 15
        %s332 = scalar_select %p331, %s330, 15
        %s333 = smul.addr %s332, 4
        %s334 = scalar_lea.vmem %s3, %s333
      $region44: #{discriminator_forward.6} parent=39 // pred_fallthru
        _
    $region40: #{discriminator_forward.6} parent=5 // pred_fallthru
      _
  $region6: #{discriminator_forward.6} parent=0 // loop_footer
    %s13 = sadd.s32 1, %s9
  $region7: #{discriminator_forward.6} parent=0 // loop_footer_branch
    %8 = sbr.rel target = $region3
  $region8: #{discriminator_forward.6} parent=0 // loop_exit
    _

// kernel: discriminator_forward.7
$region0: #{discriminator_forward.7}
  #allocation0 [shape = 'u32[]', space=smem, size = 0x4, offset = 0x4, fixed_abs, tag = 'smem constant byte address 0x4 - core index']
  #allocation1 [shape = 'u32[72,128]{1,0:T(1,128)}', space=vmem, size = 0x9000, scoped, tag = 'internal scratch']
  %s0 = inlined_call_operand.vmem [shape: bf16[32,1024], index: 0, kind: input, shape index: {}]
  %s1 = inlined_call_operand.vmem [shape: bf16[1024,128], index: 1, kind: input, shape index: {}]
  %s2 = inlined_call_operand.vmem [shape: f32[1,128], index: 2, kind: input, shape index: {}]
  %s3 = inlined_call_operand.vmem [shape: bf16[32,128], index: 3, kind: output, shape index: {0}]
  %s4 = inlined_call_operand.vmem [shape: f32[2,1,128], index: 4, kind: output, shape index: {1}]
  %s5 = inlined_call_operand.vmem [shape: f32[2,1,128], index: 5, kind: output, shape index: {2}]
  %6 = xla_tuple %s3, %s4, %s5
  %s7 = sld [smem:[#allocation0]]
  $region61: #{discriminator_forward.7} parent=0
    _
  %s9 = ssub.s32 1, %s7
  %s10 = scalar_select 0, %s9, %s7
  loop: start=0, step=1, limit=4
  $region2: #{discriminator_forward.7} parent=0 // loop_pre_header
    _
  $region3: #{discriminator_forward.7} parent=0 // loop_header
    %s12 = sphi 0, %s16
    %p13 = scmp.ge.s32.totalorder %s12, 4
    %s22 = sphi 0, %s24
    %s25 = sphi 0, %s22
    %s26 = sphi 0, %s25
    %s42 = sphi 0, %s26
    %s46 = sphi 0, %s46
    %s48 = sphi 0, %s46
    %s49 = sphi 0, %s48
    %s63 = sphi 0, %s49
    %s67 = sphi 0, %s67
    %s69 = sphi 0, %s67
    %s70 = sphi 0, %s69
    %s84 = sphi 0, %s70
    %s90 = sphi 0, %s92
    %s93 = sphi 0, %s90
    %s94 = sphi 0, %s93
    %s110 = sphi 0, %s94
    %s116 = sphi 0, %s118
    %s119 = sphi 0, %s116
    %s120 = sphi 0, %s119
    %s136 = sphi 0, %s120
    %s142 = sphi 0, %s144
    %s145 = sphi 0, %s142
    %s146 = sphi 0, %s145
    %s162 = sphi 0, %s146
  $region4: #{discriminator_forward.7} parent=0 // loop_header_branch
    %15 = sbr.rel (%p13) target = $region8
  $region5: #{discriminator_forward.7} parent=0 // loop_body
    %s17 = ssub.s32 %s12, 1
    %s18 = ssub.s32 %s12, 2
    %s19 = sadd.s32 %s12, 1
    %s20 = ssub.s32 %s12, %s19
    %p21 = scmp.eq.s32.totalorder %s20, 0
    %s23 = sadd.s32 %s22, 1
    %s24 = scalar_select %p21, %s22, %s23
    %p27 = pneg %p21
    %p28 = scmp.eq.s32.totalorder %s12, 1
    %p29 = por %p27, %p28
    %p30 = scmp.ne.s32.totalorder %s22, %s25
    %p31 = scmp.eq.s32.totalorder %s12, 0
    %p32 = por %p30, %p31
    %p33 = scmp.ne.s32.totalorder %s22, %s25
    %p34 = scmp.eq.s32.totalorder %s17, 1
    %p35 = por %p33, %p34
    %p36 = scmp.ne.s32.totalorder %s25, %s26
    %p37 = scmp.eq.s32.totalorder %s17, 0
    %p38 = por %p36, %p37
    %p39 = scmp.ne.s32.totalorder %s25, %s26
    %p40 = scmp.eq.s32.totalorder %s18, 1
    %p41 = por %p39, %p40
    %p43 = scmp.ne.s32.totalorder %s26, %s42
    %p44 = scmp.eq.s32.totalorder %s18, 0
    %p45 = por %p43, %p44
    %s47 = sadd.s32 %s46, 1
    %p50 = scmp.eq.s32.totalorder %s12, 1
    %p51 = scmp.ne.s32.totalorder %s46, %s48
    %p52 = scmp.eq.s32.totalorder %s12, 0
    %p53 = por %p51, %p52
    %p54 = scmp.ne.s32.totalorder %s46, %s48
    %p55 = scmp.eq.s32.totalorder %s17, 1
    %p56 = por %p54, %p55
    %p57 = scmp.ne.s32.totalorder %s48, %s49
    %p58 = scmp.eq.s32.totalorder %s17, 0
    %p59 = por %p57, %p58
    %p60 = scmp.ne.s32.totalorder %s48, %s49
    %p61 = scmp.eq.s32.totalorder %s18, 1
    %p62 = por %p60, %p61
    %p64 = scmp.ne.s32.totalorder %s49, %s63
    %p65 = scmp.eq.s32.totalorder %s18, 0
    %p66 = por %p64, %p65
    %s68 = sadd.s32 %s67, 1
    %p71 = scmp.eq.s32.totalorder %s12, 1
    %p72 = scmp.ne.s32.totalorder %s67, %s69
    %p73 = scmp.eq.s32.totalorder %s12, 0
    %p74 = por %p72, %p73
    %p75 = scmp.ne.s32.totalorder %s67, %s69
    %p76 = scmp.eq.s32.totalorder %s17, 1
    %p77 = por %p75, %p76
    %p78 = scmp.ne.s32.totalorder %s69, %s70
    %p79 = scmp.eq.s32.totalorder %s17, 0
    %p80 = por %p78, %p79
    %p81 = scmp.ne.s32.totalorder %s69, %s70
    %p82 = scmp.eq.s32.totalorder %s18, 1
    %p83 = por %p81, %p82
    %p85 = scmp.ne.s32.totalorder %s70, %s84
    %p86 = scmp.eq.s32.totalorder %s18, 0
    %p87 = por %p85, %p86
    %s88 = ssub.s32 %s12, %s19
    %p89 = scmp.eq.s32.totalorder %s88, 0
    %s91 = sadd.s32 %s90, 1
    %s92 = scalar_select %p89, %s90, %s91
    %p95 = pneg %p89
    %p96 = scmp.eq.s32.totalorder %s12, 1
    %p97 = por %p95, %p96
    %p98 = scmp.ne.s32.totalorder %s90, %s93
    %p99 = scmp.eq.s32.totalorder %s12, 0
    %p100 = por %p98, %p99
    %p101 = scmp.ne.s32.totalorder %s90, %s93
    %p102 = scmp.eq.s32.totalorder %s17, 1
    %p103 = por %p101, %p102
    %p104 = scmp.ne.s32.totalorder %s93, %s94
    %p105 = scmp.eq.s32.totalorder %s17, 0
    %p106 = por %p104, %p105
    %p107 = scmp.ne.s32.totalorder %s93, %s94
    %p108 = scmp.eq.s32.totalorder %s18, 1
    %p109 = por %p107, %p108
    %p111 = scmp.ne.s32.totalorder %s94, %s110
    %p112 = scmp.eq.s32.totalorder %s18, 0
    %p113 = por %p111, %p112
    %s114 = ssub.s32 %s12, %s19
    %p115 = scmp.eq.s32.totalorder %s114, 0
    %s117 = sadd.s32 %s116, 1
    %s118 = scalar_select %p115, %s116, %s117
    %p121 = pneg %p115
    %p122 = scmp.eq.s32.totalorder %s12, 1
    %p123 = por %p121, %p122
    %p124 = scmp.ne.s32.totalorder %s116, %s119
    %p125 = scmp.eq.s32.totalorder %s12, 0
    %p126 = por %p124, %p125
    %p127 = scmp.ne.s32.totalorder %s116, %s119
    %p128 = scmp.eq.s32.totalorder %s17, 1
    %p129 = por %p127, %p128
    %p130 = scmp.ne.s32.totalorder %s119, %s120
    %p131 = scmp.eq.s32.totalorder %s17, 0
    %p132 = por %p130, %p131
    %p133 = scmp.ne.s32.totalorder %s119, %s120
    %p134 = scmp.eq.s32.totalorder %s18, 1
    %p135 = por %p133, %p134
    %p137 = scmp.ne.s32.totalorder %s120, %s136
    %p138 = scmp.eq.s32.totalorder %s18, 0
    %p139 = por %p137, %p138
    %s140 = ssub.s32 %s12, %s19
    %p141 = scmp.eq.s32.totalorder %s140, 0
    %s143 = sadd.s32 %s142, 1
    %s144 = scalar_select %p141, %s142, %s143
    %p147 = pneg %p141
    %p148 = scmp.eq.s32.totalorder %s12, 1
    %p149 = por %p147, %p148
    %p150 = scmp.ne.s32.totalorder %s142, %s145
    %p151 = scmp.eq.s32.totalorder %s12, 0
    %p152 = por %p150, %p151
    %p153 = scmp.ne.s32.totalorder %s142, %s145
    %p154 = scmp.eq.s32.totalorder %s17, 1
    %p155 = por %p153, %p154
    %p156 = scmp.ne.s32.totalorder %s145, %s146
    %p157 = scmp.eq.s32.totalorder %s17, 0
    %p158 = por %p156, %p157
    %p159 = scmp.ne.s32.totalorder %s145, %s146
    %p160 = scmp.eq.s32.totalorder %s18, 1
    %p161 = por %p159, %p160
    %p163 = scmp.ne.s32.totalorder %s146, %s162
    %p164 = scmp.eq.s32.totalorder %s18, 0
    %p165 = por %p163, %p164
    %p166 = scmp.le.s32.totalorder 1, %s12
    %p167 = scmp.lt.s32.totalorder %s12, 3
    %p168 = pnand %p166, %p167
    %p169 = pneg %p168
    // Predicated region
    $region9: #{discriminator_forward.7} parent=5 // pred_check
      _
    $region10: #{discriminator_forward.7} parent=5 // pred_check_branch
      %171 = sbr.rel (%p168) target = $region12
    $region11: #{discriminator_forward.7} parent=5 // pred_region
      %s172 = ssub.s32 %s12, 1
      // Predicated region
      $region13: #{discriminator_forward.7} parent=11 // pred_check
        %p173 = pneg %p59
      $region14: #{discriminator_forward.7} parent=11 // pred_check_branch
        %175 = sbr.rel (%p173) target = $region16
      $region15: #{discriminator_forward.7} parent=11 // pred_region
        _
      $region16: #{discriminator_forward.7} parent=11 // pred_fallthru
        _
      // Predicated region
      $region17: #{discriminator_forward.7} parent=11 // pred_check
        %p176 = pneg %p80
      $region18: #{discriminator_forward.7} parent=11 // pred_check_branch
        %178 = sbr.rel (%p176) target = $region20
      $region19: #{discriminator_forward.7} parent=11 // pred_region
        _
      $region20: #{discriminator_forward.7} parent=11 // pred_fallthru
        _
    $region12: #{discriminator_forward.7} parent=5 // pred_fallthru
      _
    %p179 = scmp.lt.s32.totalorder %s12, 2
    // Predicated region
    $region21: #{discriminator_forward.7} parent=5 // pred_check
      %p180 = pneg %p179
    $region22: #{discriminator_forward.7} parent=5 // pred_check_branch
      %182 = sbr.rel (%p180) target = $region24
    $region23: #{discriminator_forward.7} parent=5 // pred_region
      // Predicated region
      $region25: #{discriminator_forward.7} parent=23 // pred_check
        %p183 = pneg %p32
      $region26: #{discriminator_forward.7} parent=23 // pred_check_branch
        %185 = sbr.rel (%p183) target = $region28
      $region27: #{discriminator_forward.7} parent=23 // pred_region
        %s186 = smul.u32 2, %s12
        %p187 = scmp.lt.s32.totalorder %s186, 3
        %s188 = scalar_select %p187, %s186, 3
        %s189 = smul.addr %s188, 8
        %s190 = smul.addr %s189, 4
        %s191 = scalar_lea.vmem %s0, %s190
        %s192 = smul.u32 2, %s12
      $region28: #{discriminator_forward.7} parent=23 // pred_fallthru
        _
    $region24: #{discriminator_forward.7} parent=5 // pred_fallthru
      _
    %p193 = scmp.le.s32.totalorder 1, %s12
    %p194 = scmp.lt.s32.totalorder %s12, 3
    %p195 = pnand %p193, %p194
    %p196 = pneg %p195
    // Predicated region
    $region29: #{discriminator_forward.7} parent=5 // pred_check
      _
    $region30: #{discriminator_forward.7} parent=5 // pred_check_branch
      %198 = sbr.rel (%p195) target = $region32
    $region31: #{discriminator_forward.7} parent=5 // pred_region
      %s199 = ssub.s32 %s12, 1
      %s200 = smul.u32 2, %s17
      %p201 = scmp.lt.s32.totalorder %s200, 3
      %s202 = scalar_select %p201, %s200, 3
      %s203 = smul.addr %s202, 8
      %s204 = smul.addr %s203, 4
      %s205 = scalar_lea.vmem %s0, %s204
      %p206 = pneg %p38
      %p207 = pneg %p35
      %p208 = pneg %p59
      %p209 = pneg %p56
      %p210 = pneg %p80
      %p211 = pneg %p77
      %p212 = pneg %p106
      %p213 = pneg %p103
      %s214 = smul.u32 2, %s17
      %p215 = scmp.lt.s32.totalorder %s214, 3
      %s216 = scalar_select %p215, %s214, 3
      %s217 = smul.addr %s216, 4
      %s218 = scalar_lea.vmem %s3, %s217
      %p219 = pneg %p132
      %p220 = pneg %p129
      %p221 = scmp.lt.s32.totalorder %s17, 1
      %s222 = scalar_select %p221, %s17, 1
      %s223 = scalar_lea.vmem %s4, %s222
      %p224 = pneg %p158
      %p225 = pneg %p155
      %p226 = scmp.lt.s32.totalorder %s17, 1
      %s227 = scalar_select %p226, %s17, 1
      %s228 = scalar_lea.vmem %s5, %s227
      %s229 = smul.u32 2, %s17
      %p230 = scmp.lt.s32.totalorder %s229, 3
      %s231 = scalar_select %p230, %s229, 3
      %s232 = smul.addr %s231, 8
      %s233 = smul.addr %s232, 4
      %s234 = scalar_lea.vmem %s0, %s233
      %s235 = smul.u32 2, %s17
      %s236 = smul.u32 2, %s17
      %p237 = scmp.lt.s32.totalorder %s236, 3
      %s238 = scalar_select %p237, %s236, 3
      %s239 = smul.addr %s238, 4
      %s240 = scalar_lea.vmem %s3, %s239
      %s241 = smul.u32 2, %s17
      %p242 = scmp.lt.s32.totalorder %s17, 1
      %s243 = scalar_select %p242, %s17, 1
      %s244 = scalar_lea.vmem %s4, %s243
      %p245 = scmp.lt.s32.totalorder %s17, 1
      %s246 = scalar_select %p245, %s17, 1
      %s247 = scalar_lea.vmem %s5, %s246
      %v248 = vld [vmem:[%s234] sm:$0xff]
      %v249 = vld [vmem:[%s234 + $0x8] sm:$0xff]
      %v250 = vld [vmem:[%s234 + $0x10] sm:$0xff]
      %v251 = vld [vmem:[%s234 + $0x18] sm:$0xff]
      %v252 = vld [vmem:[%s234 + $0x20] sm:$0xff]
      %v253 = vld [vmem:[%s234 + $0x28] sm:$0xff]
      %v254 = vld [vmem:[%s234 + $0x30] sm:$0xff]
      %v255 = vld [vmem:[%s234 + $0x38] sm:$0xff]
      %v256 = vld [vmem:[%s1] sm:$0xf]
      %v257 = vld [vmem:[%s1 + $0x4] sm:$0xf]
      %v258 = vld [vmem:[%s1 + $0x8] sm:$0xf]
      %v259 = vld [vmem:[%s1 + $0xc] sm:$0xf]
      %v260 = vld [vmem:[%s1 + $0x10] sm:$0xf]
      %v261 = vld [vmem:[%s1 + $0x14] sm:$0xf]
      %v262 = vld [vmem:[%s1 + $0x18] sm:$0xf]
      %v263 = vld [vmem:[%s1 + $0x1c] sm:$0xf]
      %v264 = vld [vmem:[%s1 + $0x20] sm:$0xf]
      %v265 = vld [vmem:[%s1 + $0x24] sm:$0xf]
      %v266 = vld [vmem:[%s1 + $0x28] sm:$0xf]
      %v267 = vld [vmem:[%s1 + $0x2c] sm:$0xf]
      %v268 = vld [vmem:[%s1 + $0x30] sm:$0xf]
      %v269 = vld [vmem:[%s1 + $0x34] sm:$0xf]
      %v270 = vld [vmem:[%s1 + $0x38] sm:$0xf]
      %v271 = vld [vmem:[%s1 + $0x3c] sm:$0xf]
      %v272 = vld [vmem:[%s1 + $0x40] sm:$0xf]
      %v273 = vld [vmem:[%s1 + $0x44] sm:$0xf]
      %v274 = vld [vmem:[%s1 + $0x48] sm:$0xf]
      %v275 = vld [vmem:[%s1 + $0x4c] sm:$0xf]
      %v276 = vld [vmem:[%s1 + $0x50] sm:$0xf]
      %v277 = vld [vmem:[%s1 + $0x54] sm:$0xf]
      %v278 = vld [vmem:[%s1 + $0x58] sm:$0xf]
      %v279 = vld [vmem:[%s1 + $0x5c] sm:$0xf]
      %v280 = vld [vmem:[%s1 + $0x60] sm:$0xf]
      %v281 = vld [vmem:[%s1 + $0x64] sm:$0xf]
      %v282 = vld [vmem:[%s1 + $0x68] sm:$0xf]
      %v283 = vld [vmem:[%s1 + $0x6c] sm:$0xf]
      %v284 = vld [vmem:[%s1 + $0x70] sm:$0xf]
      %v285 = vld [vmem:[%s1 + $0x74] sm:$0xf]
      %v286 = vld [vmem:[%s1 + $0x78] sm:$0xf]
      %v287 = vld [vmem:[%s1 + $0x7c] sm:$0xf]
      %v288 = vld [vmem:[%s1 + $0x80] sm:$0xf]
      %v289 = vld [vmem:[%s1 + $0x84] sm:$0xf]
      %v290 = vld [vmem:[%s1 + $0x88] sm:$0xf]
      %v291 = vld [vmem:[%s1 + $0x8c] sm:$0xf]
      %v292 = vld [vmem:[%s1 + $0x90] sm:$0xf]
      %v293 = vld [vmem:[%s1 + $0x94] sm:$0xf]
      %v294 = vld [vmem:[%s1 + $0x98] sm:$0xf]
      %v295 = vld [vmem:[%s1 + $0x9c] sm:$0xf]
      %v296 = vld [vmem:[%s1 + $0xa0] sm:$0xf]
      %v297 = vld [vmem:[%s1 + $0xa4] sm:$0xf]
      %v298 = vld [vmem:[%s1 + $0xa8] sm:$0xf]
      %v299 = vld [vmem:[%s1 + $0xac] sm:$0xf]
      %v300 = vld [vmem:[%s1 + $0xb0] sm:$0xf]
      %v301 = vld [vmem:[%s1 + $0xb4] sm:$0xf]
      %v302 = vld [vmem:[%s1 + $0xb8] sm:$0xf]
      %v303 = vld [vmem:[%s1 + $0xbc] sm:$0xf]
      %v304 = vld [vmem:[%s1 + $0xc0] sm:$0xf]
      %v305 = vld [vmem:[%s1 + $0xc4] sm:$0xf]
      %v306 = vld [vmem:[%s1 + $0xc8] sm:$0xf]
      %v307 = vld [vmem:[%s1 + $0xcc] sm:$0xf]
      %v308 = vld [vmem:[%s1 + $0xd0] sm:$0xf]
      %v309 = vld [vmem:[%s1 + $0xd4] sm:$0xf]
      %v310 = vld [vmem:[%s1 + $0xd8] sm:$0xf]
      %v311 = vld [vmem:[%s1 + $0xdc] sm:$0xf]
      %v312 = vld [vmem:[%s1 + $0xe0] sm:$0xf]
      %v313 = vld [vmem:[%s1 + $0xe4] sm:$0xf]
      %v314 = vld [vmem:[%s1 + $0xe8] sm:$0xf]
      %v315 = vld [vmem:[%s1 + $0xec] sm:$0xf]
      %v316 = vld [vmem:[%s1 + $0xf0] sm:$0xf]
      %v317 = vld [vmem:[%s1 + $0xf4] sm:$0xf]
      %v318 = vld [vmem:[%s1 + $0xf8] sm:$0xf]
      %v319 = vld [vmem:[%s1 + $0xfc] sm:$0xf]
      %v320 = vld [vmem:[%s1 + $0x100] sm:$0xf]
      %v321 = vld [vmem:[%s1 + $0x104] sm:$0xf]
      %v322 = vld [vmem:[%s1 + $0x108] sm:$0xf]
      %v323 = vld [vmem:[%s1 + $0x10c] sm:$0xf]
      %v324 = vld [vmem:[%s1 + $0x110] sm:$0xf]
      %v325 = vld [vmem:[%s1 + $0x114] sm:$0xf]
      %v326 = vld [vmem:[%s1 + $0x118] sm:$0xf]
      %v327 = vld [vmem:[%s1 + $0x11c] sm:$0xf]
      %v328 = vld [vmem:[%s1 + $0x120] sm:$0xf]
      %v329 = vld [vmem:[%s1 + $0x124] sm:$0xf]
      %v330 = vld [vmem:[%s1 + $0x128] sm:$0xf]
      %v331 = vld [vmem:[%s1 + $0x12c] sm:$0xf]
      %v332 = vld [vmem:[%s1 + $0x130] sm:$0xf]
      %v333 = vld [vmem:[%s1 + $0x134] sm:$0xf]
      %v334 = vld [vmem:[%s1 + $0x138] sm:$0xf]
      %v335 = vld [vmem:[%s1 + $0x13c] sm:$0xf]
      %v336 = vld [vmem:[%s1 + $0x140] sm:$0xf]
      %v337 = vld [vmem:[%s1 + $0x144] sm:$0xf]
      %v338 = vld [vmem:[%s1 + $0x148] sm:$0xf]
      %v339 = vld [vmem:[%s1 + $0x14c] sm:$0xf]
      %v340 = vld [vmem:[%s1 + $0x150] sm:$0xf]
      %v341 = vld [vmem:[%s1 + $0x154] sm:$0xf]
      %v342 = vld [vmem:[%s1 + $0x158] sm:$0xf]
      %v343 = vld [vmem:[%s1 + $0x15c] sm:$0xf]
      %v344 = vld [vmem:[%s1 + $0x160] sm:$0xf]
      %v345 = vld [vmem:[%s1 + $0x164] sm:$0xf]
      %v346 = vld [vmem:[%s1 + $0x168] sm:$0xf]
      %v347 = vld [vmem:[%s1 + $0x16c] sm:$0xf]
      %v348 = vld [vmem:[%s1 + $0x170] sm:$0xf]
      %v349 = vld [vmem:[%s1 + $0x174] sm:$0xf]
      %v350 = vld [vmem:[%s1 + $0x178] sm:$0xf]
      %v351 = vld [vmem:[%s1 + $0x17c] sm:$0xf]
      %v352 = vld [vmem:[%s1 + $0x180] sm:$0xf]
      %v353 = vld [vmem:[%s1 + $0x184] sm:$0xf]
      %v354 = vld [vmem:[%s1 + $0x188] sm:$0xf]
      %v355 = vld [vmem:[%s1 + $0x18c] sm:$0xf]
      %v356 = vld [vmem:[%s1 + $0x190] sm:$0xf]
      %v357 = vld [vmem:[%s1 + $0x194] sm:$0xf]
      %v358 = vld [vmem:[%s1 + $0x198] sm:$0xf]
      %v359 = vld [vmem:[%s1 + $0x19c] sm:$0xf]
      %v360 = vld [vmem:[%s1 + $0x1a0] sm:$0xf]
      %v361 = vld [vmem:[%s1 + $0x1a4] sm:$0xf]
      %v362 = vld [vmem:[%s1 + $0x1a8] sm:$0xf]
      %v363 = vld [vmem:[%s1 + $0x1ac] sm:$0xf]
      %v364 = vld [vmem:[%s1 + $0x1b0] sm:$0xf]
      %v365 = vld [vmem:[%s1 + $0x1b4] sm:$0xf]
      %v366 = vld [vmem:[%s1 + $0x1b8] sm:$0xf]
      %v367 = vld [vmem:[%s1 + $0x1bc] sm:$0xf]
      %v368 = vld [vmem:[%s1 + $0x1c0] sm:$0xf]
      %v369 = vld [vmem:[%s1 + $0x1c4] sm:$0xf]
      %v370 = vld [vmem:[%s1 + $0x1c8] sm:$0xf]
      %v371 = vld [vmem:[%s1 + $0x1cc] sm:$0xf]
      %v372 = vld [vmem:[%s1 + $0x1d0] sm:$0xf]
      %v373 = vld [vmem:[%s1 + $0x1d4] sm:$0xf]
      %v374 = vld [vmem:[%s1 + $0x1d8] sm:$0xf]
      %v375 = vld [vmem:[%s1 + $0x1dc] sm:$0xf]
      %v376 = vld [vmem:[%s1 + $0x1e0] sm:$0xf]
      %v377 = vld [vmem:[%s1 + $0x1e4] sm:$0xf]
      %v378 = vld [vmem:[%s1 + $0x1e8] sm:$0xf]
      %v379 = vld [vmem:[%s1 + $0x1ec] sm:$0xf]
      %v380 = vld [vmem:[%s1 + $0x1f0] sm:$0xf]
      %v381 = vld [vmem:[%s1 + $0x1f4] sm:$0xf]
      %v382 = vld [vmem:[%s1 + $0x1f8] sm:$0xf]
      %v383 = vld [vmem:[%s1 + $0x1fc] sm:$0xf]
      %v384 = vld [vmem:[%s2] sm:$0x1]
      %v386 = vperm.slane %v384, 0
      %v396 = vunpack.c.l.b16 %v248
      %v397 = vunpack.c.h.b16 %v248
      %v398 = vunpack.c.l.b16 %v249
      %v399 = vunpack.c.h.b16 %v249
      %v400 = vunpack.c.l.b16 %v250
      %v401 = vunpack.c.h.b16 %v250
      %v402 = vunpack.c.l.b16 %v251
      %v403 = vunpack.c.h.b16 %v251
      %v404 = vunpack.c.l.b16 %v252
      %v405 = vunpack.c.h.b16 %v252
      %v406 = vunpack.c.l.b16 %v253
      %v407 = vunpack.c.h.b16 %v253
      %v408 = vunpack.c.l.b16 %v254
      %v409 = vunpack.c.h.b16 %v254
      %v410 = vunpack.c.l.b16 %v255
      %v411 = vunpack.c.h.b16 %v255
      %v412 = vpack.c.b16 %v404, %v396
      %v413 = vpack.c.b16 %v405, %v397
      %v414 = vpack.c.b16 %v406, %v398
      %v415 = vpack.c.b16 %v407, %v399
      %v416 = vpack.c.b16 %v408, %v400
      %v417 = vpack.c.b16 %v409, %v401
      %v418 = vpack.c.b16 %v410, %v402
      %v419 = vpack.c.b16 %v411, %v403
      %v556 = vunpack.c.l.b16 %v256
      %v557 = vunpack.c.l.b16 %v257
      %v558 = vunpack.c.l.b16 %v258
      %v559 = vunpack.c.l.b16 %v259
      %v560 = vunpack.c.l.b16 %v260
      %v561 = vunpack.c.l.b16 %v261
      %v562 = vunpack.c.l.b16 %v262
      %v563 = vunpack.c.l.b16 %v263
      %v564 = vunpack.c.l.b16 %v264
      %v565 = vunpack.c.l.b16 %v265
      %v566 = vunpack.c.l.b16 %v266
      %v567 = vunpack.c.l.b16 %v267
      %v568 = vunpack.c.l.b16 %v268
      %v569 = vunpack.c.l.b16 %v269
      %v570 = vunpack.c.l.b16 %v270
      %v571 = vunpack.c.l.b16 %v271
      %v572 = vunpack.c.l.b16 %v272
      %v573 = vunpack.c.l.b16 %v273
      %v574 = vunpack.c.l.b16 %v274
      %v575 = vunpack.c.l.b16 %v275
      %v576 = vunpack.c.l.b16 %v276
      %v577 = vunpack.c.l.b16 %v277
      %v578 = vunpack.c.l.b16 %v278
      %v579 = vunpack.c.l.b16 %v279
      %v580 = vunpack.c.l.b16 %v280
      %v581 = vunpack.c.l.b16 %v281
      %v582 = vunpack.c.l.b16 %v282
      %v583 = vunpack.c.l.b16 %v283
      %v584 = vunpack.c.l.b16 %v284
      %v585 = vunpack.c.l.b16 %v285
      %v586 = vunpack.c.l.b16 %v286
      %v587 = vunpack.c.l.b16 %v287
      %v588 = vunpack.c.l.b16 %v288
      %v589 = vunpack.c.l.b16 %v289
      %v590 = vunpack.c.l.b16 %v290
      %v591 = vunpack.c.l.b16 %v291
      %v592 = vunpack.c.l.b16 %v292
      %v593 = vunpack.c.l.b16 %v293
      %v594 = vunpack.c.l.b16 %v294
      %v595 = vunpack.c.l.b16 %v295
      %v596 = vunpack.c.l.b16 %v296
      %v597 = vunpack.c.l.b16 %v297
      %v598 = vunpack.c.l.b16 %v298
      %v599 = vunpack.c.l.b16 %v299
      %v600 = vunpack.c.l.b16 %v300
      %v601 = vunpack.c.l.b16 %v301
      %v602 = vunpack.c.l.b16 %v302
      %v603 = vunpack.c.l.b16 %v303
      %v604 = vunpack.c.l.b16 %v304
      %v605 = vunpack.c.l.b16 %v305
      %v606 = vunpack.c.l.b16 %v306
      %v607 = vunpack.c.l.b16 %v307
      %v608 = vunpack.c.l.b16 %v308
      %v609 = vunpack.c.l.b16 %v309
      %v610 = vunpack.c.l.b16 %v310
      %v611 = vunpack.c.l.b16 %v311
      %v612 = vunpack.c.l.b16 %v312
      %v613 = vunpack.c.l.b16 %v313
      %v614 = vunpack.c.l.b16 %v314
      %v615 = vunpack.c.l.b16 %v315
      %v616 = vunpack.c.l.b16 %v316
      %v617 = vunpack.c.l.b16 %v317
      %v618 = vunpack.c.l.b16 %v318
      %v619 = vunpack.c.l.b16 %v319
      %v620 = vunpack.c.l.b16 %v320
      %v621 = vunpack.c.l.b16 %v321
      %v622 = vunpack.c.l.b16 %v322
      %v623 = vunpack.c.l.b16 %v323
      %v624 = vunpack.c.l.b16 %v324
      %v625 = vunpack.c.l.b16 %v325
      %v626 = vunpack.c.l.b16 %v326
      %v627 = vunpack.c.l.b16 %v327
      %v628 = vunpack.c.l.b16 %v328
      %v629 = vunpack.c.l.b16 %v329
      %v630 = vunpack.c.l.b16 %v330
      %v631 = vunpack.c.l.b16 %v331
      %v632 = vunpack.c.l.b16 %v332
      %v633 = vunpack.c.l.b16 %v333
      %v634 = vunpack.c.l.b16 %v334
      %v635 = vunpack.c.l.b16 %v335
      %v636 = vunpack.c.l.b16 %v336
      %v637 = vunpack.c.l.b16 %v337
      %v638 = vunpack.c.l.b16 %v338
      %v639 = vunpack.c.l.b16 %v339
      %v640 = vunpack.c.l.b16 %v340
      %v641 = vunpack.c.l.b16 %v341
      %v642 = vunpack.c.l.b16 %v342
      %v643 = vunpack.c.l.b16 %v343
      %v644 = vunpack.c.l.b16 %v344
      %v645 = vunpack.c.l.b16 %v345
      %v646 = vunpack.c.l.b16 %v346
      %v647 = vunpack.c.l.b16 %v347
      %v648 = vunpack.c.l.b16 %v348
      %v649 = vunpack.c.l.b16 %v349
      %v650 = vunpack.c.l.b16 %v350
      %v651 = vunpack.c.l.b16 %v351
      %v652 = vunpack.c.l.b16 %v352
      %v653 = vunpack.c.l.b16 %v353
      %v654 = vunpack.c.l.b16 %v354
      %v655 = vunpack.c.l.b16 %v355
      %v656 = vunpack.c.l.b16 %v356
      %v657 = vunpack.c.l.b16 %v357
      %v658 = vunpack.c.l.b16 %v358
      %v659 = vunpack.c.l.b16 %v359
      %v660 = vunpack.c.l.b16 %v360
      %v661 = vunpack.c.l.b16 %v361
      %v662 = vunpack.c.l.b16 %v362
      %v663 = vunpack.c.l.b16 %v363
      %v664 = vunpack.c.l.b16 %v364
      %v665 = vunpack.c.l.b16 %v365
      %v666 = vunpack.c.l.b16 %v366
      %v667 = vunpack.c.l.b16 %v367
      %v668 = vunpack.c.l.b16 %v368
      %v669 = vunpack.c.l.b16 %v369
      %v670 = vunpack.c.l.b16 %v370
      %v671 = vunpack.c.l.b16 %v371
      %v672 = vunpack.c.l.b16 %v372
      %v673 = vunpack.c.l.b16 %v373
      %v674 = vunpack.c.l.b16 %v374
      %v675 = vunpack.c.l.b16 %v375
      %v676 = vunpack.c.l.b16 %v376
      %v677 = vunpack.c.l.b16 %v377
      %v678 = vunpack.c.l.b16 %v378
      %v679 = vunpack.c.l.b16 %v379
      %v680 = vunpack.c.l.b16 %v380
      %v681 = vunpack.c.l.b16 %v381
      %v682 = vunpack.c.l.b16 %v382
      %v683 = vunpack.c.l.b16 %v383
      %v684 = vpack.c.b16 %v557, %v556
      %v685 = vpack.c.b16 %v559, %v558
      %v686 = vpack.c.b16 %v561, %v560
      %v687 = vpack.c.b16 %v563, %v562
      %v688 = vpack.c.b16 %v565, %v564
      %v689 = vpack.c.b16 %v567, %v566
      %v690 = vpack.c.b16 %v569, %v568
      %v691 = vpack.c.b16 %v571, %v570
      %v692 = vpack.c.b16 %v573, %v572
      %v693 = vpack.c.b16 %v575, %v574
      %v694 = vpack.c.b16 %v577, %v576
      %v695 = vpack.c.b16 %v579, %v578
      %v696 = vpack.c.b16 %v581, %v580
      %v697 = vpack.c.b16 %v583, %v582
      %v698 = vpack.c.b16 %v585, %v584
      %v699 = vpack.c.b16 %v587, %v586
      %v700 = vpack.c.b16 %v589, %v588
      %v701 = vpack.c.b16 %v591, %v590
      %v702 = vpack.c.b16 %v593, %v592
      %v703 = vpack.c.b16 %v595, %v594
      %v704 = vpack.c.b16 %v597, %v596
      %v705 = vpack.c.b16 %v599, %v598
      %v706 = vpack.c.b16 %v601, %v600
      %v707 = vpack.c.b16 %v603, %v602
      %v708 = vpack.c.b16 %v605, %v604
      %v709 = vpack.c.b16 %v607, %v606
      %v710 = vpack.c.b16 %v609, %v608
      %v711 = vpack.c.b16 %v611, %v610
      %v712 = vpack.c.b16 %v613, %v612
      %v713 = vpack.c.b16 %v615, %v614
      %v714 = vpack.c.b16 %v617, %v616
      %v715 = vpack.c.b16 %v619, %v618
      %v716 = vpack.c.b16 %v621, %v620
      %v717 = vpack.c.b16 %v623, %v622
      %v718 = vpack.c.b16 %v625, %v624
      %v719 = vpack.c.b16 %v627, %v626
      %v720 = vpack.c.b16 %v629, %v628
      %v721 = vpack.c.b16 %v631, %v630
      %v722 = vpack.c.b16 %v633, %v632
      %v723 = vpack.c.b16 %v635, %v634
      %v724 = vpack.c.b16 %v637, %v636
      %v725 = vpack.c.b16 %v639, %v638
      %v726 = vpack.c.b16 %v641, %v640
      %v727 = vpack.c.b16 %v643, %v642
      %v728 = vpack.c.b16 %v645, %v644
      %v729 = vpack.c.b16 %v647, %v646
      %v730 = vpack.c.b16 %v649, %v648
      %v731 = vpack.c.b16 %v651, %v650
      %v732 = vpack.c.b16 %v653, %v652
      %v733 = vpack.c.b16 %v655, %v654
      %v734 = vpack.c.b16 %v657, %v656
      %v735 = vpack.c.b16 %v659, %v658
      %v736 = vpack.c.b16 %v661, %v660
      %v737 = vpack.c.b16 %v663, %v662
      %v738 = vpack.c.b16 %v665, %v664
      %v739 = vpack.c.b16 %v667, %v666
      %v740 = vpack.c.b16 %v669, %v668
      %v741 = vpack.c.b16 %v671, %v670
      %v742 = vpack.c.b16 %v673, %v672
      %v743 = vpack.c.b16 %v675, %v674
      %v744 = vpack.c.b16 %v677, %v676
      %v745 = vpack.c.b16 %v679, %v678
      %v746 = vpack.c.b16 %v681, %v680
      %v747 = vpack.c.b16 %v683, %v682
      %812 = vmatpush.bf16.msra.mxu0 %v691
      %813 = vmatpush.bf16.msra.mxu0 %v690
      %814 = vmatpush.bf16.msra.mxu0 %v689
      %815 = vmatpush.bf16.msra.mxu0 %v688
      %816 = vmatpush.bf16.msra.mxu0 %v687
      %817 = vmatpush.bf16.msra.mxu0 %v686
      %818 = vmatpush.bf16.msra.mxu0 %v685
      %819 = vmatpush.bf16.msra.mxu0 %v684
      %820 = vmatmul.bf16.gmra.mxu0 %v412
      %v821 = vpop.f32.mrf.mxu0
      %v822 = vadd.f32 %v386, %v821
      %v823 = vpop.f32.mrf.mxu0
      %v824 = vadd.f32 %v386, %v823
      %825 = vdwg.mxu0
      %826 = vmatpush.bf16.msra.mxu0 %v699
      %827 = vmatpush.bf16.msra.mxu0 %v698
      %828 = vmatpush.bf16.msra.mxu0 %v697
      %829 = vmatpush.bf16.msra.mxu0 %v696
      %830 = vmatpush.bf16.msra.mxu0 %v695
      %831 = vmatpush.bf16.msra.mxu0 %v694
      %832 = vmatpush.bf16.msra.mxu0 %v693
      %833 = vmatpush.bf16.msra.mxu0 %v692
      %834 = vmatmul.bf16.gmra.mxu0 %v413
      %v835 = vpop.f32.mrf.mxu0
      %v836 = vadd.f32 %v822, %v835
      %v837 = vpop.f32.mrf.mxu0
      %v838 = vadd.f32 %v824, %v837
      %839 = vdwg.mxu0
      %840 = vmatpush.bf16.msra.mxu0 %v707
      %841 = vmatpush.bf16.msra.mxu0 %v706
      %842 = vmatpush.bf16.msra.mxu0 %v705
      %843 = vmatpush.bf16.msra.mxu0 %v704
      %844 = vmatpush.bf16.msra.mxu0 %v703
      %845 = vmatpush.bf16.msra.mxu0 %v702
      %846 = vmatpush.bf16.msra.mxu0 %v701
      %847 = vmatpush.bf16.msra.mxu0 %v700
      %848 = vmatmul.bf16.gmra.mxu0 %v414
      %v849 = vpop.f32.mrf.mxu0
      %v850 = vadd.f32 %v836, %v849
      %v851 = vpop.f32.mrf.mxu0
      %v852 = vadd.f32 %v838, %v851
      %853 = vdwg.mxu0
      %854 = vmatpush.bf16.msra.mxu0 %v715
      %855 = vmatpush.bf16.msra.mxu0 %v714
      %856 = vmatpush.bf16.msra.mxu0 %v713
      %857 = vmatpush.bf16.msra.mxu0 %v712
      %858 = vmatpush.bf16.msra.mxu0 %v711
      %859 = vmatpush.bf16.msra.mxu0 %v710
      %860 = vmatpush.bf16.msra.mxu0 %v709
      %861 = vmatpush.bf16.msra.mxu0 %v708
      %862 = vmatmul.bf16.gmra.mxu0 %v415
      %v863 = vpop.f32.mrf.mxu0
      %v864 = vadd.f32 %v850, %v863
      %v865 = vpop.f32.mrf.mxu0
      %v866 = vadd.f32 %v852, %v865
      %867 = vdwg.mxu0
      %868 = vmatpush.bf16.msra.mxu0 %v723
      %869 = vmatpush.bf16.msra.mxu0 %v722
      %870 = vmatpush.bf16.msra.mxu0 %v721
      %871 = vmatpush.bf16.msra.mxu0 %v720
      %872 = vmatpush.bf16.msra.mxu0 %v719
      %873 = vmatpush.bf16.msra.mxu0 %v718
      %874 = vmatpush.bf16.msra.mxu0 %v717
      %875 = vmatpush.bf16.msra.mxu0 %v716
      %876 = vmatmul.bf16.gmra.mxu0 %v416
      %v877 = vpop.f32.mrf.mxu0
      %v878 = vadd.f32 %v864, %v877
      %v879 = vpop.f32.mrf.mxu0
      %v880 = vadd.f32 %v866, %v879
      %881 = vdwg.mxu0
      %882 = vmatpush.bf16.msra.mxu0 %v731
      %883 = vmatpush.bf16.msra.mxu0 %v730
      %884 = vmatpush.bf16.msra.mxu0 %v729
      %885 = vmatpush.bf16.msra.mxu0 %v728
      %886 = vmatpush.bf16.msra.mxu0 %v727
      %887 = vmatpush.bf16.msra.mxu0 %v726
      %888 = vmatpush.bf16.msra.mxu0 %v725
      %889 = vmatpush.bf16.msra.mxu0 %v724
      %890 = vmatmul.bf16.gmra.mxu0 %v417
      %v891 = vpop.f32.mrf.mxu0
      %v892 = vadd.f32 %v878, %v891
      %v893 = vpop.f32.mrf.mxu0
      %v894 = vadd.f32 %v880, %v893
      %895 = vdwg.mxu0
      %896 = vmatpush.bf16.msra.mxu0 %v739
      %897 = vmatpush.bf16.msra.mxu0 %v738
      %898 = vmatpush.bf16.msra.mxu0 %v737
      %899 = vmatpush.bf16.msra.mxu0 %v736
      %900 = vmatpush.bf16.msra.mxu0 %v735
      %901 = vmatpush.bf16.msra.mxu0 %v734
      %902 = vmatpush.bf16.msra.mxu0 %v733
      %903 = vmatpush.bf16.msra.mxu0 %v732
      %904 = vmatmul.bf16.gmra.mxu0 %v418
      %v905 = vpop.f32.mrf.mxu0
      %v906 = vadd.f32 %v892, %v905
      %v907 = vpop.f32.mrf.mxu0
      %v908 = vadd.f32 %v894, %v907
      %909 = vdwg.mxu0
      %910 = vmatpush.bf16.msra.mxu0 %v747
      %911 = vmatpush.bf16.msra.mxu0 %v746
      %912 = vmatpush.bf16.msra.mxu0 %v745
      %913 = vmatpush.bf16.msra.mxu0 %v744
      %914 = vmatpush.bf16.msra.mxu0 %v743
      %915 = vmatpush.bf16.msra.mxu0 %v742
      %916 = vmatpush.bf16.msra.mxu0 %v741
      %917 = vmatpush.bf16.msra.mxu0 %v740
      %918 = vmatmul.bf16.gmra.mxu0 %v419
      %v919 = vpop.f32.mrf.mxu0
      %v920 = vadd.f32 %v906, %v919
      %v921 = vpop.f32.mrf.mxu0
      %v922 = vadd.f32 %v908, %v921
      %923 = vdwg.mxu0
      %v924 = vpack.c.bf16 %v920, %v920
      %v925 = vpack.c.bf16 %v922, %v922
      %926 = vst [vmem:[%s240] sm:$0xf] %v924
      %927 = vst [vmem:[%s240 + $0x4] sm:$0xf] %v925
      %v928 = vadd.f32 %v920, %v922
      %v929 = vrot.slane %v928, 4
      %v930 = vadd.f32 %v928, %v929
      %v931 = vrot.slane %v930, 2
      %v932 = vadd.f32 %v930, %v931
      %v933 = vrot.slane %v932, 1
      %v934 = vadd.f32 %v932, %v933
      %935 = vst [vmem:[%s244] sm:$0x1] %v934
      %v936 = vmul.f32 %v920, %v920
      %v937 = vmul.f32 %v922, %v922
      %v938 = vadd.f32 %v936, %v937
      %v939 = vrot.slane %v938, 4
      %v940 = vadd.f32 %v938, %v939
      %v941 = vrot.slane %v940, 2
      %v942 = vadd.f32 %v940, %v941
      %v943 = vrot.slane %v942, 1
      %v944 = vadd.f32 %v942, %v943
      %945 = vst [vmem:[%s247] sm:$0x1] %v944
      %s946 = smul.u32 2, %s17
      %p947 = scmp.lt.s32.totalorder %s946, 3
      %s948 = scalar_select %p947, %s946, 3
      %s949 = smul.addr %s948, 4
      %s950 = scalar_lea.vmem %s3, %s949
      %p951 = scmp.lt.s32.totalorder %s17, 1
      %s952 = scalar_select %p951, %s17, 1
      %s953 = scalar_lea.vmem %s4, %s952
      %p954 = scmp.lt.s32.totalorder %s17, 1
      %s955 = scalar_select %p954, %s17, 1
      %s956 = scalar_lea.vmem %s5, %s955
      // Predicated region
      $region33: #{discriminator_forward.7} parent=31 // pred_check
        %p957 = pneg %p103
      $region34: #{discriminator_forward.7} parent=31 // pred_check_branch
        %959 = sbr.rel (%p957) target = $region36
      $region35: #{discriminator_forward.7} parent=31 // pred_region
        %s960 = smul.u32 2, %s17
      $region36: #{discriminator_forward.7} parent=31 // pred_fallthru
        _
      // Predicated region
      $region37: #{discriminator_forward.7} parent=31 // pred_check
        %p961 = pneg %p129
      $region38: #{discriminator_forward.7} parent=31 // pred_check_branch
        %963 = sbr.rel (%p961) target = $region40
      $region39: #{discriminator_forward.7} parent=31 // pred_region
        _
      $region40: #{discriminator_forward.7} parent=31 // pred_fallthru
        _
      // Predicated region
      $region41: #{discriminator_forward.7} parent=31 // pred_check
        %p964 = pneg %p155
      $region42: #{discriminator_forward.7} parent=31 // pred_check_branch
        %966 = sbr.rel (%p964) target = $region44
      $region43: #{discriminator_forward.7} parent=31 // pred_region
        _
      $region44: #{discriminator_forward.7} parent=31 // pred_fallthru
        _
    $region32: #{discriminator_forward.7} parent=5 // pred_fallthru
      _
    %p967 = scmp.le.s32.totalorder 2, %s12
    // Predicated region
    $region45: #{discriminator_forward.7} parent=5 // pred_check
      %p968 = pneg %p967
    $region46: #{discriminator_forward.7} parent=5 // pred_check_branch
      %970 = sbr.rel (%p968) target = $region48
    $region47: #{discriminator_forward.7} parent=5 // pred_region
      %s971 = ssub.s32 %s12, 2
      // Predicated region
      $region49: #{discriminator_forward.7} parent=47 // pred_check
        %p972 = pneg %p109
      $region50: #{discriminator_forward.7} parent=47 // pred_check_branch
        %974 = sbr.rel (%p972) target = $region52
      $region51: #{discriminator_forward.7} parent=47 // pred_region
        %s975 = smul.u32 2, %s18
        %p976 = scmp.lt.s32.totalorder %s975, 3
        %s977 = scalar_select %p976, %s975, 3
        %s978 = smul.addr %s977, 4
        %s979 = scalar_lea.vmem %s3, %s978
      $region52: #{discriminator_forward.7} parent=47 // pred_fallthru
        _
      // Predicated region
      $region53: #{discriminator_forward.7} parent=47 // pred_check
        %p980 = pneg %p135
      $region54: #{discriminator_forward.7} parent=47 // pred_check_branch
        %982 = sbr.rel (%p980) target = $region56
      $region55: #{discriminator_forward.7} parent=47 // pred_region
        %p983 = scmp.lt.s32.totalorder %s18, 1
        %s984 = scalar_select %p983, %s18, 1
        %s985 = scalar_lea.vmem %s4, %s984
      $region56: #{discriminator_forward.7} parent=47 // pred_fallthru
        _
      // Predicated region
      $region57: #{discriminator_forward.7} parent=47 // pred_check
        %p986 = pneg %p161
      $region58: #{discriminator_forward.7} parent=47 // pred_check_branch
        %988 = sbr.rel (%p986) target = $region60
      $region59: #{discriminator_forward.7} parent=47 // pred_region
        %p989 = scmp.lt.s32.totalorder %s18, 1
        %s990 = scalar_select %p989, %s18, 1
        %s991 = scalar_lea.vmem %s5, %s990
      $region60: #{discriminator_forward.7} parent=47 // pred_fallthru
        _
    $region48: #{discriminator_forward.7} parent=5 // pred_fallthru
      _
  $region6: #{discriminator_forward.7} parent=0 // loop_footer
    %s16 = sadd.s32 1, %s12
  $region7: #{discriminator_forward.7} parent=0 // loop_footer_branch
    %11 = sbr.rel target = $region3
  $region8: #{discriminator_forward.7} parent=0 // loop_exit
    _

// kernel: discriminator_forward.8
$region0: #{discriminator_forward.8}
  #allocation0 [shape = 'u32[]', space=smem, size = 0x4, offset = 0x4, fixed_abs, tag = 'smem constant byte address 0x4 - core index']
  #allocation1 [shape = 'u32[72,128]{1,0:T(1,128)}', space=vmem, size = 0x9000, scoped, tag = 'internal scratch']
  %s0 = inlined_call_operand.vmem [shape: bf16[32,128], index: 0, kind: input, shape index: {}]
  %s1 = inlined_call_operand.vmem [shape: f32[1,128], index: 1, kind: input, shape index: {}]
  %s2 = inlined_call_operand.vmem [shape: f32[1,128], index: 2, kind: input, shape index: {}]
  %s3 = inlined_call_operand.vmem [shape: bf16[32,128], index: 3, kind: output, shape index: {}]
  %s4 = sld [smem:[#allocation0]]
  $region45: #{discriminator_forward.8} parent=0
    _
  %s6 = ssub.s32 1, %s4
  %s7 = scalar_select 0, %s6, %s4
  loop: start=0, step=1, limit=4
  $region2: #{discriminator_forward.8} parent=0 // loop_pre_header
    _
  $region3: #{discriminator_forward.8} parent=0 // loop_header
    %s9 = sphi 0, %s13
    %p10 = scmp.ge.s32.totalorder %s9, 4
    %s19 = sphi 0, %s21
    %s22 = sphi 0, %s19
    %s23 = sphi 0, %s22
    %s39 = sphi 0, %s23
    %s43 = sphi 0, %s43
    %s45 = sphi 0, %s43
    %s46 = sphi 0, %s45
    %s60 = sphi 0, %s46
    %s64 = sphi 0, %s64
    %s66 = sphi 0, %s64
    %s67 = sphi 0, %s66
    %s81 = sphi 0, %s67
    %s87 = sphi 0, %s89
    %s90 = sphi 0, %s87
    %s91 = sphi 0, %s90
    %s107 = sphi 0, %s91
  $region4: #{discriminator_forward.8} parent=0 // loop_header_branch
    %12 = sbr.rel (%p10) target = $region8
  $region5: #{discriminator_forward.8} parent=0 // loop_body
    %s14 = ssub.s32 %s9, 1
    %s15 = ssub.s32 %s9, 2
    %s16 = sadd.s32 %s9, 1
    %s17 = ssub.s32 %s9, %s16
    %p18 = scmp.eq.s32.totalorder %s17, 0
    %s20 = sadd.s32 %s19, 1
    %s21 = scalar_select %p18, %s19, %s20
    %p24 = pneg %p18
    %p25 = scmp.eq.s32.totalorder %s9, 1
    %p26 = por %p24, %p25
    %p27 = scmp.ne.s32.totalorder %s19, %s22
    %p28 = scmp.eq.s32.totalorder %s9, 0
    %p29 = por %p27, %p28
    %p30 = scmp.ne.s32.totalorder %s19, %s22
    %p31 = scmp.eq.s32.totalorder %s14, 1
    %p32 = por %p30, %p31
    %p33 = scmp.ne.s32.totalorder %s22, %s23
    %p34 = scmp.eq.s32.totalorder %s14, 0
    %p35 = por %p33, %p34
    %p36 = scmp.ne.s32.totalorder %s22, %s23
    %p37 = scmp.eq.s32.totalorder %s15, 1
    %p38 = por %p36, %p37
    %p40 = scmp.ne.s32.totalorder %s23, %s39
    %p41 = scmp.eq.s32.totalorder %s15, 0
    %p42 = por %p40, %p41
    %s44 = sadd.s32 %s43, 1
    %p47 = scmp.eq.s32.totalorder %s9, 1
    %p48 = scmp.ne.s32.totalorder %s43, %s45
    %p49 = scmp.eq.s32.totalorder %s9, 0
    %p50 = por %p48, %p49
    %p51 = scmp.ne.s32.totalorder %s43, %s45
    %p52 = scmp.eq.s32.totalorder %s14, 1
    %p53 = por %p51, %p52
    %p54 = scmp.ne.s32.totalorder %s45, %s46
    %p55 = scmp.eq.s32.totalorder %s14, 0
    %p56 = por %p54, %p55
    %p57 = scmp.ne.s32.totalorder %s45, %s46
    %p58 = scmp.eq.s32.totalorder %s15, 1
    %p59 = por %p57, %p58
    %p61 = scmp.ne.s32.totalorder %s46, %s60
    %p62 = scmp.eq.s32.totalorder %s15, 0
    %p63 = por %p61, %p62
    %s65 = sadd.s32 %s64, 1
    %p68 = scmp.eq.s32.totalorder %s9, 1
    %p69 = scmp.ne.s32.totalorder %s64, %s66
    %p70 = scmp.eq.s32.totalorder %s9, 0
    %p71 = por %p69, %p70
    %p72 = scmp.ne.s32.totalorder %s64, %s66
    %p73 = scmp.eq.s32.totalorder %s14, 1
    %p74 = por %p72, %p73
    %p75 = scmp.ne.s32.totalorder %s66, %s67
    %p76 = scmp.eq.s32.totalorder %s14, 0
    %p77 = por %p75, %p76
    %p78 = scmp.ne.s32.totalorder %s66, %s67
    %p79 = scmp.eq.s32.totalorder %s15, 1
    %p80 = por %p78, %p79
    %p82 = scmp.ne.s32.totalorder %s67, %s81
    %p83 = scmp.eq.s32.totalorder %s15, 0
    %p84 = por %p82, %p83
    %s85 = ssub.s32 %s9, %s16
    %p86 = scmp.eq.s32.totalorder %s85, 0
    %s88 = sadd.s32 %s87, 1
    %s89 = scalar_select %p86, %s87, %s88
    %p92 = pneg %p86
    %p93 = scmp.eq.s32.totalorder %s9, 1
    %p94 = por %p92, %p93
    %p95 = scmp.ne.s32.totalorder %s87, %s90
    %p96 = scmp.eq.s32.totalorder %s9, 0
    %p97 = por %p95, %p96
    %p98 = scmp.ne.s32.totalorder %s87, %s90
    %p99 = scmp.eq.s32.totalorder %s14, 1
    %p100 = por %p98, %p99
    %p101 = scmp.ne.s32.totalorder %s90, %s91
    %p102 = scmp.eq.s32.totalorder %s14, 0
    %p103 = por %p101, %p102
    %p104 = scmp.ne.s32.totalorder %s90, %s91
    %p105 = scmp.eq.s32.totalorder %s15, 1
    %p106 = por %p104, %p105
    %p108 = scmp.ne.s32.totalorder %s91, %s107
    %p109 = scmp.eq.s32.totalorder %s15, 0
    %p110 = por %p108, %p109
    %p111 = scmp.le.s32.totalorder 1, %s9
    %p112 = scmp.lt.s32.totalorder %s9, 3
    %p113 = pnand %p111, %p112
    %p114 = pneg %p113
    // Predicated region
    $region9: #{discriminator_forward.8} parent=5 // pred_check
      _
    $region10: #{discriminator_forward.8} parent=5 // pred_check_branch
      %116 = sbr.rel (%p113) target = $region12
    $region11: #{discriminator_forward.8} parent=5 // pred_region
      %s117 = ssub.s32 %s9, 1
      // Predicated region
      $region13: #{discriminator_forward.8} parent=11 // pred_check
        %p118 = pneg %p56
      $region14: #{discriminator_forward.8} parent=11 // pred_check_branch
        %120 = sbr.rel (%p118) target = $region16
      $region15: #{discriminator_forward.8} parent=11 // pred_region
        _
      $region16: #{discriminator_forward.8} parent=11 // pred_fallthru
        _
      // Predicated region
      $region17: #{discriminator_forward.8} parent=11 // pred_check
        %p121 = pneg %p77
      $region18: #{discriminator_forward.8} parent=11 // pred_check_branch
        %123 = sbr.rel (%p121) target = $region20
      $region19: #{discriminator_forward.8} parent=11 // pred_region
        _
      $region20: #{discriminator_forward.8} parent=11 // pred_fallthru
        _
    $region12: #{discriminator_forward.8} parent=5 // pred_fallthru
      _
    %p124 = scmp.lt.s32.totalorder %s9, 2
    // Predicated region
    $region21: #{discriminator_forward.8} parent=5 // pred_check
      %p125 = pneg %p124
    $region22: #{discriminator_forward.8} parent=5 // pred_check_branch
      %127 = sbr.rel (%p125) target = $region24
    $region23: #{discriminator_forward.8} parent=5 // pred_region
      // Predicated region
      $region25: #{discriminator_forward.8} parent=23 // pred_check
        %p128 = pneg %p29
      $region26: #{discriminator_forward.8} parent=23 // pred_check_branch
        %130 = sbr.rel (%p128) target = $region28
      $region27: #{discriminator_forward.8} parent=23 // pred_region
        %s131 = smul.u32 2, %s9
        %p132 = scmp.lt.s32.totalorder %s131, 3
        %s133 = scalar_select %p132, %s131, 3
        %s134 = smul.addr %s133, 4
        %s135 = scalar_lea.vmem %s0, %s134
        %s136 = smul.u32 2, %s9
      $region28: #{discriminator_forward.8} parent=23 // pred_fallthru
        _
    $region24: #{discriminator_forward.8} parent=5 // pred_fallthru
      _
    %p137 = scmp.le.s32.totalorder 1, %s9
    %p138 = scmp.lt.s32.totalorder %s9, 3
    %p139 = pnand %p137, %p138
    %p140 = pneg %p139
    // Predicated region
    $region29: #{discriminator_forward.8} parent=5 // pred_check
      _
    $region30: #{discriminator_forward.8} parent=5 // pred_check_branch
      %142 = sbr.rel (%p139) target = $region32
    $region31: #{discriminator_forward.8} parent=5 // pred_region
      %s143 = ssub.s32 %s9, 1
      %s144 = smul.u32 2, %s14
      %p145 = scmp.lt.s32.totalorder %s144, 3
      %s146 = scalar_select %p145, %s144, 3
      %s147 = smul.addr %s146, 4
      %s148 = scalar_lea.vmem %s0, %s147
      %p149 = pneg %p35
      %p150 = pneg %p32
      %p151 = pneg %p56
      %p152 = pneg %p53
      %p153 = pneg %p77
      %p154 = pneg %p74
      %p155 = pneg %p103
      %p156 = pneg %p100
      %s157 = smul.u32 2, %s14
      %p158 = scmp.lt.s32.totalorder %s157, 3
      %s159 = scalar_select %p158, %s157, 3
      %s160 = smul.addr %s159, 4
      %s161 = scalar_lea.vmem %s3, %s160
      %s162 = smul.u32 2, %s14
      %p163 = scmp.lt.s32.totalorder %s162, 3
      %s164 = scalar_select %p163, %s162, 3
      %s165 = smul.addr %s164, 4
      %s166 = scalar_lea.vmem %s0, %s165
      %s167 = smul.u32 2, %s14
      %s168 = smul.u32 2, %s14
      %p169 = scmp.lt.s32.totalorder %s168, 3
      %s170 = scalar_select %p169, %s168, 3
      %s171 = smul.addr %s170, 4
      %s172 = scalar_lea.vmem %s3, %s171
      %s173 = smul.u32 2, %s14
      %v174 = vld [vmem:[%s166] sm:$0xf]
      %v175 = vld [vmem:[%s166 + $0x4] sm:$0xf]
      %v176 = vunpack.c.l.bf16 %v174
      %v177 = vunpack.c.l.bf16 %v175
      %v178 = vld [vmem:[%s1] sm:$0x1]
      %v180 = vperm.slane %v178, 0
      %v182 = vmul.f32 %v176, %v180
      %v183 = vmul.f32 %v177, %v180
      %v184 = vld [vmem:[%s2] sm:$0x1]
      %v186 = vperm.slane %v184, 0
      %v188 = vadd.f32 %v182, %v186
      %v189 = vadd.f32 %v183, %v186
      %v190 = vmul.f32 %v188, 0.2
      %v191 = vmul.f32 %v189, 0.2
      %v192 = vmax.f32 %v188, %v190
      %v193 = vmax.f32 %v189, %v191
      %v194 = vpack.c.bf16 %v192, %v192
      %v195 = vpack.c.bf16 %v193, %v193
      %196 = vst [vmem:[%s172] sm:$0xf] %v194
      %197 = vst [vmem:[%s172 + $0x4] sm:$0xf] %v195
      %s198 = smul.u32 2, %s14
      %p199 = scmp.lt.s32.totalorder %s198, 3
      %s200 = scalar_select %p199, %s198, 3
      %s201 = smul.addr %s200, 4
      %s202 = scalar_lea.vmem %s3, %s201
      // Predicated region
      $region33: #{discriminator_forward.8} parent=31 // pred_check
        %p203 = pneg %p100
      $region34: #{discriminator_forward.8} parent=31 // pred_check_branch
        %205 = sbr.rel (%p203) target = $region36
      $region35: #{discriminator_forward.8} parent=31 // pred_region
        %s206 = smul.u32 2, %s14
      $region36: #{discriminator_forward.8} parent=31 // pred_fallthru
        _
    $region32: #{discriminator_forward.8} parent=5 // pred_fallthru
      _
    %p207 = scmp.le.s32.totalorder 2, %s9
    // Predicated region
    $region37: #{discriminator_forward.8} parent=5 // pred_check
      %p208 = pneg %p207
    $region38: #{discriminator_forward.8} parent=5 // pred_check_branch
      %210 = sbr.rel (%p208) target = $region40
    $region39: #{discriminator_forward.8} parent=5 // pred_region
      %s211 = ssub.s32 %s9, 2
      // Predicated region
      $region41: #{discriminator_forward.8} parent=39 // pred_check
        %p212 = pneg %p106
      $region42: #{discriminator_forward.8} parent=39 // pred_check_branch
        %214 = sbr.rel (%p212) target = $region44
      $region43: #{discriminator_forward.8} parent=39 // pred_region
        %s215 = smul.u32 2, %s15
        %p216 = scmp.lt.s32.totalorder %s215, 3
        %s217 = scalar_select %p216, %s215, 3
        %s218 = smul.addr %s217, 4
        %s219 = scalar_lea.vmem %s3, %s218
      $region44: #{discriminator_forward.8} parent=39 // pred_fallthru
        _
    $region40: #{discriminator_forward.8} parent=5 // pred_fallthru
      _
  $region6: #{discriminator_forward.8} parent=0 // loop_footer
    %s13 = sadd.s32 1, %s9
  $region7: #{discriminator_forward.8} parent=0 // loop_footer_branch
    %8 = sbr.rel target = $region3
  $region8: #{discriminator_forward.8} parent=0 // loop_exit
    _

// kernel: discriminator_forward.10
$region0: #{discriminator_forward.10}
  #allocation0 [shape = 'u32[]', space=smem, size = 0x4, offset = 0x4, fixed_abs, tag = 'smem constant byte address 0x4 - core index']
  #allocation1 [shape = 'u32[72,128]{1,0:T(1,128)}', space=vmem, size = 0x9000, scoped, tag = 'internal scratch']
  %s0 = inlined_call_operand.vmem [shape: bf16[8,256], index: 0, kind: input, shape index: {}]
  %s1 = inlined_call_operand.vmem [shape: f32[1,256], index: 1, kind: input, shape index: {}]
  %s2 = inlined_call_operand.vmem [shape: f32[1,256], index: 2, kind: input, shape index: {}]
  %s3 = inlined_call_operand.vmem [shape: bf16[8,256], index: 3, kind: output, shape index: {}]
  %s4 = sld [smem:[#allocation0]]
  $region22: #{discriminator_forward.10} parent=0
    _
  %s6 = ssub.s32 1, %s4
  %s7 = scalar_select 0, %s6, %s4
  // Predicated region
  $region2: #{discriminator_forward.10} parent=0 // pred_check
    _
  $region3: #{discriminator_forward.10} parent=0 // pred_check_branch
    %9 = sbr.rel (0) target = $region5
  $region4: #{discriminator_forward.10} parent=0 // pred_region
    _
  $region5: #{discriminator_forward.10} parent=0 // pred_fallthru
    _
  // Predicated region
  $region6: #{discriminator_forward.10} parent=0 // pred_check
    _
  $region7: #{discriminator_forward.10} parent=0 // pred_check_branch
    %11 = sbr.rel (0) target = $region9
  $region8: #{discriminator_forward.10} parent=0 // pred_region
    _
  $region9: #{discriminator_forward.10} parent=0 // pred_fallthru
    _
  // Predicated region
  $region10: #{discriminator_forward.10} parent=0 // pred_check
    _
  $region11: #{discriminator_forward.10} parent=0 // pred_check_branch
    %13 = sbr.rel (0) target = $region13
  $region12: #{discriminator_forward.10} parent=0 // pred_region
    _
  $region13: #{discriminator_forward.10} parent=0 // pred_fallthru
    _
  %v14 = vld [vmem:[%s0] sm:$0xff]
  %v15 = vunpack.c.l.bf16 %v14
  %v16 = vunpack.c.h.bf16 %v14
  %v17 = vld [vmem:[%s1] sm:$0x3]
  %v19 = vperm.slane %v17, 0
  %v20 = vperm.slane %v17, 1
  %v23 = vmul.f32 %v15, %v19
  %v24 = vmul.f32 %v16, %v20
  %v25 = vld [vmem:[%s2] sm:$0x3]
  %v27 = vperm.slane %v25, 0
  %v28 = vperm.slane %v25, 1
  %v31 = vadd.f32 %v23, %v27
  %v32 = vadd.f32 %v24, %v28
  %v33 = vmul.f32 %v31, 0.2
  %v34 = vmul.f32 %v32, 0.2
  %v35 = vmax.f32 %v31, %v33
  %v36 = vmax.f32 %v32, %v34
  %v37 = vpack.c.bf16 %v36, %v35
  %38 = vst [vmem:[%s3] sm:$0xff] %v37
  // Predicated region
  $region14: #{discriminator_forward.10} parent=0 // pred_check
    _
  $region15: #{discriminator_forward.10} parent=0 // pred_check_branch
    %40 = sbr.rel (0) target = $region17
  $region16: #{discriminator_forward.10} parent=0 // pred_region
    _
  $region17: #{discriminator_forward.10} parent=0 // pred_fallthru
    _
  // Predicated region
  $region18: #{discriminator_forward.10} parent=0 // pred_check
    _
  $region19: #{discriminator_forward.10} parent=0 // pred_check_branch
    %42 = sbr.rel (0) target = $region21
  $region20: #{discriminator_forward.10} parent=0 // pred_region
    _
  $region21: #{discriminator_forward.10} parent=0 // pred_fallthru
    _

// kernel: discriminator_forward.9
$region0: #{discriminator_forward.9}
  #allocation0 [shape = 'u32[]', space=smem, size = 0x4, offset = 0x4, fixed_abs, tag = 'smem constant byte address 0x4 - core index']
  #allocation1 [shape = 'u32[72,128]{1,0:T(1,128)}', space=vmem, size = 0x9000, scoped, tag = 'internal scratch']
  %s0 = inlined_call_operand.vmem [shape: bf16[8,2048], index: 0, kind: input, shape index: {}]
  %s1 = inlined_call_operand.vmem [shape: bf16[2048,256], index: 1, kind: input, shape index: {}]
  %s2 = inlined_call_operand.vmem [shape: f32[1,256], index: 2, kind: input, shape index: {}]
  %s3 = inlined_call_operand.vmem [shape: bf16[8,256], index: 3, kind: output, shape index: {0}]
  %s4 = inlined_call_operand.vmem [shape: f32[1,1,256], index: 4, kind: output, shape index: {1}]
  %s5 = inlined_call_operand.vmem [shape: f32[1,1,256], index: 5, kind: output, shape index: {2}]
  %6 = xla_tuple %s3, %s4, %s5
  %s7 = sld [smem:[#allocation0]]
  $region38: #{discriminator_forward.9} parent=0
    _
  %s9 = ssub.s32 1, %s7
  %s10 = scalar_select 0, %s9, %s7
  // Predicated region
  $region2: #{discriminator_forward.9} parent=0 // pred_check
    _
  $region3: #{discriminator_forward.9} parent=0 // pred_check_branch
    %12 = sbr.rel (0) target = $region5
  $region4: #{discriminator_forward.9} parent=0 // pred_region
    _
  $region5: #{discriminator_forward.9} parent=0 // pred_fallthru
    _
  // Predicated region
  $region6: #{discriminator_forward.9} parent=0 // pred_check
    _
  $region7: #{discriminator_forward.9} parent=0 // pred_check_branch
    %14 = sbr.rel (0) target = $region9
  $region8: #{discriminator_forward.9} parent=0 // pred_region
    _
  $region9: #{discriminator_forward.9} parent=0 // pred_fallthru
    _
  // Predicated region
  $region10: #{discriminator_forward.9} parent=0 // pred_check
    _
  $region11: #{discriminator_forward.9} parent=0 // pred_check_branch
    %16 = sbr.rel (0) target = $region13
  $region12: #{discriminator_forward.9} parent=0 // pred_region
    _
  $region13: #{discriminator_forward.9} parent=0 // pred_fallthru
    _
  %v17 = vld [vmem:[%s0] sm:$0xff]
  %v18 = vld [vmem:[%s0 + $0x8] sm:$0xff]
  %v19 = vld [vmem:[%s0 + $0x10] sm:$0xff]
  %v20 = vld [vmem:[%s0 + $0x18] sm:$0xff]
  %v21 = vld [vmem:[%s0 + $0x20] sm:$0xff]
  %v22 = vld [vmem:[%s0 + $0x28] sm:$0xff]
  %v23 = vld [vmem:[%s0 + $0x30] sm:$0xff]
  %v24 = vld [vmem:[%s0 + $0x38] sm:$0xff]
  %v25 = vld [vmem:[%s1] sm:$0xff]
  %v26 = vld [vmem:[%s1 + $0x8] sm:$0xff]
  %v27 = vld [vmem:[%s1 + $0x10] sm:$0xff]
  %v28 = vld [vmem:[%s1 + $0x18] sm:$0xff]
  %v29 = vld [vmem:[%s1 + $0x20] sm:$0xff]
  %v30 = vld [vmem:[%s1 + $0x28] sm:$0xff]
  %v31 = vld [vmem:[%s1 + $0x30] sm:$0xff]
  %v32 = vld [vmem:[%s1 + $0x38] sm:$0xff]
  %v33 = vld [vmem:[%s1 + $0x40] sm:$0xff]
  %v34 = vld [vmem:[%s1 + $0x48] sm:$0xff]
  %v35 = vld [vmem:[%s1 + $0x50] sm:$0xff]
  %v36 = vld [vmem:[%s1 + $0x58] sm:$0xff]
  %v37 = vld [vmem:[%s1 + $0x60] sm:$0xff]
  %v38 = vld [vmem:[%s1 + $0x68] sm:$0xff]
  %v39 = vld [vmem:[%s1 + $0x70] sm:$0xff]
  %v40 = vld [vmem:[%s1 + $0x78] sm:$0xff]
  %v41 = vld [vmem:[%s1 + $0x80] sm:$0xff]
  %v42 = vld [vmem:[%s1 + $0x88] sm:$0xff]
  %v43 = vld [vmem:[%s1 + $0x90] sm:$0xff]
  %v44 = vld [vmem:[%s1 + $0x98] sm:$0xff]
  %v45 = vld [vmem:[%s1 + $0xa0] sm:$0xff]
  %v46 = vld [vmem:[%s1 + $0xa8] sm:$0xff]
  %v47 = vld [vmem:[%s1 + $0xb0] sm:$0xff]
  %v48 = vld [vmem:[%s1 + $0xb8] sm:$0xff]
  %v49 = vld [vmem:[%s1 + $0xc0] sm:$0xff]
  %v50 = vld [vmem:[%s1 + $0xc8] sm:$0xff]
  %v51 = vld [vmem:[%s1 + $0xd0] sm:$0xff]
  %v52 = vld [vmem:[%s1 + $0xd8] sm:$0xff]
  %v53 = vld [vmem:[%s1 + $0xe0] sm:$0xff]
  %v54 = vld [vmem:[%s1 + $0xe8] sm:$0xff]
  %v55 = vld [vmem:[%s1 + $0xf0] sm:$0xff]
  %v56 = vld [vmem:[%s1 + $0xf8] sm:$0xff]
  %v57 = vld [vmem:[%s1 + $0x100] sm:$0xff]
  %v58 = vld [vmem:[%s1 + $0x108] sm:$0xff]
  %v59 = vld [vmem:[%s1 + $0x110] sm:$0xff]
  %v60 = vld [vmem:[%s1 + $0x118] sm:$0xff]
  %v61 = vld [vmem:[%s1 + $0x120] sm:$0xff]
  %v62 = vld [vmem:[%s1 + $0x128] sm:$0xff]
  %v63 = vld [vmem:[%s1 + $0x130] sm:$0xff]
  %v64 = vld [vmem:[%s1 + $0x138] sm:$0xff]
  %v65 = vld [vmem:[%s1 + $0x140] sm:$0xff]
  %v66 = vld [vmem:[%s1 + $0x148] sm:$0xff]
  %v67 = vld [vmem:[%s1 + $0x150] sm:$0xff]
  %v68 = vld [vmem:[%s1 + $0x158] sm:$0xff]
  %v69 = vld [vmem:[%s1 + $0x160] sm:$0xff]
  %v70 = vld [vmem:[%s1 + $0x168] sm:$0xff]
  %v71 = vld [vmem:[%s1 + $0x170] sm:$0xff]
  %v72 = vld [vmem:[%s1 + $0x178] sm:$0xff]
  %v73 = vld [vmem:[%s1 + $0x180] sm:$0xff]
  %v74 = vld [vmem:[%s1 + $0x188] sm:$0xff]
  %v75 = vld [vmem:[%s1 + $0x190] sm:$0xff]
  %v76 = vld [vmem:[%s1 + $0x198] sm:$0xff]
  %v77 = vld [vmem:[%s1 + $0x1a0] sm:$0xff]
  %v78 = vld [vmem:[%s1 + $0x1a8] sm:$0xff]
  %v79 = vld [vmem:[%s1 + $0x1b0] sm:$0xff]
  %v80 = vld [vmem:[%s1 + $0x1b8] sm:$0xff]
  %v81 = vld [vmem:[%s1 + $0x1c0] sm:$0xff]
  %v82 = vld [vmem:[%s1 + $0x1c8] sm:$0xff]
  %v83 = vld [vmem:[%s1 + $0x1d0] sm:$0xff]
  %v84 = vld [vmem:[%s1 + $0x1d8] sm:$0xff]
  %v85 = vld [vmem:[%s1 + $0x1e0] sm:$0xff]
  %v86 = vld [vmem:[%s1 + $0x1e8] sm:$0xff]
  %v87 = vld [vmem:[%s1 + $0x1f0] sm:$0xff]
  %v88 = vld [vmem:[%s1 + $0x1f8] sm:$0xff]
  %v89 = vld [vmem:[%s1 + $0x200] sm:$0xff]
  %v90 = vld [vmem:[%s1 + $0x208] sm:$0xff]
  %v91 = vld [vmem:[%s1 + $0x210] sm:$0xff]
  %v92 = vld [vmem:[%s1 + $0x218] sm:$0xff]
  %v93 = vld [vmem:[%s1 + $0x220] sm:$0xff]
  %v94 = vld [vmem:[%s1 + $0x228] sm:$0xff]
  %v95 = vld [vmem:[%s1 + $0x230] sm:$0xff]
  %v96 = vld [vmem:[%s1 + $0x238] sm:$0xff]
  %v97 = vld [vmem:[%s1 + $0x240] sm:$0xff]
  %v98 = vld [vmem:[%s1 + $0x248] sm:$0xff]
  %v99 = vld [vmem:[%s1 + $0x250] sm:$0xff]
  %v100 = vld [vmem:[%s1 + $0x258] sm:$0xff]
  %v101 = vld [vmem:[%s1 + $0x260] sm:$0xff]
  %v102 = vld [vmem:[%s1 + $0x268] sm:$0xff]
  %v103 = vld [vmem:[%s1 + $0x270] sm:$0xff]
  %v104 = vld [vmem:[%s1 + $0x278] sm:$0xff]
  %v105 = vld [vmem:[%s1 + $0x280] sm:$0xff]
  %v106 = vld [vmem:[%s1 + $0x288] sm:$0xff]
  %v107 = vld [vmem:[%s1 + $0x290] sm:$0xff]
  %v108 = vld [vmem:[%s1 + $0x298] sm:$0xff]
  %v109 = vld [vmem:[%s1 + $0x2a0] sm:$0xff]
  %v110 = vld [vmem:[%s1 + $0x2a8] sm:$0xff]
  %v111 = vld [vmem:[%s1 + $0x2b0] sm:$0xff]
  %v112 = vld [vmem:[%s1 + $0x2b8] sm:$0xff]
  %v113 = vld [vmem:[%s1 + $0x2c0] sm:$0xff]
  %v114 = vld [vmem:[%s1 + $0x2c8] sm:$0xff]
  %v115 = vld [vmem:[%s1 + $0x2d0] sm:$0xff]
  %v116 = vld [vmem:[%s1 + $0x2d8] sm:$0xff]
  %v117 = vld [vmem:[%s1 + $0x2e0] sm:$0xff]
  %v118 = vld [vmem:[%s1 + $0x2e8] sm:$0xff]
  %v119 = vld [vmem:[%s1 + $0x2f0] sm:$0xff]
  %v120 = vld [vmem:[%s1 + $0x2f8] sm:$0xff]
  %v121 = vld [vmem:[%s1 + $0x300] sm:$0xff]
  %v122 = vld [vmem:[%s1 + $0x308] sm:$0xff]
  %v123 = vld [vmem:[%s1 + $0x310] sm:$0xff]
  %v124 = vld [vmem:[%s1 + $0x318] sm:$0xff]
  %v125 = vld [vmem:[%s1 + $0x320] sm:$0xff]
  %v126 = vld [vmem:[%s1 + $0x328] sm:$0xff]
  %v127 = vld [vmem:[%s1 + $0x330] sm:$0xff]
  %v128 = vld [vmem:[%s1 + $0x338] sm:$0xff]
  %v129 = vld [vmem:[%s1 + $0x340] sm:$0xff]
  %v130 = vld [vmem:[%s1 + $0x348] sm:$0xff]
  %v131 = vld [vmem:[%s1 + $0x350] sm:$0xff]
  %v132 = vld [vmem:[%s1 + $0x358] sm:$0xff]
  %v133 = vld [vmem:[%s1 + $0x360] sm:$0xff]
  %v134 = vld [vmem:[%s1 + $0x368] sm:$0xff]
  %v135 = vld [vmem:[%s1 + $0x370] sm:$0xff]
  %v136 = vld [vmem:[%s1 + $0x378] sm:$0xff]
  %v137 = vld [vmem:[%s1 + $0x380] sm:$0xff]
  %v138 = vld [vmem:[%s1 + $0x388] sm:$0xff]
  %v139 = vld [vmem:[%s1 + $0x390] sm:$0xff]
  %v140 = vld [vmem:[%s1 + $0x398] sm:$0xff]
  %v141 = vld [vmem:[%s1 + $0x3a0] sm:$0xff]
  %v142 = vld [vmem:[%s1 + $0x3a8] sm:$0xff]
  %v143 = vld [vmem:[%s1 + $0x3b0] sm:$0xff]
  %v144 = vld [vmem:[%s1 + $0x3b8] sm:$0xff]
  %v145 = vld [vmem:[%s1 + $0x3c0] sm:$0xff]
  %v146 = vld [vmem:[%s1 + $0x3c8] sm:$0xff]
  %v147 = vld [vmem:[%s1 + $0x3d0] sm:$0xff]
  %v148 = vld [vmem:[%s1 + $0x3d8] sm:$0xff]
  %v149 = vld [vmem:[%s1 + $0x3e0] sm:$0xff]
  %v150 = vld [vmem:[%s1 + $0x3e8] sm:$0xff]
  %v151 = vld [vmem:[%s1 + $0x3f0] sm:$0xff]
  %v152 = vld [vmem:[%s1 + $0x3f8] sm:$0xff]
  %v153 = vld [vmem:[%s1 + $0x400] sm:$0xff]
  %v154 = vld [vmem:[%s1 + $0x408] sm:$0xff]
  %v155 = vld [vmem:[%s1 + $0x410] sm:$0xff]
  %v156 = vld [vmem:[%s1 + $0x418] sm:$0xff]
  %v157 = vld [vmem:[%s1 + $0x420] sm:$0xff]
  %v158 = vld [vmem:[%s1 + $0x428] sm:$0xff]
  %v159 = vld [vmem:[%s1 + $0x430] sm:$0xff]
  %v160 = vld [vmem:[%s1 + $0x438] sm:$0xff]
  %v161 = vld [vmem:[%s1 + $0x440] sm:$0xff]
  %v162 = vld [vmem:[%s1 + $0x448] sm:$0xff]
  %v163 = vld [vmem:[%s1 + $0x450] sm:$0xff]
  %v164 = vld [vmem:[%s1 + $0x458] sm:$0xff]
  %v165 = vld [vmem:[%s1 + $0x460] sm:$0xff]
  %v166 = vld [vmem:[%s1 + $0x468] sm:$0xff]
  %v167 = vld [vmem:[%s1 + $0x470] sm:$0xff]
  %v168 = vld [vmem:[%s1 + $0x478] sm:$0xff]
  %v169 = vld [vmem:[%s1 + $0x480] sm:$0xff]
  %v170 = vld [vmem:[%s1 + $0x488] sm:$0xff]
  %v171 = vld [vmem:[%s1 + $0x490] sm:$0xff]
  %v172 = vld [vmem:[%s1 + $0x498] sm:$0xff]
  %v173 = vld [vmem:[%s1 + $0x4a0] sm:$0xff]
  %v174 = vld [vmem:[%s1 + $0x4a8] sm:$0xff]
  %v175 = vld [vmem:[%s1 + $0x4b0] sm:$0xff]
  %v176 = vld [vmem:[%s1 + $0x4b8] sm:$0xff]
  %v177 = vld [vmem:[%s1 + $0x4c0] sm:$0xff]
  %v178 = vld [vmem:[%s1 + $0x4c8] sm:$0xff]
  %v179 = vld [vmem:[%s1 + $0x4d0] sm:$0xff]
  %v180 = vld [vmem:[%s1 + $0x4d8] sm:$0xff]
  %v181 = vld [vmem:[%s1 + $0x4e0] sm:$0xff]
  %v182 = vld [vmem:[%s1 + $0x4e8] sm:$0xff]
  %v183 = vld [vmem:[%s1 + $0x4f0] sm:$0xff]
  %v184 = vld [vmem:[%s1 + $0x4f8] sm:$0xff]
  %v185 = vld [vmem:[%s1 + $0x500] sm:$0xff]
  %v186 = vld [vmem:[%s1 + $0x508] sm:$0xff]
  %v187 = vld [vmem:[%s1 + $0x510] sm:$0xff]
  %v188 = vld [vmem:[%s1 + $0x518] sm:$0xff]
  %v189 = vld [vmem:[%s1 + $0x520] sm:$0xff]
  %v190 = vld [vmem:[%s1 + $0x528] sm:$0xff]
  %v191 = vld [vmem:[%s1 + $0x530] sm:$0xff]
  %v192 = vld [vmem:[%s1 + $0x538] sm:$0xff]
  %v193 = vld [vmem:[%s1 + $0x540] sm:$0xff]
  %v194 = vld [vmem:[%s1 + $0x548] sm:$0xff]
  %v195 = vld [vmem:[%s1 + $0x550] sm:$0xff]
  %v196 = vld [vmem:[%s1 + $0x558] sm:$0xff]
  %v197 = vld [vmem:[%s1 + $0x560] sm:$0xff]
  %v198 = vld [vmem:[%s1 + $0x568] sm:$0xff]
  %v199 = vld [vmem:[%s1 + $0x570] sm:$0xff]
  %v200 = vld [vmem:[%s1 + $0x578] sm:$0xff]
  %v201 = vld [vmem:[%s1 + $0x580] sm:$0xff]
  %v202 = vld [vmem:[%s1 + $0x588] sm:$0xff]
  %v203 = vld [vmem:[%s1 + $0x590] sm:$0xff]
  %v204 = vld [vmem:[%s1 + $0x598] sm:$0xff]
  %v205 = vld [vmem:[%s1 + $0x5a0] sm:$0xff]
  %v206 = vld [vmem:[%s1 + $0x5a8] sm:$0xff]
  %v207 = vld [vmem:[%s1 + $0x5b0] sm:$0xff]
  %v208 = vld [vmem:[%s1 + $0x5b8] sm:$0xff]
  %v209 = vld [vmem:[%s1 + $0x5c0] sm:$0xff]
  %v210 = vld [vmem:[%s1 + $0x5c8] sm:$0xff]
  %v211 = vld [vmem:[%s1 + $0x5d0] sm:$0xff]
  %v212 = vld [vmem:[%s1 + $0x5d8] sm:$0xff]
  %v213 = vld [vmem:[%s1 + $0x5e0] sm:$0xff]
  %v214 = vld [vmem:[%s1 + $0x5e8] sm:$0xff]
  %v215 = vld [vmem:[%s1 + $0x5f0] sm:$0xff]
  %v216 = vld [vmem:[%s1 + $0x5f8] sm:$0xff]
  %v217 = vld [vmem:[%s1 + $0x600] sm:$0xff]
  %v218 = vld [vmem:[%s1 + $0x608] sm:$0xff]
  %v219 = vld [vmem:[%s1 + $0x610] sm:$0xff]
  %v220 = vld [vmem:[%s1 + $0x618] sm:$0xff]
  %v221 = vld [vmem:[%s1 + $0x620] sm:$0xff]
  %v222 = vld [vmem:[%s1 + $0x628] sm:$0xff]
  %v223 = vld [vmem:[%s1 + $0x630] sm:$0xff]
  %v224 = vld [vmem:[%s1 + $0x638] sm:$0xff]
  %v225 = vld [vmem:[%s1 + $0x640] sm:$0xff]
  %v226 = vld [vmem:[%s1 + $0x648] sm:$0xff]
  %v227 = vld [vmem:[%s1 + $0x650] sm:$0xff]
  %v228 = vld [vmem:[%s1 + $0x658] sm:$0xff]
  %v229 = vld [vmem:[%s1 + $0x660] sm:$0xff]
  %v230 = vld [vmem:[%s1 + $0x668] sm:$0xff]
  %v231 = vld [vmem:[%s1 + $0x670] sm:$0xff]
  %v232 = vld [vmem:[%s1 + $0x678] sm:$0xff]
  %v233 = vld [vmem:[%s1 + $0x680] sm:$0xff]
  %v234 = vld [vmem:[%s1 + $0x688] sm:$0xff]
  %v235 = vld [vmem:[%s1 + $0x690] sm:$0xff]
  %v236 = vld [vmem:[%s1 + $0x698] sm:$0xff]
  %v237 = vld [vmem:[%s1 + $0x6a0] sm:$0xff]
  %v238 = vld [vmem:[%s1 + $0x6a8] sm:$0xff]
  %v239 = vld [vmem:[%s1 + $0x6b0] sm:$0xff]
  %v240 = vld [vmem:[%s1 + $0x6b8] sm:$0xff]
  %v241 = vld [vmem:[%s1 + $0x6c0] sm:$0xff]
  %v242 = vld [vmem:[%s1 + $0x6c8] sm:$0xff]
  %v243 = vld [vmem:[%s1 + $0x6d0] sm:$0xff]
  %v244 = vld [vmem:[%s1 + $0x6d8] sm:$0xff]
  %v245 = vld [vmem:[%s1 + $0x6e0] sm:$0xff]
  %v246 = vld [vmem:[%s1 + $0x6e8] sm:$0xff]
  %v247 = vld [vmem:[%s1 + $0x6f0] sm:$0xff]
  %v248 = vld [vmem:[%s1 + $0x6f8] sm:$0xff]
  %v249 = vld [vmem:[%s1 + $0x700] sm:$0xff]
  %v250 = vld [vmem:[%s1 + $0x708] sm:$0xff]
  %v251 = vld [vmem:[%s1 + $0x710] sm:$0xff]
  %v252 = vld [vmem:[%s1 + $0x718] sm:$0xff]
  %v253 = vld [vmem:[%s1 + $0x720] sm:$0xff]
  %v254 = vld [vmem:[%s1 + $0x728] sm:$0xff]
  %v255 = vld [vmem:[%s1 + $0x730] sm:$0xff]
  %v256 = vld [vmem:[%s1 + $0x738] sm:$0xff]
  %v257 = vld [vmem:[%s1 + $0x740] sm:$0xff]
  %v258 = vld [vmem:[%s1 + $0x748] sm:$0xff]
  %v259 = vld [vmem:[%s1 + $0x750] sm:$0xff]
  %v260 = vld [vmem:[%s1 + $0x758] sm:$0xff]
  %v261 = vld [vmem:[%s1 + $0x760] sm:$0xff]
  %v262 = vld [vmem:[%s1 + $0x768] sm:$0xff]
  %v263 = vld [vmem:[%s1 + $0x770] sm:$0xff]
  %v264 = vld [vmem:[%s1 + $0x778] sm:$0xff]
  %v265 = vld [vmem:[%s1 + $0x780] sm:$0xff]
  %v266 = vld [vmem:[%s1 + $0x788] sm:$0xff]
  %v267 = vld [vmem:[%s1 + $0x790] sm:$0xff]
  %v268 = vld [vmem:[%s1 + $0x798] sm:$0xff]
  %v269 = vld [vmem:[%s1 + $0x7a0] sm:$0xff]
  %v270 = vld [vmem:[%s1 + $0x7a8] sm:$0xff]
  %v271 = vld [vmem:[%s1 + $0x7b0] sm:$0xff]
  %v272 = vld [vmem:[%s1 + $0x7b8] sm:$0xff]
  %v273 = vld [vmem:[%s1 + $0x7c0] sm:$0xff]
  %v274 = vld [vmem:[%s1 + $0x7c8] sm:$0xff]
  %v275 = vld [vmem:[%s1 + $0x7d0] sm:$0xff]
  %v276 = vld [vmem:[%s1 + $0x7d8] sm:$0xff]
  %v277 = vld [vmem:[%s1 + $0x7e0] sm:$0xff]
  %v278 = vld [vmem:[%s1 + $0x7e8] sm:$0xff]
  %v279 = vld [vmem:[%s1 + $0x7f0] sm:$0xff]
  %v280 = vld [vmem:[%s1 + $0x7f8] sm:$0xff]
  %v281 = vld [vmem:[%s2] sm:$0x3]
  %v283 = vperm.slane %v281, 0
  %v284 = vperm.slane %v281, 1
  %v295 = vunpack.c.l.b16 %v17
  %v296 = vunpack.c.h.b16 %v17
  %v297 = vunpack.c.l.b16 %v18
  %v298 = vunpack.c.h.b16 %v18
  %v299 = vunpack.c.l.b16 %v19
  %v300 = vunpack.c.h.b16 %v19
  %v301 = vunpack.c.l.b16 %v20
  %v302 = vunpack.c.h.b16 %v20
  %v303 = vunpack.c.l.b16 %v21
  %v304 = vunpack.c.h.b16 %v21
  %v305 = vunpack.c.l.b16 %v22
  %v306 = vunpack.c.h.b16 %v22
  %v307 = vunpack.c.l.b16 %v23
  %v308 = vunpack.c.h.b16 %v23
  %v309 = vunpack.c.l.b16 %v24
  %v310 = vunpack.c.h.b16 %v24
  %v311 = vpack.c.b16 %v295, %v295
  %v312 = vpack.c.b16 %v296, %v296
  %v313 = vpack.c.b16 %v297, %v297
  %v314 = vpack.c.b16 %v298, %v298
  %v315 = vpack.c.b16 %v299, %v299
  %v316 = vpack.c.b16 %v300, %v300
  %v317 = vpack.c.b16 %v301, %v301
  %v318 = vpack.c.b16 %v302, %v302
  %v319 = vpack.c.b16 %v303, %v303
  %v320 = vpack.c.b16 %v304, %v304
  %v321 = vpack.c.b16 %v305, %v305
  %v322 = vpack.c.b16 %v306, %v306
  %v323 = vpack.c.b16 %v307, %v307
  %v324 = vpack.c.b16 %v308, %v308
  %v325 = vpack.c.b16 %v309, %v309
  %v326 = vpack.c.b16 %v310, %v310
  %v599 = vunpack.c.l.b16 %v25
  %v600 = vunpack.c.h.b16 %v25
  %v601 = vunpack.c.l.b16 %v26
  %v602 = vunpack.c.h.b16 %v26
  %v603 = vunpack.c.l.b16 %v27
  %v604 = vunpack.c.h.b16 %v27
  %v605 = vunpack.c.l.b16 %v28
  %v606 = vunpack.c.h.b16 %v28
  %v607 = vunpack.c.l.b16 %v29
  %v608 = vunpack.c.h.b16 %v29
  %v609 = vunpack.c.l.b16 %v30
  %v610 = vunpack.c.h.b16 %v30
  %v611 = vunpack.c.l.b16 %v31
  %v612 = vunpack.c.h.b16 %v31
  %v613 = vunpack.c.l.b16 %v32
  %v614 = vunpack.c.h.b16 %v32
  %v615 = vunpack.c.l.b16 %v33
  %v616 = vunpack.c.h.b16 %v33
  %v617 = vunpack.c.l.b16 %v34
  %v618 = vunpack.c.h.b16 %v34
  %v619 = vunpack.c.l.b16 %v35
  %v620 = vunpack.c.h.b16 %v35
  %v621 = vunpack.c.l.b16 %v36
  %v622 = vunpack.c.h.b16 %v36
  %v623 = vunpack.c.l.b16 %v37
  %v624 = vunpack.c.h.b16 %v37
  %v625 = vunpack.c.l.b16 %v38
  %v626 = vunpack.c.h.b16 %v38
  %v627 = vunpack.c.l.b16 %v39
  %v628 = vunpack.c.h.b16 %v39
  %v629 = vunpack.c.l.b16 %v40
  %v630 = vunpack.c.h.b16 %v40
  %v631 = vunpack.c.l.b16 %v41
  %v632 = vunpack.c.h.b16 %v41
  %v633 = vunpack.c.l.b16 %v42
  %v634 = vunpack.c.h.b16 %v42
  %v635 = vunpack.c.l.b16 %v43
  %v636 = vunpack.c.h.b16 %v43
  %v637 = vunpack.c.l.b16 %v44
  %v638 = vunpack.c.h.b16 %v44
  %v639 = vunpack.c.l.b16 %v45
  %v640 = vunpack.c.h.b16 %v45
  %v641 = vunpack.c.l.b16 %v46
  %v642 = vunpack.c.h.b16 %v46
  %v643 = vunpack.c.l.b16 %v47
  %v644 = vunpack.c.h.b16 %v47
  %v645 = vunpack.c.l.b16 %v48
  %v646 = vunpack.c.h.b16 %v48
  %v647 = vunpack.c.l.b16 %v49
  %v648 = vunpack.c.h.b16 %v49
  %v649 = vunpack.c.l.b16 %v50
  %v650 = vunpack.c.h.b16 %v50
  %v651 = vunpack.c.l.b16 %v51
  %v652 = vunpack.c.h.b16 %v51
  %v653 = vunpack.c.l.b16 %v52
  %v654 = vunpack.c.h.b16 %v52
  %v655 = vunpack.c.l.b16 %v53
  %v656 = vunpack.c.h.b16 %v53
  %v657 = vunpack.c.l.b16 %v54
  %v658 = vunpack.c.h.b16 %v54
  %v659 = vunpack.c.l.b16 %v55
  %v660 = vunpack.c.h.b16 %v55
  %v661 = vunpack.c.l.b16 %v56
  %v662 = vunpack.c.h.b16 %v56
  %v663 = vunpack.c.l.b16 %v57
  %v664 = vunpack.c.h.b16 %v57
  %v665 = vunpack.c.l.b16 %v58
  %v666 = vunpack.c.h.b16 %v58
  %v667 = vunpack.c.l.b16 %v59
  %v668 = vunpack.c.h.b16 %v59
  %v669 = vunpack.c.l.b16 %v60
  %v670 = vunpack.c.h.b16 %v60
  %v671 = vunpack.c.l.b16 %v61
  %v672 = vunpack.c.h.b16 %v61
  %v673 = vunpack.c.l.b16 %v62
  %v674 = vunpack.c.h.b16 %v62
  %v675 = vunpack.c.l.b16 %v63
  %v676 = vunpack.c.h.b16 %v63
  %v677 = vunpack.c.l.b16 %v64
  %v678 = vunpack.c.h.b16 %v64
  %v679 = vunpack.c.l.b16 %v65
  %v680 = vunpack.c.h.b16 %v65
  %v681 = vunpack.c.l.b16 %v66
  %v682 = vunpack.c.h.b16 %v66
  %v683 = vunpack.c.l.b16 %v67
  %v684 = vunpack.c.h.b16 %v67
  %v685 = vunpack.c.l.b16 %v68
  %v686 = vunpack.c.h.b16 %v68
  %v687 = vunpack.c.l.b16 %v69
  %v688 = vunpack.c.h.b16 %v69
  %v689 = vunpack.c.l.b16 %v70
  %v690 = vunpack.c.h.b16 %v70
  %v691 = vunpack.c.l.b16 %v71
  %v692 = vunpack.c.h.b16 %v71
  %v693 = vunpack.c.l.b16 %v72
  %v694 = vunpack.c.h.b16 %v72
  %v695 = vunpack.c.l.b16 %v73
  %v696 = vunpack.c.h.b16 %v73
  %v697 = vunpack.c.l.b16 %v74
  %v698 = vunpack.c.h.b16 %v74
  %v699 = vunpack.c.l.b16 %v75
  %v700 = vunpack.c.h.b16 %v75
  %v701 = vunpack.c.l.b16 %v76
  %v702 = vunpack.c.h.b16 %v76
  %v703 = vunpack.c.l.b16 %v77
  %v704 = vunpack.c.h.b16 %v77
  %v705 = vunpack.c.l.b16 %v78
  %v706 = vunpack.c.h.b16 %v78
  %v707 = vunpack.c.l.b16 %v79
  %v708 = vunpack.c.h.b16 %v79
  %v709 = vunpack.c.l.b16 %v80
  %v710 = vunpack.c.h.b16 %v80
  %v711 = vunpack.c.l.b16 %v81
  %v712 = vunpack.c.h.b16 %v81
  %v713 = vunpack.c.l.b16 %v82
  %v714 = vunpack.c.h.b16 %v82
  %v715 = vunpack.c.l.b16 %v83
  %v716 = vunpack.c.h.b16 %v83
  %v717 = vunpack.c.l.b16 %v84
  %v718 = vunpack.c.h.b16 %v84
  %v719 = vunpack.c.l.b16 %v85
  %v720 = vunpack.c.h.b16 %v85
  %v721 = vunpack.c.l.b16 %v86
  %v722 = vunpack.c.h.b16 %v86
  %v723 = vunpack.c.l.b16 %v87
  %v724 = vunpack.c.h.b16 %v87
  %v725 = vunpack.c.l.b16 %v88
  %v726 = vunpack.c.h.b16 %v88
  %v727 = vunpack.c.l.b16 %v89
  %v728 = vunpack.c.h.b16 %v89
  %v729 = vunpack.c.l.b16 %v90
  %v730 = vunpack.c.h.b16 %v90
  %v731 = vunpack.c.l.b16 %v91
  %v732 = vunpack.c.h.b16 %v91
  %v733 = vunpack.c.l.b16 %v92
  %v734 = vunpack.c.h.b16 %v92
  %v735 = vunpack.c.l.b16 %v93
  %v736 = vunpack.c.h.b16 %v93
  %v737 = vunpack.c.l.b16 %v94
  %v738 = vunpack.c.h.b16 %v94
  %v739 = vunpack.c.l.b16 %v95
  %v740 = vunpack.c.h.b16 %v95
  %v741 = vunpack.c.l.b16 %v96
  %v742 = vunpack.c.h.b16 %v96
  %v743 = vunpack.c.l.b16 %v97
  %v744 = vunpack.c.h.b16 %v97
  %v745 = vunpack.c.l.b16 %v98
  %v746 = vunpack.c.h.b16 %v98
  %v747 = vunpack.c.l.b16 %v99
  %v748 = vunpack.c.h.b16 %v99
  %v749 = vunpack.c.l.b16 %v100
  %v750 = vunpack.c.h.b16 %v100
  %v751 = vunpack.c.l.b16 %v101
  %v752 = vunpack.c.h.b16 %v101
  %v753 = vunpack.c.l.b16 %v102
  %v754 = vunpack.c.h.b16 %v102
  %v755 = vunpack.c.l.b16 %v103
  %v756 = vunpack.c.h.b16 %v103
  %v757 = vunpack.c.l.b16 %v104
  %v758 = vunpack.c.h.b16 %v104
  %v759 = vunpack.c.l.b16 %v105
  %v760 = vunpack.c.h.b16 %v105
  %v761 = vunpack.c.l.b16 %v106
  %v762 = vunpack.c.h.b16 %v106
  %v763 = vunpack.c.l.b16 %v107
  %v764 = vunpack.c.h.b16 %v107
  %v765 = vunpack.c.l.b16 %v108
  %v766 = vunpack.c.h.b16 %v108
  %v767 = vunpack.c.l.b16 %v109
  %v768 = vunpack.c.h.b16 %v109
  %v769 = vunpack.c.l.b16 %v110
  %v770 = vunpack.c.h.b16 %v110
  %v771 = vunpack.c.l.b16 %v111
  %v772 = vunpack.c.h.b16 %v111
  %v773 = vunpack.c.l.b16 %v112
  %v774 = vunpack.c.h.b16 %v112
  %v775 = vunpack.c.l.b16 %v113
  %v776 = vunpack.c.h.b16 %v113
  %v777 = vunpack.c.l.b16 %v114
  %v778 = vunpack.c.h.b16 %v114
  %v779 = vunpack.c.l.b16 %v115
  %v780 = vunpack.c.h.b16 %v115
  %v781 = vunpack.c.l.b16 %v116
  %v782 = vunpack.c.h.b16 %v116
  %v783 = vunpack.c.l.b16 %v117
  %v784 = vunpack.c.h.b16 %v117
  %v785 = vunpack.c.l.b16 %v118
  %v786 = vunpack.c.h.b16 %v118
  %v787 = vunpack.c.l.b16 %v119
  %v788 = vunpack.c.h.b16 %v119
  %v789 = vunpack.c.l.b16 %v120
  %v790 = vunpack.c.h.b16 %v120
  %v791 = vunpack.c.l.b16 %v121
  %v792 = vunpack.c.h.b16 %v121
  %v793 = vunpack.c.l.b16 %v122
  %v794 = vunpack.c.h.b16 %v122
  %v795 = vunpack.c.l.b16 %v123
  %v796 = vunpack.c.h.b16 %v123
  %v797 = vunpack.c.l.b16 %v124
  %v798 = vunpack.c.h.b16 %v124
  %v799 = vunpack.c.l.b16 %v125
  %v800 = vunpack.c.h.b16 %v125
  %v801 = vunpack.c.l.b16 %v126
  %v802 = vunpack.c.h.b16 %v126
  %v803 = vunpack.c.l.b16 %v127
  %v804 = vunpack.c.h.b16 %v127
  %v805 = vunpack.c.l.b16 %v128
  %v806 = vunpack.c.h.b16 %v128
  %v807 = vunpack.c.l.b16 %v129
  %v808 = vunpack.c.h.b16 %v129
  %v809 = vunpack.c.l.b16 %v130
  %v810 = vunpack.c.h.b16 %v130
  %v811 = vunpack.c.l.b16 %v131
  %v812 = vunpack.c.h.b16 %v131
  %v813 = vunpack.c.l.b16 %v132
  %v814 = vunpack.c.h.b16 %v132
  %v815 = vunpack.c.l.b16 %v133
  %v816 = vunpack.c.h.b16 %v133
  %v817 = vunpack.c.l.b16 %v134
  %v818 = vunpack.c.h.b16 %v134
  %v819 = vunpack.c.l.b16 %v135
  %v820 = vunpack.c.h.b16 %v135
  %v821 = vunpack.c.l.b16 %v136
  %v822 = vunpack.c.h.b16 %v136
  %v823 = vunpack.c.l.b16 %v137
  %v824 = vunpack.c.h.b16 %v137
  %v825 = vunpack.c.l.b16 %v138
  %v826 = vunpack.c.h.b16 %v138
  %v827 = vunpack.c.l.b16 %v139
  %v828 = vunpack.c.h.b16 %v139
  %v829 = vunpack.c.l.b16 %v140
  %v830 = vunpack.c.h.b16 %v140
  %v831 = vunpack.c.l.b16 %v141
  %v832 = vunpack.c.h.b16 %v141
  %v833 = vunpack.c.l.b16 %v142
  %v834 = vunpack.c.h.b16 %v142
  %v835 = vunpack.c.l.b16 %v143
  %v836 = vunpack.c.h.b16 %v143
  %v837 = vunpack.c.l.b16 %v144
  %v838 = vunpack.c.h.b16 %v144
  %v839 = vunpack.c.l.b16 %v145
  %v840 = vunpack.c.h.b16 %v145
  %v841 = vunpack.c.l.b16 %v146
  %v842 = vunpack.c.h.b16 %v146
  %v843 = vunpack.c.l.b16 %v147
  %v844 = vunpack.c.h.b16 %v147
  %v845 = vunpack.c.l.b16 %v148
  %v846 = vunpack.c.h.b16 %v148
  %v847 = vunpack.c.l.b16 %v149
  %v848 = vunpack.c.h.b16 %v149
  %v849 = vunpack.c.l.b16 %v150
  %v850 = vunpack.c.h.b16 %v150
  %v851 = vunpack.c.l.b16 %v151
  %v852 = vunpack.c.h.b16 %v151
  %v853 = vunpack.c.l.b16 %v152
  %v854 = vunpack.c.h.b16 %v152
  %v855 = vunpack.c.l.b16 %v153
  %v856 = vunpack.c.h.b16 %v153
  %v857 = vunpack.c.l.b16 %v154
  %v858 = vunpack.c.h.b16 %v154
  %v859 = vunpack.c.l.b16 %v155
  %v860 = vunpack.c.h.b16 %v155
  %v861 = vunpack.c.l.b16 %v156
  %v862 = vunpack.c.h.b16 %v156
  %v863 = vunpack.c.l.b16 %v157
  %v864 = vunpack.c.h.b16 %v157
  %v865 = vunpack.c.l.b16 %v158
  %v866 = vunpack.c.h.b16 %v158
  %v867 = vunpack.c.l.b16 %v159
  %v868 = vunpack.c.h.b16 %v159
  %v869 = vunpack.c.l.b16 %v160
  %v870 = vunpack.c.h.b16 %v160
  %v871 = vunpack.c.l.b16 %v161
  %v872 = vunpack.c.h.b16 %v161
  %v873 = vunpack.c.l.b16 %v162
  %v874 = vunpack.c.h.b16 %v162
  %v875 = vunpack.c.l.b16 %v163
  %v876 = vunpack.c.h.b16 %v163
  %v877 = vunpack.c.l.b16 %v164
  %v878 = vunpack.c.h.b16 %v164
  %v879 = vunpack.c.l.b16 %v165
  %v880 = vunpack.c.h.b16 %v165
  %v881 = vunpack.c.l.b16 %v166
  %v882 = vunpack.c.h.b16 %v166
  %v883 = vunpack.c.l.b16 %v167
  %v884 = vunpack.c.h.b16 %v167
  %v885 = vunpack.c.l.b16 %v168
  %v886 = vunpack.c.h.b16 %v168
  %v887 = vunpack.c.l.b16 %v169
  %v888 = vunpack.c.h.b16 %v169
  %v889 = vunpack.c.l.b16 %v170
  %v890 = vunpack.c.h.b16 %v170
  %v891 = vunpack.c.l.b16 %v171
  %v892 = vunpack.c.h.b16 %v171
  %v893 = vunpack.c.l.b16 %v172
  %v894 = vunpack.c.h.b16 %v172
  %v895 = vunpack.c.l.b16 %v173
  %v896 = vunpack.c.h.b16 %v173
  %v897 = vunpack.c.l.b16 %v174
  %v898 = vunpack.c.h.b16 %v174
  %v899 = vunpack.c.l.b16 %v175
  %v900 = vunpack.c.h.b16 %v175
  %v901 = vunpack.c.l.b16 %v176
  %v902 = vunpack.c.h.b16 %v176
  %v903 = vunpack.c.l.b16 %v177
  %v904 = vunpack.c.h.b16 %v177
  %v905 = vunpack.c.l.b16 %v178
  %v906 = vunpack.c.h.b16 %v178
  %v907 = vunpack.c.l.b16 %v179
  %v908 = vunpack.c.h.b16 %v179
  %v909 = vunpack.c.l.b16 %v180
  %v910 = vunpack.c.h.b16 %v180
  %v911 = vunpack.c.l.b16 %v181
  %v912 = vunpack.c.h.b16 %v181
  %v913 = vunpack.c.l.b16 %v182
  %v914 = vunpack.c.h.b16 %v182
  %v915 = vunpack.c.l.b16 %v183
  %v916 = vunpack.c.h.b16 %v183
  %v917 = vunpack.c.l.b16 %v184
  %v918 = vunpack.c.h.b16 %v184
  %v919 = vunpack.c.l.b16 %v185
  %v920 = vunpack.c.h.b16 %v185
  %v921 = vunpack.c.l.b16 %v186
  %v922 = vunpack.c.h.b16 %v186
  %v923 = vunpack.c.l.b16 %v187
  %v924 = vunpack.c.h.b16 %v187
  %v925 = vunpack.c.l.b16 %v188
  %v926 = vunpack.c.h.b16 %v188
  %v927 = vunpack.c.l.b16 %v189
  %v928 = vunpack.c.h.b16 %v189
  %v929 = vunpack.c.l.b16 %v190
  %v930 = vunpack.c.h.b16 %v190
  %v931 = vunpack.c.l.b16 %v191
  %v932 = vunpack.c.h.b16 %v191
  %v933 = vunpack.c.l.b16 %v192
  %v934 = vunpack.c.h.b16 %v192
  %v935 = vunpack.c.l.b16 %v193
  %v936 = vunpack.c.h.b16 %v193
  %v937 = vunpack.c.l.b16 %v194
  %v938 = vunpack.c.h.b16 %v194
  %v939 = vunpack.c.l.b16 %v195
  %v940 = vunpack.c.h.b16 %v195
  %v941 = vunpack.c.l.b16 %v196
  %v942 = vunpack.c.h.b16 %v196
  %v943 = vunpack.c.l.b16 %v197
  %v944 = vunpack.c.h.b16 %v197
  %v945 = vunpack.c.l.b16 %v198
  %v946 = vunpack.c.h.b16 %v198
  %v947 = vunpack.c.l.b16 %v199
  %v948 = vunpack.c.h.b16 %v199
  %v949 = vunpack.c.l.b16 %v200
  %v950 = vunpack.c.h.b16 %v200
  %v951 = vunpack.c.l.b16 %v201
  %v952 = vunpack.c.h.b16 %v201
  %v953 = vunpack.c.l.b16 %v202
  %v954 = vunpack.c.h.b16 %v202
  %v955 = vunpack.c.l.b16 %v203
  %v956 = vunpack.c.h.b16 %v203
  %v957 = vunpack.c.l.b16 %v204
  %v958 = vunpack.c.h.b16 %v204
  %v959 = vunpack.c.l.b16 %v205
  %v960 = vunpack.c.h.b16 %v205
  %v961 = vunpack.c.l.b16 %v206
  %v962 = vunpack.c.h.b16 %v206
  %v963 = vunpack.c.l.b16 %v207
  %v964 = vunpack.c.h.b16 %v207
  %v965 = vunpack.c.l.b16 %v208
  %v966 = vunpack.c.h.b16 %v208
  %v967 = vunpack.c.l.b16 %v209
  %v968 = vunpack.c.h.b16 %v209
  %v969 = vunpack.c.l.b16 %v210
  %v970 = vunpack.c.h.b16 %v210
  %v971 = vunpack.c.l.b16 %v211
  %v972 = vunpack.c.h.b16 %v211
  %v973 = vunpack.c.l.b16 %v212
  %v974 = vunpack.c.h.b16 %v212
  %v975 = vunpack.c.l.b16 %v213
  %v976 = vunpack.c.h.b16 %v213
  %v977 = vunpack.c.l.b16 %v214
  %v978 = vunpack.c.h.b16 %v214
  %v979 = vunpack.c.l.b16 %v215
  %v980 = vunpack.c.h.b16 %v215
  %v981 = vunpack.c.l.b16 %v216
  %v982 = vunpack.c.h.b16 %v216
  %v983 = vunpack.c.l.b16 %v217
  %v984 = vunpack.c.h.b16 %v217
  %v985 = vunpack.c.l.b16 %v218
  %v986 = vunpack.c.h.b16 %v218
  %v987 = vunpack.c.l.b16 %v219
  %v988 = vunpack.c.h.b16 %v219
  %v989 = vunpack.c.l.b16 %v220
  %v990 = vunpack.c.h.b16 %v220
  %v991 = vunpack.c.l.b16 %v221
  %v992 = vunpack.c.h.b16 %v221
  %v993 = vunpack.c.l.b16 %v222
  %v994 = vunpack.c.h.b16 %v222
  %v995 = vunpack.c.l.b16 %v223
  %v996 = vunpack.c.h.b16 %v223
  %v997 = vunpack.c.l.b16 %v224
  %v998 = vunpack.c.h.b16 %v224
  %v999 = vunpack.c.l.b16 %v225
  %v1000 = vunpack.c.h.b16 %v225
  %v1001 = vunpack.c.l.b16 %v226
  %v1002 = vunpack.c.h.b16 %v226
  %v1003 = vunpack.c.l.b16 %v227
  %v1004 = vunpack.c.h.b16 %v227
  %v1005 = vunpack.c.l.b16 %v228
  %v1006 = vunpack.c.h.b16 %v228
  %v1007 = vunpack.c.l.b16 %v229
  %v1008 = vunpack.c.h.b16 %v229
  %v1009 = vunpack.c.l.b16 %v230
  %v1010 = vunpack.c.h.b16 %v230
  %v1011 = vunpack.c.l.b16 %v231
  %v1012 = vunpack.c.h.b16 %v231
  %v1013 = vunpack.c.l.b16 %v232
  %v1014 = vunpack.c.h.b16 %v232
  %v1015 = vunpack.c.l.b16 %v233
  %v1016 = vunpack.c.h.b16 %v233
  %v1017 = vunpack.c.l.b16 %v234
  %v1018 = vunpack.c.h.b16 %v234
  %v1019 = vunpack.c.l.b16 %v235
  %v1020 = vunpack.c.h.b16 %v235
  %v1021 = vunpack.c.l.b16 %v236
  %v1022 = vunpack.c.h.b16 %v236
  %v1023 = vunpack.c.l.b16 %v237
  %v1024 = vunpack.c.h.b16 %v237
  %v1025 = vunpack.c.l.b16 %v238
  %v1026 = vunpack.c.h.b16 %v238
  %v1027 = vunpack.c.l.b16 %v239
  %v1028 = vunpack.c.h.b16 %v239
  %v1029 = vunpack.c.l.b16 %v240
  %v1030 = vunpack.c.h.b16 %v240
  %v1031 = vunpack.c.l.b16 %v241
  %v1032 = vunpack.c.h.b16 %v241
  %v1033 = vunpack.c.l.b16 %v242
  %v1034 = vunpack.c.h.b16 %v242
  %v1035 = vunpack.c.l.b16 %v243
  %v1036 = vunpack.c.h.b16 %v243
  %v1037 = vunpack.c.l.b16 %v244
  %v1038 = vunpack.c.h.b16 %v244
  %v1039 = vunpack.c.l.b16 %v245
  %v1040 = vunpack.c.h.b16 %v245
  %v1041 = vunpack.c.l.b16 %v246
  %v1042 = vunpack.c.h.b16 %v246
  %v1043 = vunpack.c.l.b16 %v247
  %v1044 = vunpack.c.h.b16 %v247
  %v1045 = vunpack.c.l.b16 %v248
  %v1046 = vunpack.c.h.b16 %v248
  %v1047 = vunpack.c.l.b16 %v249
  %v1048 = vunpack.c.h.b16 %v249
  %v1049 = vunpack.c.l.b16 %v250
  %v1050 = vunpack.c.h.b16 %v250
  %v1051 = vunpack.c.l.b16 %v251
  %v1052 = vunpack.c.h.b16 %v251
  %v1053 = vunpack.c.l.b16 %v252
  %v1054 = vunpack.c.h.b16 %v252
  %v1055 = vunpack.c.l.b16 %v253
  %v1056 = vunpack.c.h.b16 %v253
  %v1057 = vunpack.c.l.b16 %v254
  %v1058 = vunpack.c.h.b16 %v254
  %v1059 = vunpack.c.l.b16 %v255
  %v1060 = vunpack.c.h.b16 %v255
  %v1061 = vunpack.c.l.b16 %v256
  %v1062 = vunpack.c.h.b16 %v256
  %v1063 = vunpack.c.l.b16 %v257
  %v1064 = vunpack.c.h.b16 %v257
  %v1065 = vunpack.c.l.b16 %v258
  %v1066 = vunpack.c.h.b16 %v258
  %v1067 = vunpack.c.l.b16 %v259
  %v1068 = vunpack.c.h.b16 %v259
  %v1069 = vunpack.c.l.b16 %v260
  %v1070 = vunpack.c.h.b16 %v260
  %v1071 = vunpack.c.l.b16 %v261
  %v1072 = vunpack.c.h.b16 %v261
  %v1073 = vunpack.c.l.b16 %v262
  %v1074 = vunpack.c.h.b16 %v262
  %v1075 = vunpack.c.l.b16 %v263
  %v1076 = vunpack.c.h.b16 %v263
  %v1077 = vunpack.c.l.b16 %v264
  %v1078 = vunpack.c.h.b16 %v264
  %v1079 = vunpack.c.l.b16 %v265
  %v1080 = vunpack.c.h.b16 %v265
  %v1081 = vunpack.c.l.b16 %v266
  %v1082 = vunpack.c.h.b16 %v266
  %v1083 = vunpack.c.l.b16 %v267
  %v1084 = vunpack.c.h.b16 %v267
  %v1085 = vunpack.c.l.b16 %v268
  %v1086 = vunpack.c.h.b16 %v268
  %v1087 = vunpack.c.l.b16 %v269
  %v1088 = vunpack.c.h.b16 %v269
  %v1089 = vunpack.c.l.b16 %v270
  %v1090 = vunpack.c.h.b16 %v270
  %v1091 = vunpack.c.l.b16 %v271
  %v1092 = vunpack.c.h.b16 %v271
  %v1093 = vunpack.c.l.b16 %v272
  %v1094 = vunpack.c.h.b16 %v272
  %v1095 = vunpack.c.l.b16 %v273
  %v1096 = vunpack.c.h.b16 %v273
  %v1097 = vunpack.c.l.b16 %v274
  %v1098 = vunpack.c.h.b16 %v274
  %v1099 = vunpack.c.l.b16 %v275
  %v1100 = vunpack.c.h.b16 %v275
  %v1101 = vunpack.c.l.b16 %v276
  %v1102 = vunpack.c.h.b16 %v276
  %v1103 = vunpack.c.l.b16 %v277
  %v1104 = vunpack.c.h.b16 %v277
  %v1105 = vunpack.c.l.b16 %v278
  %v1106 = vunpack.c.h.b16 %v278
  %v1107 = vunpack.c.l.b16 %v279
  %v1108 = vunpack.c.h.b16 %v279
  %v1109 = vunpack.c.l.b16 %v280
  %v1110 = vunpack.c.h.b16 %v280
  %v1111 = vpack.c.b16 %v601, %v599
  %v1112 = vpack.c.b16 %v602, %v600
  %v1113 = vpack.c.b16 %v605, %v603
  %v1114 = vpack.c.b16 %v606, %v604
  %v1115 = vpack.c.b16 %v609, %v607
  %v1116 = vpack.c.b16 %v610, %v608
  %v1117 = vpack.c.b16 %v613, %v611
  %v1118 = vpack.c.b16 %v614, %v612
  %v1119 = vpack.c.b16 %v617, %v615
  %v1120 = vpack.c.b16 %v618, %v616
  %v1121 = vpack.c.b16 %v621, %v619
  %v1122 = vpack.c.b16 %v622, %v620
  %v1123 = vpack.c.b16 %v625, %v623
  %v1124 = vpack.c.b16 %v626, %v624
  %v1125 = vpack.c.b16 %v629, %v627
  %v1126 = vpack.c.b16 %v630, %v628
  %v1127 = vpack.c.b16 %v633, %v631
  %v1128 = vpack.c.b16 %v634, %v632
  %v1129 = vpack.c.b16 %v637, %v635
  %v1130 = vpack.c.b16 %v638, %v636
  %v1131 = vpack.c.b16 %v641, %v639
  %v1132 = vpack.c.b16 %v642, %v640
  %v1133 = vpack.c.b16 %v645, %v643
  %v1134 = vpack.c.b16 %v646, %v644
  %v1135 = vpack.c.b16 %v649, %v647
  %v1136 = vpack.c.b16 %v650, %v648
  %v1137 = vpack.c.b16 %v653, %v651
  %v1138 = vpack.c.b16 %v654, %v652
  %v1139 = vpack.c.b16 %v657, %v655
  %v1140 = vpack.c.b16 %v658, %v656
  %v1141 = vpack.c.b16 %v661, %v659
  %v1142 = vpack.c.b16 %v662, %v660
  %v1143 = vpack.c.b16 %v665, %v663
  %v1144 = vpack.c.b16 %v666, %v664
  %v1145 = vpack.c.b16 %v669, %v667
  %v1146 = vpack.c.b16 %v670, %v668
  %v1147 = vpack.c.b16 %v673, %v671
  %v1148 = vpack.c.b16 %v674, %v672
  %v1149 = vpack.c.b16 %v677, %v675
  %v1150 = vpack.c.b16 %v678, %v676
  %v1151 = vpack.c.b16 %v681, %v679
  %v1152 = vpack.c.b16 %v682, %v680
  %v1153 = vpack.c.b16 %v685, %v683
  %v1154 = vpack.c.b16 %v686, %v684
  %v1155 = vpack.c.b16 %v689, %v687
  %v1156 = vpack.c.b16 %v690, %v688
  %v1157 = vpack.c.b16 %v693, %v691
  %v1158 = vpack.c.b16 %v694, %v692
  %v1159 = vpack.c.b16 %v697, %v695
  %v1160 = vpack.c.b16 %v698, %v696
  %v1161 = vpack.c.b16 %v701, %v699
  %v1162 = vpack.c.b16 %v702, %v700
  %v1163 = vpack.c.b16 %v705, %v703
  %v1164 = vpack.c.b16 %v706, %v704
  %v1165 = vpack.c.b16 %v709, %v707
  %v1166 = vpack.c.b16 %v710, %v708
  %v1167 = vpack.c.b16 %v713, %v711
  %v1168 = vpack.c.b16 %v714, %v712
  %v1169 = vpack.c.b16 %v717, %v715
  %v1170 = vpack.c.b16 %v718, %v716
  %v1171 = vpack.c.b16 %v721, %v719
  %v1172 = vpack.c.b16 %v722, %v720
  %v1173 = vpack.c.b16 %v725, %v723
  %v1174 = vpack.c.b16 %v726, %v724
  %v1175 = vpack.c.b16 %v729, %v727
  %v1176 = vpack.c.b16 %v730, %v728
  %v1177 = vpack.c.b16 %v733, %v731
  %v1178 = vpack.c.b16 %v734, %v732
  %v1179 = vpack.c.b16 %v737, %v735
  %v1180 = vpack.c.b16 %v738, %v736
  %v1181 = vpack.c.b16 %v741, %v739
  %v1182 = vpack.c.b16 %v742, %v740
  %v1183 = vpack.c.b16 %v745, %v743
  %v1184 = vpack.c.b16 %v746, %v744
  %v1185 = vpack.c.b16 %v749, %v747
  %v1186 = vpack.c.b16 %v750, %v748
  %v1187 = vpack.c.b16 %v753, %v751
  %v1188 = vpack.c.b16 %v754, %v752
  %v1189 = vpack.c.b16 %v757, %v755
  %v1190 = vpack.c.b16 %v758, %v756
  %v1191 = vpack.c.b16 %v761, %v759
  %v1192 = vpack.c.b16 %v762, %v760
  %v1193 = vpack.c.b16 %v765, %v763
  %v1194 = vpack.c.b16 %v766, %v764
  %v1195 = vpack.c.b16 %v769, %v767
  %v1196 = vpack.c.b16 %v770, %v768
  %v1197 = vpack.c.b16 %v773, %v771
  %v1198 = vpack.c.b16 %v774, %v772
  %v1199 = vpack.c.b16 %v777, %v775
  %v1200 = vpack.c.b16 %v778, %v776
  %v1201 = vpack.c.b16 %v781, %v779
  %v1202 = vpack.c.b16 %v782, %v780
  %v1203 = vpack.c.b16 %v785, %v783
  %v1204 = vpack.c.b16 %v786, %v784
  %v1205 = vpack.c.b16 %v789, %v787
  %v1206 = vpack.c.b16 %v790, %v788
  %v1207 = vpack.c.b16 %v793, %v791
  %v1208 = vpack.c.b16 %v794, %v792
  %v1209 = vpack.c.b16 %v797, %v795
  %v1210 = vpack.c.b16 %v798, %v796
  %v1211 = vpack.c.b16 %v801, %v799
  %v1212 = vpack.c.b16 %v802, %v800
  %v1213 = vpack.c.b16 %v805, %v803
  %v1214 = vpack.c.b16 %v806, %v804
  %v1215 = vpack.c.b16 %v809, %v807
  %v1216 = vpack.c.b16 %v810, %v808
  %v1217 = vpack.c.b16 %v813, %v811
  %v1218 = vpack.c.b16 %v814, %v812
  %v1219 = vpack.c.b16 %v817, %v815
  %v1220 = vpack.c.b16 %v818, %v816
  %v1221 = vpack.c.b16 %v821, %v819
  %v1222 = vpack.c.b16 %v822, %v820
  %v1223 = vpack.c.b16 %v825, %v823
  %v1224 = vpack.c.b16 %v826, %v824
  %v1225 = vpack.c.b16 %v829, %v827
  %v1226 = vpack.c.b16 %v830, %v828
  %v1227 = vpack.c.b16 %v833, %v831
  %v1228 = vpack.c.b16 %v834, %v832
  %v1229 = vpack.c.b16 %v837, %v835
  %v1230 = vpack.c.b16 %v838, %v836
  %v1231 = vpack.c.b16 %v841, %v839
  %v1232 = vpack.c.b16 %v842, %v840
  %v1233 = vpack.c.b16 %v845, %v843
  %v1234 = vpack.c.b16 %v846, %v844
  %v1235 = vpack.c.b16 %v849, %v847
  %v1236 = vpack.c.b16 %v850, %v848
  %v1237 = vpack.c.b16 %v853, %v851
  %v1238 = vpack.c.b16 %v854, %v852
  %v1239 = vpack.c.b16 %v857, %v855
  %v1240 = vpack.c.b16 %v858, %v856
  %v1241 = vpack.c.b16 %v861, %v859
  %v1242 = vpack.c.b16 %v862, %v860
  %v1243 = vpack.c.b16 %v865, %v863
  %v1244 = vpack.c.b16 %v866, %v864
  %v1245 = vpack.c.b16 %v869, %v867
  %v1246 = vpack.c.b16 %v870, %v868
  %v1247 = vpack.c.b16 %v873, %v871
  %v1248 = vpack.c.b16 %v874, %v872
  %v1249 = vpack.c.b16 %v877, %v875
  %v1250 = vpack.c.b16 %v878, %v876
  %v1251 = vpack.c.b16 %v881, %v879
  %v1252 = vpack.c.b16 %v882, %v880
  %v1253 = vpack.c.b16 %v885, %v883
  %v1254 = vpack.c.b16 %v886, %v884
  %v1255 = vpack.c.b16 %v889, %v887
  %v1256 = vpack.c.b16 %v890, %v888
  %v1257 = vpack.c.b16 %v893, %v891
  %v1258 = vpack.c.b16 %v894, %v892
  %v1259 = vpack.c.b16 %v897, %v895
  %v1260 = vpack.c.b16 %v898, %v896
  %v1261 = vpack.c.b16 %v901, %v899
  %v1262 = vpack.c.b16 %v902, %v900
  %v1263 = vpack.c.b16 %v905, %v903
  %v1264 = vpack.c.b16 %v906, %v904
  %v1265 = vpack.c.b16 %v909, %v907
  %v1266 = vpack.c.b16 %v910, %v908
  %v1267 = vpack.c.b16 %v913, %v911
  %v1268 = vpack.c.b16 %v914, %v912
  %v1269 = vpack.c.b16 %v917, %v915
  %v1270 = vpack.c.b16 %v918, %v916
  %v1271 = vpack.c.b16 %v921, %v919
  %v1272 = vpack.c.b16 %v922, %v920
  %v1273 = vpack.c.b16 %v925, %v923
  %v1274 = vpack.c.b16 %v926, %v924
  %v1275 = vpack.c.b16 %v929, %v927
  %v1276 = vpack.c.b16 %v930, %v928
  %v1277 = vpack.c.b16 %v933, %v931
  %v1278 = vpack.c.b16 %v934, %v932
  %v1279 = vpack.c.b16 %v937, %v935
  %v1280 = vpack.c.b16 %v938, %v936
  %v1281 = vpack.c.b16 %v941, %v939
  %v1282 = vpack.c.b16 %v942, %v940
  %v1283 = vpack.c.b16 %v945, %v943
  %v1284 = vpack.c.b16 %v946, %v944
  %v1285 = vpack.c.b16 %v949, %v947
  %v1286 = vpack.c.b16 %v950, %v948
  %v1287 = vpack.c.b16 %v953, %v951
  %v1288 = vpack.c.b16 %v954, %v952
  %v1289 = vpack.c.b16 %v957, %v955
  %v1290 = vpack.c.b16 %v958, %v956
  %v1291 = vpack.c.b16 %v961, %v959
  %v1292 = vpack.c.b16 %v962, %v960
  %v1293 = vpack.c.b16 %v965, %v963
  %v1294 = vpack.c.b16 %v966, %v964
  %v1295 = vpack.c.b16 %v969, %v967
  %v1296 = vpack.c.b16 %v970, %v968
  %v1297 = vpack.c.b16 %v973, %v971
  %v1298 = vpack.c.b16 %v974, %v972
  %v1299 = vpack.c.b16 %v977, %v975
  %v1300 = vpack.c.b16 %v978, %v976
  %v1301 = vpack.c.b16 %v981, %v979
  %v1302 = vpack.c.b16 %v982, %v980
  %v1303 = vpack.c.b16 %v985, %v983
  %v1304 = vpack.c.b16 %v986, %v984
  %v1305 = vpack.c.b16 %v989, %v987
  %v1306 = vpack.c.b16 %v990, %v988
  %v1307 = vpack.c.b16 %v993, %v991
  %v1308 = vpack.c.b16 %v994, %v992
  %v1309 = vpack.c.b16 %v997, %v995
  %v1310 = vpack.c.b16 %v998, %v996
  %v1311 = vpack.c.b16 %v1001, %v999
  %v1312 = vpack.c.b16 %v1002, %v1000
  %v1313 = vpack.c.b16 %v1005, %v1003
  %v1314 = vpack.c.b16 %v1006, %v1004
  %v1315 = vpack.c.b16 %v1009, %v1007
  %v1316 = vpack.c.b16 %v1010, %v1008
  %v1317 = vpack.c.b16 %v1013, %v1011
  %v1318 = vpack.c.b16 %v1014, %v1012
  %v1319 = vpack.c.b16 %v1017, %v1015
  %v1320 = vpack.c.b16 %v1018, %v1016
  %v1321 = vpack.c.b16 %v1021, %v1019
  %v1322 = vpack.c.b16 %v1022, %v1020
  %v1323 = vpack.c.b16 %v1025, %v1023
  %v1324 = vpack.c.b16 %v1026, %v1024
  %v1325 = vpack.c.b16 %v1029, %v1027
  %v1326 = vpack.c.b16 %v1030, %v1028
  %v1327 = vpack.c.b16 %v1033, %v1031
  %v1328 = vpack.c.b16 %v1034, %v1032
  %v1329 = vpack.c.b16 %v1037, %v1035
  %v1330 = vpack.c.b16 %v1038, %v1036
  %v1331 = vpack.c.b16 %v1041, %v1039
  %v1332 = vpack.c.b16 %v1042, %v1040
  %v1333 = vpack.c.b16 %v1045, %v1043
  %v1334 = vpack.c.b16 %v1046, %v1044
  %v1335 = vpack.c.b16 %v1049, %v1047
  %v1336 = vpack.c.b16 %v1050, %v1048
  %v1337 = vpack.c.b16 %v1053, %v1051
  %v1338 = vpack.c.b16 %v1054, %v1052
  %v1339 = vpack.c.b16 %v1057, %v1055
  %v1340 = vpack.c.b16 %v1058, %v1056
  %v1341 = vpack.c.b16 %v1061, %v1059
  %v1342 = vpack.c.b16 %v1062, %v1060
  %v1343 = vpack.c.b16 %v1065, %v1063
  %v1344 = vpack.c.b16 %v1066, %v1064
  %v1345 = vpack.c.b16 %v1069, %v1067
  %v1346 = vpack.c.b16 %v1070, %v1068
  %v1347 = vpack.c.b16 %v1073, %v1071
  %v1348 = vpack.c.b16 %v1074, %v1072
  %v1349 = vpack.c.b16 %v1077, %v1075
  %v1350 = vpack.c.b16 %v1078, %v1076
  %v1351 = vpack.c.b16 %v1081, %v1079
  %v1352 = vpack.c.b16 %v1082, %v1080
  %v1353 = vpack.c.b16 %v1085, %v1083
  %v1354 = vpack.c.b16 %v1086, %v1084
  %v1355 = vpack.c.b16 %v1089, %v1087
  %v1356 = vpack.c.b16 %v1090, %v1088
  %v1357 = vpack.c.b16 %v1093, %v1091
  %v1358 = vpack.c.b16 %v1094, %v1092
  %v1359 = vpack.c.b16 %v1097, %v1095
  %v1360 = vpack.c.b16 %v1098, %v1096
  %v1361 = vpack.c.b16 %v1101, %v1099
  %v1362 = vpack.c.b16 %v1102, %v1100
  %v1363 = vpack.c.b16 %v1105, %v1103
  %v1364 = vpack.c.b16 %v1106, %v1104
  %v1365 = vpack.c.b16 %v1109, %v1107
  %v1366 = vpack.c.b16 %v1110, %v1108
  %1623 = vmatpush.bf16.msra.mxu0 %v1125
  %1624 = vmatpush.bf16.msra.mxu0 %v1123
  %1625 = vmatpush.bf16.msra.mxu0 %v1121
  %1626 = vmatpush.bf16.msra.mxu0 %v1119
  %1627 = vmatpush.bf16.msra.mxu0 %v1117
  %1628 = vmatpush.bf16.msra.mxu0 %v1115
  %1629 = vmatpush.bf16.msra.mxu0 %v1113
  %1630 = vmatpush.bf16.msra.mxu0 %v1111
  %1631 = vmatmul.bf16.gmra.mxu0 %v311
  %v1632 = vpop.f32.mrf.mxu0
  %v1633 = vadd.f32 %v283, %v1632
  %v1634 = vpop.f32.mrf.mxu0
  %1635 = vdwg.mxu0
  %1636 = vmatpush.bf16.msra.mxu0 %v1141
  %1637 = vmatpush.bf16.msra.mxu0 %v1139
  %1638 = vmatpush.bf16.msra.mxu0 %v1137
  %1639 = vmatpush.bf16.msra.mxu0 %v1135
  %1640 = vmatpush.bf16.msra.mxu0 %v1133
  %1641 = vmatpush.bf16.msra.mxu0 %v1131
  %1642 = vmatpush.bf16.msra.mxu0 %v1129
  %1643 = vmatpush.bf16.msra.mxu0 %v1127
  %1644 = vmatmul.bf16.gmra.mxu0 %v312
  %v1645 = vpop.f32.mrf.mxu0
  %v1646 = vadd.f32 %v1633, %v1645
  %v1647 = vpop.f32.mrf.mxu0
  %1648 = vdwg.mxu0
  %1649 = vmatpush.bf16.msra.mxu0 %v1157
  %1650 = vmatpush.bf16.msra.mxu0 %v1155
  %1651 = vmatpush.bf16.msra.mxu0 %v1153
  %1652 = vmatpush.bf16.msra.mxu0 %v1151
  %1653 = vmatpush.bf16.msra.mxu0 %v1149
  %1654 = vmatpush.bf16.msra.mxu0 %v1147
  %1655 = vmatpush.bf16.msra.mxu0 %v1145
  %1656 = vmatpush.bf16.msra.mxu0 %v1143
  %1657 = vmatmul.bf16.gmra.mxu0 %v313
  %v1658 = vpop.f32.mrf.mxu0
  %v1659 = vadd.f32 %v1646, %v1658
  %v1660 = vpop.f32.mrf.mxu0
  %1661 = vdwg.mxu0
  %1662 = vmatpush.bf16.msra.mxu0 %v1173
  %1663 = vmatpush.bf16.msra.mxu0 %v1171
  %1664 = vmatpush.bf16.msra.mxu0 %v1169
  %1665 = vmatpush.bf16.msra.mxu0 %v1167
  %1666 = vmatpush.bf16.msra.mxu0 %v1165
  %1667 = vmatpush.bf16.msra.mxu0 %v1163
  %1668 = vmatpush.bf16.msra.mxu0 %v1161
  %1669 = vmatpush.bf16.msra.mxu0 %v1159
  %1670 = vmatmul.bf16.gmra.mxu0 %v314
  %v1671 = vpop.f32.mrf.mxu0
  %v1672 = vadd.f32 %v1659, %v1671
  %v1673 = vpop.f32.mrf.mxu0
  %1674 = vdwg.mxu0
  %1675 = vmatpush.bf16.msra.mxu0 %v1189
  %1676 = vmatpush.bf16.msra.mxu0 %v1187
  %1677 = vmatpush.bf16.msra.mxu0 %v1185
  %1678 = vmatpush.bf16.msra.mxu0 %v1183
  %1679 = vmatpush.bf16.msra.mxu0 %v1181
  %1680 = vmatpush.bf16.msra.mxu0 %v1179
  %1681 = vmatpush.bf16.msra.mxu0 %v1177
  %1682 = vmatpush.bf16.msra.mxu0 %v1175
  %1683 = vmatmul.bf16.gmra.mxu0 %v315
  %v1684 = vpop.f32.mrf.mxu0
  %v1685 = vadd.f32 %v1672, %v1684
  %v1686 = vpop.f32.mrf.mxu0
  %1687 = vdwg.mxu0
  %1688 = vmatpush.bf16.msra.mxu0 %v1205
  %1689 = vmatpush.bf16.msra.mxu0 %v1203
  %1690 = vmatpush.bf16.msra.mxu0 %v1201
  %1691 = vmatpush.bf16.msra.mxu0 %v1199
  %1692 = vmatpush.bf16.msra.mxu0 %v1197
  %1693 = vmatpush.bf16.msra.mxu0 %v1195
  %1694 = vmatpush.bf16.msra.mxu0 %v1193
  %1695 = vmatpush.bf16.msra.mxu0 %v1191
  %1696 = vmatmul.bf16.gmra.mxu0 %v316
  %v1697 = vpop.f32.mrf.mxu0
  %v1698 = vadd.f32 %v1685, %v1697
  %v1699 = vpop.f32.mrf.mxu0
  %1700 = vdwg.mxu0
  %1701 = vmatpush.bf16.msra.mxu0 %v1221
  %1702 = vmatpush.bf16.msra.mxu0 %v1219
  %1703 = vmatpush.bf16.msra.mxu0 %v1217
  %1704 = vmatpush.bf16.msra.mxu0 %v1215
  %1705 = vmatpush.bf16.msra.mxu0 %v1213
  %1706 = vmatpush.bf16.msra.mxu0 %v1211
  %1707 = vmatpush.bf16.msra.mxu0 %v1209
  %1708 = vmatpush.bf16.msra.mxu0 %v1207
  %1709 = vmatmul.bf16.gmra.mxu0 %v317
  %v1710 = vpop.f32.mrf.mxu0
  %v1711 = vadd.f32 %v1698, %v1710
  %v1712 = vpop.f32.mrf.mxu0
  %1713 = vdwg.mxu0
  %1714 = vmatpush.bf16.msra.mxu0 %v1237
  %1715 = vmatpush.bf16.msra.mxu0 %v1235
  %1716 = vmatpush.bf16.msra.mxu0 %v1233
  %1717 = vmatpush.bf16.msra.mxu0 %v1231
  %1718 = vmatpush.bf16.msra.mxu0 %v1229
  %1719 = vmatpush.bf16.msra.mxu0 %v1227
  %1720 = vmatpush.bf16.msra.mxu0 %v1225
  %1721 = vmatpush.bf16.msra.mxu0 %v1223
  %1722 = vmatmul.bf16.gmra.mxu0 %v318
  %v1723 = vpop.f32.mrf.mxu0
  %v1724 = vadd.f32 %v1711, %v1723
  %v1725 = vpop.f32.mrf.mxu0
  %1726 = vdwg.mxu0
  %1727 = vmatpush.bf16.msra.mxu0 %v1253
  %1728 = vmatpush.bf16.msra.mxu0 %v1251
  %1729 = vmatpush.bf16.msra.mxu0 %v1249
  %1730 = vmatpush.bf16.msra.mxu0 %v1247
  %1731 = vmatpush.bf16.msra.mxu0 %v1245
  %1732 = vmatpush.bf16.msra.mxu0 %v1243
  %1733 = vmatpush.bf16.msra.mxu0 %v1241
  %1734 = vmatpush.bf16.msra.mxu0 %v1239
  %1735 = vmatmul.bf16.gmra.mxu0 %v319
  %v1736 = vpop.f32.mrf.mxu0
  %v1737 = vadd.f32 %v1724, %v1736
  %v1738 = vpop.f32.mrf.mxu0
  %1739 = vdwg.mxu0
  %1740 = vmatpush.bf16.msra.mxu0 %v1269
  %1741 = vmatpush.bf16.msra.mxu0 %v1267
  %1742 = vmatpush.bf16.msra.mxu0 %v1265
  %1743 = vmatpush.bf16.msra.mxu0 %v1263
  %1744 = vmatpush.bf16.msra.mxu0 %v1261
  %1745 = vmatpush.bf16.msra.mxu0 %v1259
  %1746 = vmatpush.bf16.msra.mxu0 %v1257
  %1747 = vmatpush.bf16.msra.mxu0 %v1255
  %1748 = vmatmul.bf16.gmra.mxu0 %v320
  %v1749 = vpop.f32.mrf.mxu0
  %v1750 = vadd.f32 %v1737, %v1749
  %v1751 = vpop.f32.mrf.mxu0
  %1752 = vdwg.mxu0
  %1753 = vmatpush.bf16.msra.mxu0 %v1285
  %1754 = vmatpush.bf16.msra.mxu0 %v1283
  %1755 = vmatpush.bf16.msra.mxu0 %v1281
  %1756 = vmatpush.bf16.msra.mxu0 %v1279
  %1757 = vmatpush.bf16.msra.mxu0 %v1277
  %1758 = vmatpush.bf16.msra.mxu0 %v1275
  %1759 = vmatpush.bf16.msra.mxu0 %v1273
  %1760 = vmatpush.bf16.msra.mxu0 %v1271
  %1761 = vmatmul.bf16.gmra.mxu0 %v321
  %v1762 = vpop.f32.mrf.mxu0
  %v1763 = vadd.f32 %v1750, %v1762
  %v1764 = vpop.f32.mrf.mxu0
  %1765 = vdwg.mxu0
  %1766 = vmatpush.bf16.msra.mxu0 %v1301
  %1767 = vmatpush.bf16.msra.mxu0 %v1299
  %1768 = vmatpush.bf16.msra.mxu0 %v1297
  %1769 = vmatpush.bf16.msra.mxu0 %v1295
  %1770 = vmatpush.bf16.msra.mxu0 %v1293
  %1771 = vmatpush.bf16.msra.mxu0 %v1291
  %1772 = vmatpush.bf16.msra.mxu0 %v1289
  %1773 = vmatpush.bf16.msra.mxu0 %v1287
  %1774 = vmatmul.bf16.gmra.mxu0 %v322
  %v1775 = vpop.f32.mrf.mxu0
  %v1776 = vadd.f32 %v1763, %v1775
  %v1777 = vpop.f32.mrf.mxu0
  %1778 = vdwg.mxu0
  %1779 = vmatpush.bf16.msra.mxu0 %v1317
  %1780 = vmatpush.bf16.msra.mxu0 %v1315
  %1781 = vmatpush.bf16.msra.mxu0 %v1313
  %1782 = vmatpush.bf16.msra.mxu0 %v1311
  %1783 = vmatpush.bf16.msra.mxu0 %v1309
  %1784 = vmatpush.bf16.msra.mxu0 %v1307
  %1785 = vmatpush.bf16.msra.mxu0 %v1305
  %1786 = vmatpush.bf16.msra.mxu0 %v1303
  %1787 = vmatmul.bf16.gmra.mxu0 %v323
  %v1788 = vpop.f32.mrf.mxu0
  %v1789 = vadd.f32 %v1776, %v1788
  %v1790 = vpop.f32.mrf.mxu0
  %1791 = vdwg.mxu0
  %1792 = vmatpush.bf16.msra.mxu0 %v1333
  %1793 = vmatpush.bf16.msra.mxu0 %v1331
  %1794 = vmatpush.bf16.msra.mxu0 %v1329
  %1795 = vmatpush.bf16.msra.mxu0 %v1327
  %1796 = vmatpush.bf16.msra.mxu0 %v1325
  %1797 = vmatpush.bf16.msra.mxu0 %v1323
  %1798 = vmatpush.bf16.msra.mxu0 %v1321
  %1799 = vmatpush.bf16.msra.mxu0 %v1319
  %1800 = vmatmul.bf16.gmra.mxu0 %v324
  %v1801 = vpop.f32.mrf.mxu0
  %v1802 = vadd.f32 %v1789, %v1801
  %v1803 = vpop.f32.mrf.mxu0
  %1804 = vdwg.mxu0
  %1805 = vmatpush.bf16.msra.mxu0 %v1349
  %1806 = vmatpush.bf16.msra.mxu0 %v1347
  %1807 = vmatpush.bf16.msra.mxu0 %v1345
  %1808 = vmatpush.bf16.msra.mxu0 %v1343
  %1809 = vmatpush.bf16.msra.mxu0 %v1341
  %1810 = vmatpush.bf16.msra.mxu0 %v1339
  %1811 = vmatpush.bf16.msra.mxu0 %v1337
  %1812 = vmatpush.bf16.msra.mxu0 %v1335
  %1813 = vmatmul.bf16.gmra.mxu0 %v325
  %v1814 = vpop.f32.mrf.mxu0
  %v1815 = vadd.f32 %v1802, %v1814
  %v1816 = vpop.f32.mrf.mxu0
  %1817 = vdwg.mxu0
  %1818 = vmatpush.bf16.msra.mxu0 %v1365
  %1819 = vmatpush.bf16.msra.mxu0 %v1363
  %1820 = vmatpush.bf16.msra.mxu0 %v1361
  %1821 = vmatpush.bf16.msra.mxu0 %v1359
  %1822 = vmatpush.bf16.msra.mxu0 %v1357
  %1823 = vmatpush.bf16.msra.mxu0 %v1355
  %1824 = vmatpush.bf16.msra.mxu0 %v1353
  %1825 = vmatpush.bf16.msra.mxu0 %v1351
  %1826 = vmatmul.bf16.gmra.mxu0 %v326
  %v1827 = vpop.f32.mrf.mxu0
  %v1828 = vadd.f32 %v1815, %v1827
  %v1829 = vpop.f32.mrf.mxu0
  %1830 = vdwg.mxu0
  %1831 = vmatpush.bf16.msra.mxu0 %v1126
  %1832 = vmatpush.bf16.msra.mxu0 %v1124
  %1833 = vmatpush.bf16.msra.mxu0 %v1122
  %1834 = vmatpush.bf16.msra.mxu0 %v1120
  %1835 = vmatpush.bf16.msra.mxu0 %v1118
  %1836 = vmatpush.bf16.msra.mxu0 %v1116
  %1837 = vmatpush.bf16.msra.mxu0 %v1114
  %1838 = vmatpush.bf16.msra.mxu0 %v1112
  %1839 = vmatmul.bf16.gmra.mxu0 %v311
  %v1840 = vpop.f32.mrf.mxu0
  %v1841 = vadd.f32 %v284, %v1840
  %v1842 = vpop.f32.mrf.mxu0
  %1843 = vdwg.mxu0
  %1844 = vmatpush.bf16.msra.mxu0 %v1142
  %1845 = vmatpush.bf16.msra.mxu0 %v1140
  %1846 = vmatpush.bf16.msra.mxu0 %v1138
  %1847 = vmatpush.bf16.msra.mxu0 %v1136
  %1848 = vmatpush.bf16.msra.mxu0 %v1134
  %1849 = vmatpush.bf16.msra.mxu0 %v1132
  %1850 = vmatpush.bf16.msra.mxu0 %v1130
  %1851 = vmatpush.bf16.msra.mxu0 %v1128
  %1852 = vmatmul.bf16.gmra.mxu0 %v312
  %v1853 = vpop.f32.mrf.mxu0
  %v1854 = vadd.f32 %v1841, %v1853
  %v1855 = vpop.f32.mrf.mxu0
  %1856 = vdwg.mxu0
  %1857 = vmatpush.bf16.msra.mxu0 %v1158
  %1858 = vmatpush.bf16.msra.mxu0 %v1156
  %1859 = vmatpush.bf16.msra.mxu0 %v1154
  %1860 = vmatpush.bf16.msra.mxu0 %v1152
  %1861 = vmatpush.bf16.msra.mxu0 %v1150
  %1862 = vmatpush.bf16.msra.mxu0 %v1148
  %1863 = vmatpush.bf16.msra.mxu0 %v1146
  %1864 = vmatpush.bf16.msra.mxu0 %v1144
  %1865 = vmatmul.bf16.gmra.mxu0 %v313
  %v1866 = vpop.f32.mrf.mxu0
  %v1867 = vadd.f32 %v1854, %v1866
  %v1868 = vpop.f32.mrf.mxu0
  %1869 = vdwg.mxu0
  %1870 = vmatpush.bf16.msra.mxu0 %v1174
  %1871 = vmatpush.bf16.msra.mxu0 %v1172
  %1872 = vmatpush.bf16.msra.mxu0 %v1170
  %1873 = vmatpush.bf16.msra.mxu0 %v1168
  %1874 = vmatpush.bf16.msra.mxu0 %v1166
  %1875 = vmatpush.bf16.msra.mxu0 %v1164
  %1876 = vmatpush.bf16.msra.mxu0 %v1162
  %1877 = vmatpush.bf16.msra.mxu0 %v1160
  %1878 = vmatmul.bf16.gmra.mxu0 %v314
  %v1879 = vpop.f32.mrf.mxu0
  %v1880 = vadd.f32 %v1867, %v1879
  %v1881 = vpop.f32.mrf.mxu0
  %1882 = vdwg.mxu0
  %1883 = vmatpush.bf16.msra.mxu0 %v1190
  %1884 = vmatpush.bf16.msra.mxu0 %v1188
  %1885 = vmatpush.bf16.msra.mxu0 %v1186
  %1886 = vmatpush.bf16.msra.mxu0 %v1184
  %1887 = vmatpush.bf16.msra.mxu0 %v1182
  %1888 = vmatpush.bf16.msra.mxu0 %v1180
  %1889 = vmatpush.bf16.msra.mxu0 %v1178
  %1890 = vmatpush.bf16.msra.mxu0 %v1176
  %1891 = vmatmul.bf16.gmra.mxu0 %v315
  %v1892 = vpop.f32.mrf.mxu0
  %v1893 = vadd.f32 %v1880, %v1892
  %v1894 = vpop.f32.mrf.mxu0
  %1895 = vdwg.mxu0
  %1896 = vmatpush.bf16.msra.mxu0 %v1206
  %1897 = vmatpush.bf16.msra.mxu0 %v1204
  %1898 = vmatpush.bf16.msra.mxu0 %v1202
  %1899 = vmatpush.bf16.msra.mxu0 %v1200
  %1900 = vmatpush.bf16.msra.mxu0 %v1198
  %1901 = vmatpush.bf16.msra.mxu0 %v1196
  %1902 = vmatpush.bf16.msra.mxu0 %v1194
  %1903 = vmatpush.bf16.msra.mxu0 %v1192
  %1904 = vmatmul.bf16.gmra.mxu0 %v316
  %v1905 = vpop.f32.mrf.mxu0
  %v1906 = vadd.f32 %v1893, %v1905
  %v1907 = vpop.f32.mrf.mxu0
  %1908 = vdwg.mxu0
  %1909 = vmatpush.bf16.msra.mxu0 %v1222
  %1910 = vmatpush.bf16.msra.mxu0 %v1220
  %1911 = vmatpush.bf16.msra.mxu0 %v1218
  %1912 = vmatpush.bf16.msra.mxu0 %v1216
  %1913 = vmatpush.bf16.msra.mxu0 %v1214
  %1914 = vmatpush.bf16.msra.mxu0 %v1212
  %1915 = vmatpush.bf16.msra.mxu0 %v1210
  %1916 = vmatpush.bf16.msra.mxu0 %v1208
  %1917 = vmatmul.bf16.gmra.mxu0 %v317
  %v1918 = vpop.f32.mrf.mxu0
  %v1919 = vadd.f32 %v1906, %v1918
  %v1920 = vpop.f32.mrf.mxu0
  %1921 = vdwg.mxu0
  %1922 = vmatpush.bf16.msra.mxu0 %v1238
  %1923 = vmatpush.bf16.msra.mxu0 %v1236
  %1924 = vmatpush.bf16.msra.mxu0 %v1234
  %1925 = vmatpush.bf16.msra.mxu0 %v1232
  %1926 = vmatpush.bf16.msra.mxu0 %v1230
  %1927 = vmatpush.bf16.msra.mxu0 %v1228
  %1928 = vmatpush.bf16.msra.mxu0 %v1226
  %1929 = vmatpush.bf16.msra.mxu0 %v1224
  %1930 = vmatmul.bf16.gmra.mxu0 %v318
  %v1931 = vpop.f32.mrf.mxu0
  %v1932 = vadd.f32 %v1919, %v1931
  %v1933 = vpop.f32.mrf.mxu0
  %1934 = vdwg.mxu0
  %1935 = vmatpush.bf16.msra.mxu0 %v1254
  %1936 = vmatpush.bf16.msra.mxu0 %v1252
  %1937 = vmatpush.bf16.msra.mxu0 %v1250
  %1938 = vmatpush.bf16.msra.mxu0 %v1248
  %1939 = vmatpush.bf16.msra.mxu0 %v1246
  %1940 = vmatpush.bf16.msra.mxu0 %v1244
  %1941 = vmatpush.bf16.msra.mxu0 %v1242
  %1942 = vmatpush.bf16.msra.mxu0 %v1240
  %1943 = vmatmul.bf16.gmra.mxu0 %v319
  %v1944 = vpop.f32.mrf.mxu0
  %v1945 = vadd.f32 %v1932, %v1944
  %v1946 = vpop.f32.mrf.mxu0
  %1947 = vdwg.mxu0
  %1948 = vmatpush.bf16.msra.mxu0 %v1270
  %1949 = vmatpush.bf16.msra.mxu0 %v1268
  %1950 = vmatpush.bf16.msra.mxu0 %v1266
  %1951 = vmatpush.bf16.msra.mxu0 %v1264
  %1952 = vmatpush.bf16.msra.mxu0 %v1262
  %1953 = vmatpush.bf16.msra.mxu0 %v1260
  %1954 = vmatpush.bf16.msra.mxu0 %v1258
  %1955 = vmatpush.bf16.msra.mxu0 %v1256
  %1956 = vmatmul.bf16.gmra.mxu0 %v320
  %v1957 = vpop.f32.mrf.mxu0
  %v1958 = vadd.f32 %v1945, %v1957
  %v1959 = vpop.f32.mrf.mxu0
  %1960 = vdwg.mxu0
  %1961 = vmatpush.bf16.msra.mxu0 %v1286
  %1962 = vmatpush.bf16.msra.mxu0 %v1284
  %1963 = vmatpush.bf16.msra.mxu0 %v1282
  %1964 = vmatpush.bf16.msra.mxu0 %v1280
  %1965 = vmatpush.bf16.msra.mxu0 %v1278
  %1966 = vmatpush.bf16.msra.mxu0 %v1276
  %1967 = vmatpush.bf16.msra.mxu0 %v1274
  %1968 = vmatpush.bf16.msra.mxu0 %v1272
  %1969 = vmatmul.bf16.gmra.mxu0 %v321
  %v1970 = vpop.f32.mrf.mxu0
  %v1971 = vadd.f32 %v1958, %v1970
  %v1972 = vpop.f32.mrf.mxu0
  %1973 = vdwg.mxu0
  %1974 = vmatpush.bf16.msra.mxu0 %v1302
  %1975 = vmatpush.bf16.msra.mxu0 %v1300
  %1976 = vmatpush.bf16.msra.mxu0 %v1298
  %1977 = vmatpush.bf16.msra.mxu0 %v1296
  %1978 = vmatpush.bf16.msra.mxu0 %v1294
  %1979 = vmatpush.bf16.msra.mxu0 %v1292
  %1980 = vmatpush.bf16.msra.mxu0 %v1290
  %1981 = vmatpush.bf16.msra.mxu0 %v1288
  %1982 = vmatmul.bf16.gmra.mxu0 %v322
  %v1983 = vpop.f32.mrf.mxu0
  %v1984 = vadd.f32 %v1971, %v1983
  %v1985 = vpop.f32.mrf.mxu0
  %1986 = vdwg.mxu0
  %1987 = vmatpush.bf16.msra.mxu0 %v1318
  %1988 = vmatpush.bf16.msra.mxu0 %v1316
  %1989 = vmatpush.bf16.msra.mxu0 %v1314
  %1990 = vmatpush.bf16.msra.mxu0 %v1312
  %1991 = vmatpush.bf16.msra.mxu0 %v1310
  %1992 = vmatpush.bf16.msra.mxu0 %v1308
  %1993 = vmatpush.bf16.msra.mxu0 %v1306
  %1994 = vmatpush.bf16.msra.mxu0 %v1304
  %1995 = vmatmul.bf16.gmra.mxu0 %v323
  %v1996 = vpop.f32.mrf.mxu0
  %v1997 = vadd.f32 %v1984, %v1996
  %v1998 = vpop.f32.mrf.mxu0
  %1999 = vdwg.mxu0
  %2000 = vmatpush.bf16.msra.mxu0 %v1334
  %2001 = vmatpush.bf16.msra.mxu0 %v1332
  %2002 = vmatpush.bf16.msra.mxu0 %v1330
  %2003 = vmatpush.bf16.msra.mxu0 %v1328
  %2004 = vmatpush.bf16.msra.mxu0 %v1326
  %2005 = vmatpush.bf16.msra.mxu0 %v1324
  %2006 = vmatpush.bf16.msra.mxu0 %v1322
  %2007 = vmatpush.bf16.msra.mxu0 %v1320
  %2008 = vmatmul.bf16.gmra.mxu0 %v324
  %v2009 = vpop.f32.mrf.mxu0
  %v2010 = vadd.f32 %v1997, %v2009
  %v2011 = vpop.f32.mrf.mxu0
  %2012 = vdwg.mxu0
  %2013 = vmatpush.bf16.msra.mxu0 %v1350
  %2014 = vmatpush.bf16.msra.mxu0 %v1348
  %2015 = vmatpush.bf16.msra.mxu0 %v1346
  %2016 = vmatpush.bf16.msra.mxu0 %v1344
  %2017 = vmatpush.bf16.msra.mxu0 %v1342
  %2018 = vmatpush.bf16.msra.mxu0 %v1340
  %2019 = vmatpush.bf16.msra.mxu0 %v1338
  %2020 = vmatpush.bf16.msra.mxu0 %v1336
  %2021 = vmatmul.bf16.gmra.mxu0 %v325
  %v2022 = vpop.f32.mrf.mxu0
  %v2023 = vadd.f32 %v2010, %v2022
  %v2024 = vpop.f32.mrf.mxu0
  %2025 = vdwg.mxu0
  %2026 = vmatpush.bf16.msra.mxu0 %v1366
  %2027 = vmatpush.bf16.msra.mxu0 %v1364
  %2028 = vmatpush.bf16.msra.mxu0 %v1362
  %2029 = vmatpush.bf16.msra.mxu0 %v1360
  %2030 = vmatpush.bf16.msra.mxu0 %v1358
  %2031 = vmatpush.bf16.msra.mxu0 %v1356
  %2032 = vmatpush.bf16.msra.mxu0 %v1354
  %2033 = vmatpush.bf16.msra.mxu0 %v1352
  %2034 = vmatmul.bf16.gmra.mxu0 %v326
  %v2035 = vpop.f32.mrf.mxu0
  %v2036 = vadd.f32 %v2023, %v2035
  %v2037 = vpop.f32.mrf.mxu0
  %2038 = vdwg.mxu0
  %v2039 = vpack.c.bf16 %v2036, %v1828
  %2040 = vst [vmem:[%s3] sm:$0xff] %v2039
  %v2041 = vrot.slane %v1828, 4
  %v2042 = vadd.f32 %v1828, %v2041
  %v2043 = vrot.slane %v2042, 2
  %v2044 = vadd.f32 %v2042, %v2043
  %v2045 = vrot.slane %v2044, 1
  %v2046 = vadd.f32 %v2044, %v2045
  %v2047 = vrot.slane %v2036, 4
  %v2048 = vadd.f32 %v2036, %v2047
  %v2049 = vrot.slane %v2048, 2
  %v2050 = vadd.f32 %v2048, %v2049
  %v2051 = vrot.slane %v2050, 1
  %v2052 = vadd.f32 %v2050, %v2051
  %v2055 = vrot.slane %v2052, 7
  %vm2056 = vcmask 1040384
  %v2057 = vsel %vm2056, %v2046, %v2055
  %v2059 = vlaneseq
  %vm2060 = vcmp.ge.s32.totalorder %v2059, 0
  %vm2061 = vcmp.lt.s32.totalorder %v2059, 256
  %vm2062 = vmand %vm2060, %vm2061
  %2063 = vst.msk [vmem:[%s4] sm:$0x3] %vm2062, %v2057
  %v2064 = vmul.f32 %v1828, %v1828
  %v2065 = vmul.f32 %v2036, %v2036
  %v2066 = vrot.slane %v2064, 4
  %v2067 = vadd.f32 %v2064, %v2066
  %v2068 = vrot.slane %v2067, 2
  %v2069 = vadd.f32 %v2067, %v2068
  %v2070 = vrot.slane %v2069, 1
  %v2071 = vadd.f32 %v2069, %v2070
  %v2072 = vrot.slane %v2065, 4
  %v2073 = vadd.f32 %v2065, %v2072
  %v2074 = vrot.slane %v2073, 2
  %v2075 = vadd.f32 %v2073, %v2074
  %v2076 = vrot.slane %v2075, 1
  %v2077 = vadd.f32 %v2075, %v2076
  %v2080 = vrot.slane %v2077, 7
  %v2081 = vsel %vm2056, %v2071, %v2080
  %2083 = vst.msk [vmem:[%s5] sm:$0x3] %vm2062, %v2081
  // Predicated region
  $region14: #{discriminator_forward.9} parent=0 // pred_check
    _
  $region15: #{discriminator_forward.9} parent=0 // pred_check_branch
    %2085 = sbr.rel (0) target = $region17
  $region16: #{discriminator_forward.9} parent=0 // pred_region
    _
  $region17: #{discriminator_forward.9} parent=0 // pred_fallthru
    _
  // Predicated region
  $region18: #{discriminator_forward.9} parent=0 // pred_check
    _
  $region19: #{discriminator_forward.9} parent=0 // pred_check_branch
    %2087 = sbr.rel (0) target = $region21
  $region20: #{discriminator_forward.9} parent=0 // pred_region
    _
  $region21: #{discriminator_forward.9} parent=0 // pred_fallthru
    _
  // Predicated region
  $region22: #{discriminator_forward.9} parent=0 // pred_check
    _
  $region23: #{discriminator_forward.9} parent=0 // pred_check_branch
    %2089 = sbr.rel (0) target = $region25
  $region24: #{discriminator_forward.9} parent=0 // pred_region
    _
  $region25: #{discriminator_forward.9} parent=0 // pred_fallthru
    _
  // Predicated region
  $region26: #{discriminator_forward.9} parent=0 // pred_check
    _
  $region27: #{discriminator_forward.9} parent=0 // pred_check_branch
    %2091 = sbr.rel (0) target = $region29
  $region28: #{discriminator_forward.9} parent=0 // pred_region
    _
  $region29: #{discriminator_forward.9} parent=0 // pred_fallthru
    _
  // Predicated region
  $region30: #{discriminator_forward.9} parent=0 // pred_check
    _
  $region31: #{discriminator_forward.9} parent=0 // pred_check_branch
    %2093 = sbr.rel (0) target = $region33
  $region32: #{discriminator_forward.9} parent=0 // pred_region
    _
  $region33: #{discriminator_forward.9} parent=0 // pred_fallthru
    _
  // Predicated region
  $region34: #{discriminator_forward.9} parent=0 // pred_check
    _
  $region35: #{discriminator_forward.9} parent=0 // pred_check_branch
    %2095 = sbr.rel (0) target = $region37
  $region36: #{discriminator_forward.9} parent=0 // pred_region
    _
  $region37: #{discriminator_forward.9} parent=0 // pred_fallthru
    _

// kernel: discriminator_forward.11
$region0: #{discriminator_forward.11}
  #allocation0 [shape = 'u32[]', space=smem, size = 0x4, offset = 0x4, fixed_abs, tag = 'smem constant byte address 0x4 - core index']
  #allocation1 [shape = 'u32[72,128]{1,0:T(1,128)}', space=vmem, size = 0x9000, scoped, tag = 'internal scratch']
  %s0 = inlined_call_operand.vmem [shape: bf16[8,4096], index: 0, kind: input, shape index: {}]
  %s1 = inlined_call_operand.vmem [shape: bf16[4096,128], index: 1, kind: input, shape index: {}]
  %s2 = inlined_call_operand.vmem [shape: f32[1,128], index: 2, kind: input, shape index: {}]
  %s3 = inlined_call_operand.vmem [shape: f32[8,128], index: 3, kind: output, shape index: {}]
  %s4 = sld [smem:[#allocation0]]
  $region22: #{discriminator_forward.11} parent=0
    _
  %s6 = ssub.s32 1, %s4
  %s7 = scalar_select 0, %s6, %s4
  // Predicated region
  $region2: #{discriminator_forward.11} parent=0 // pred_check
    _
  $region3: #{discriminator_forward.11} parent=0 // pred_check_branch
    %9 = sbr.rel (0) target = $region5
  $region4: #{discriminator_forward.11} parent=0 // pred_region
    _
  $region5: #{discriminator_forward.11} parent=0 // pred_fallthru
    _
  // Predicated region
  $region6: #{discriminator_forward.11} parent=0 // pred_check
    _
  $region7: #{discriminator_forward.11} parent=0 // pred_check_branch
    %11 = sbr.rel (0) target = $region9
  $region8: #{discriminator_forward.11} parent=0 // pred_region
    _
  $region9: #{discriminator_forward.11} parent=0 // pred_fallthru
    _
  // Predicated region
  $region10: #{discriminator_forward.11} parent=0 // pred_check
    _
  $region11: #{discriminator_forward.11} parent=0 // pred_check_branch
    %13 = sbr.rel (0) target = $region13
  $region12: #{discriminator_forward.11} parent=0 // pred_region
    _
  $region13: #{discriminator_forward.11} parent=0 // pred_fallthru
    _
  %v14 = vld [vmem:[%s0] sm:$0xff]
  %v15 = vld [vmem:[%s0 + $0x8] sm:$0xff]
  %v16 = vld [vmem:[%s0 + $0x10] sm:$0xff]
  %v17 = vld [vmem:[%s0 + $0x18] sm:$0xff]
  %v18 = vld [vmem:[%s0 + $0x20] sm:$0xff]
  %v19 = vld [vmem:[%s0 + $0x28] sm:$0xff]
  %v20 = vld [vmem:[%s0 + $0x30] sm:$0xff]
  %v21 = vld [vmem:[%s0 + $0x38] sm:$0xff]
  %v22 = vld [vmem:[%s0 + $0x40] sm:$0xff]
  %v23 = vld [vmem:[%s0 + $0x48] sm:$0xff]
  %v24 = vld [vmem:[%s0 + $0x50] sm:$0xff]
  %v25 = vld [vmem:[%s0 + $0x58] sm:$0xff]
  %v26 = vld [vmem:[%s0 + $0x60] sm:$0xff]
  %v27 = vld [vmem:[%s0 + $0x68] sm:$0xff]
  %v28 = vld [vmem:[%s0 + $0x70] sm:$0xff]
  %v29 = vld [vmem:[%s0 + $0x78] sm:$0xff]
  %v30 = vld [vmem:[%s1] sm:$0xf]
  %v31 = vld [vmem:[%s1 + $0x4] sm:$0xf]
  %v32 = vld [vmem:[%s1 + $0x8] sm:$0xf]
  %v33 = vld [vmem:[%s1 + $0xc] sm:$0xf]
  %v34 = vld [vmem:[%s1 + $0x10] sm:$0xf]
  %v35 = vld [vmem:[%s1 + $0x14] sm:$0xf]
  %v36 = vld [vmem:[%s1 + $0x18] sm:$0xf]
  %v37 = vld [vmem:[%s1 + $0x1c] sm:$0xf]
  %v38 = vld [vmem:[%s1 + $0x20] sm:$0xf]
  %v39 = vld [vmem:[%s1 + $0x24] sm:$0xf]
  %v40 = vld [vmem:[%s1 + $0x28] sm:$0xf]
  %v41 = vld [vmem:[%s1 + $0x2c] sm:$0xf]
  %v42 = vld [vmem:[%s1 + $0x30] sm:$0xf]
  %v43 = vld [vmem:[%s1 + $0x34] sm:$0xf]
  %v44 = vld [vmem:[%s1 + $0x38] sm:$0xf]
  %v45 = vld [vmem:[%s1 + $0x3c] sm:$0xf]
  %v46 = vld [vmem:[%s1 + $0x40] sm:$0xf]
  %v47 = vld [vmem:[%s1 + $0x44] sm:$0xf]
  %v48 = vld [vmem:[%s1 + $0x48] sm:$0xf]
  %v49 = vld [vmem:[%s1 + $0x4c] sm:$0xf]
  %v50 = vld [vmem:[%s1 + $0x50] sm:$0xf]
  %v51 = vld [vmem:[%s1 + $0x54] sm:$0xf]
  %v52 = vld [vmem:[%s1 + $0x58] sm:$0xf]
  %v53 = vld [vmem:[%s1 + $0x5c] sm:$0xf]
  %v54 = vld [vmem:[%s1 + $0x60] sm:$0xf]
  %v55 = vld [vmem:[%s1 + $0x64] sm:$0xf]
  %v56 = vld [vmem:[%s1 + $0x68] sm:$0xf]
  %v57 = vld [vmem:[%s1 + $0x6c] sm:$0xf]
  %v58 = vld [vmem:[%s1 + $0x70] sm:$0xf]
  %v59 = vld [vmem:[%s1 + $0x74] sm:$0xf]
  %v60 = vld [vmem:[%s1 + $0x78] sm:$0xf]
  %v61 = vld [vmem:[%s1 + $0x7c] sm:$0xf]
  %v62 = vld [vmem:[%s1 + $0x80] sm:$0xf]
  %v63 = vld [vmem:[%s1 + $0x84] sm:$0xf]
  %v64 = vld [vmem:[%s1 + $0x88] sm:$0xf]
  %v65 = vld [vmem:[%s1 + $0x8c] sm:$0xf]
  %v66 = vld [vmem:[%s1 + $0x90] sm:$0xf]
  %v67 = vld [vmem:[%s1 + $0x94] sm:$0xf]
  %v68 = vld [vmem:[%s1 + $0x98] sm:$0xf]
  %v69 = vld [vmem:[%s1 + $0x9c] sm:$0xf]
  %v70 = vld [vmem:[%s1 + $0xa0] sm:$0xf]
  %v71 = vld [vmem:[%s1 + $0xa4] sm:$0xf]
  %v72 = vld [vmem:[%s1 + $0xa8] sm:$0xf]
  %v73 = vld [vmem:[%s1 + $0xac] sm:$0xf]
  %v74 = vld [vmem:[%s1 + $0xb0] sm:$0xf]
  %v75 = vld [vmem:[%s1 + $0xb4] sm:$0xf]
  %v76 = vld [vmem:[%s1 + $0xb8] sm:$0xf]
  %v77 = vld [vmem:[%s1 + $0xbc] sm:$0xf]
  %v78 = vld [vmem:[%s1 + $0xc0] sm:$0xf]
  %v79 = vld [vmem:[%s1 + $0xc4] sm:$0xf]
  %v80 = vld [vmem:[%s1 + $0xc8] sm:$0xf]
  %v81 = vld [vmem:[%s1 + $0xcc] sm:$0xf]
  %v82 = vld [vmem:[%s1 + $0xd0] sm:$0xf]
  %v83 = vld [vmem:[%s1 + $0xd4] sm:$0xf]
  %v84 = vld [vmem:[%s1 + $0xd8] sm:$0xf]
  %v85 = vld [vmem:[%s1 + $0xdc] sm:$0xf]
  %v86 = vld [vmem:[%s1 + $0xe0] sm:$0xf]
  %v87 = vld [vmem:[%s1 + $0xe4] sm:$0xf]
  %v88 = vld [vmem:[%s1 + $0xe8] sm:$0xf]
  %v89 = vld [vmem:[%s1 + $0xec] sm:$0xf]
  %v90 = vld [vmem:[%s1 + $0xf0] sm:$0xf]
  %v91 = vld [vmem:[%s1 + $0xf4] sm:$0xf]
  %v92 = vld [vmem:[%s1 + $0xf8] sm:$0xf]
  %v93 = vld [vmem:[%s1 + $0xfc] sm:$0xf]
  %v94 = vld [vmem:[%s1 + $0x100] sm:$0xf]
  %v95 = vld [vmem:[%s1 + $0x104] sm:$0xf]
  %v96 = vld [vmem:[%s1 + $0x108] sm:$0xf]
  %v97 = vld [vmem:[%s1 + $0x10c] sm:$0xf]
  %v98 = vld [vmem:[%s1 + $0x110] sm:$0xf]
  %v99 = vld [vmem:[%s1 + $0x114] sm:$0xf]
  %v100 = vld [vmem:[%s1 + $0x118] sm:$0xf]
  %v101 = vld [vmem:[%s1 + $0x11c] sm:$0xf]
  %v102 = vld [vmem:[%s1 + $0x120] sm:$0xf]
  %v103 = vld [vmem:[%s1 + $0x124] sm:$0xf]
  %v104 = vld [vmem:[%s1 + $0x128] sm:$0xf]
  %v105 = vld [vmem:[%s1 + $0x12c] sm:$0xf]
  %v106 = vld [vmem:[%s1 + $0x130] sm:$0xf]
  %v107 = vld [vmem:[%s1 + $0x134] sm:$0xf]
  %v108 = vld [vmem:[%s1 + $0x138] sm:$0xf]
  %v109 = vld [vmem:[%s1 + $0x13c] sm:$0xf]
  %v110 = vld [vmem:[%s1 + $0x140] sm:$0xf]
  %v111 = vld [vmem:[%s1 + $0x144] sm:$0xf]
  %v112 = vld [vmem:[%s1 + $0x148] sm:$0xf]
  %v113 = vld [vmem:[%s1 + $0x14c] sm:$0xf]
  %v114 = vld [vmem:[%s1 + $0x150] sm:$0xf]
  %v115 = vld [vmem:[%s1 + $0x154] sm:$0xf]
  %v116 = vld [vmem:[%s1 + $0x158] sm:$0xf]
  %v117 = vld [vmem:[%s1 + $0x15c] sm:$0xf]
  %v118 = vld [vmem:[%s1 + $0x160] sm:$0xf]
  %v119 = vld [vmem:[%s1 + $0x164] sm:$0xf]
  %v120 = vld [vmem:[%s1 + $0x168] sm:$0xf]
  %v121 = vld [vmem:[%s1 + $0x16c] sm:$0xf]
  %v122 = vld [vmem:[%s1 + $0x170] sm:$0xf]
  %v123 = vld [vmem:[%s1 + $0x174] sm:$0xf]
  %v124 = vld [vmem:[%s1 + $0x178] sm:$0xf]
  %v125 = vld [vmem:[%s1 + $0x17c] sm:$0xf]
  %v126 = vld [vmem:[%s1 + $0x180] sm:$0xf]
  %v127 = vld [vmem:[%s1 + $0x184] sm:$0xf]
  %v128 = vld [vmem:[%s1 + $0x188] sm:$0xf]
  %v129 = vld [vmem:[%s1 + $0x18c] sm:$0xf]
  %v130 = vld [vmem:[%s1 + $0x190] sm:$0xf]
  %v131 = vld [vmem:[%s1 + $0x194] sm:$0xf]
  %v132 = vld [vmem:[%s1 + $0x198] sm:$0xf]
  %v133 = vld [vmem:[%s1 + $0x19c] sm:$0xf]
  %v134 = vld [vmem:[%s1 + $0x1a0] sm:$0xf]
  %v135 = vld [vmem:[%s1 + $0x1a4] sm:$0xf]
  %v136 = vld [vmem:[%s1 + $0x1a8] sm:$0xf]
  %v137 = vld [vmem:[%s1 + $0x1ac] sm:$0xf]
  %v138 = vld [vmem:[%s1 + $0x1b0] sm:$0xf]
  %v139 = vld [vmem:[%s1 + $0x1b4] sm:$0xf]
  %v140 = vld [vmem:[%s1 + $0x1b8] sm:$0xf]
  %v141 = vld [vmem:[%s1 + $0x1bc] sm:$0xf]
  %v142 = vld [vmem:[%s1 + $0x1c0] sm:$0xf]
  %v143 = vld [vmem:[%s1 + $0x1c4] sm:$0xf]
  %v144 = vld [vmem:[%s1 + $0x1c8] sm:$0xf]
  %v145 = vld [vmem:[%s1 + $0x1cc] sm:$0xf]
  %v146 = vld [vmem:[%s1 + $0x1d0] sm:$0xf]
  %v147 = vld [vmem:[%s1 + $0x1d4] sm:$0xf]
  %v148 = vld [vmem:[%s1 + $0x1d8] sm:$0xf]
  %v149 = vld [vmem:[%s1 + $0x1dc] sm:$0xf]
  %v150 = vld [vmem:[%s1 + $0x1e0] sm:$0xf]
  %v151 = vld [vmem:[%s1 + $0x1e4] sm:$0xf]
  %v152 = vld [vmem:[%s1 + $0x1e8] sm:$0xf]
  %v153 = vld [vmem:[%s1 + $0x1ec] sm:$0xf]
  %v154 = vld [vmem:[%s1 + $0x1f0] sm:$0xf]
  %v155 = vld [vmem:[%s1 + $0x1f4] sm:$0xf]
  %v156 = vld [vmem:[%s1 + $0x1f8] sm:$0xf]
  %v157 = vld [vmem:[%s1 + $0x1fc] sm:$0xf]
  %v158 = vld [vmem:[%s1 + $0x200] sm:$0xf]
  %v159 = vld [vmem:[%s1 + $0x204] sm:$0xf]
  %v160 = vld [vmem:[%s1 + $0x208] sm:$0xf]
  %v161 = vld [vmem:[%s1 + $0x20c] sm:$0xf]
  %v162 = vld [vmem:[%s1 + $0x210] sm:$0xf]
  %v163 = vld [vmem:[%s1 + $0x214] sm:$0xf]
  %v164 = vld [vmem:[%s1 + $0x218] sm:$0xf]
  %v165 = vld [vmem:[%s1 + $0x21c] sm:$0xf]
  %v166 = vld [vmem:[%s1 + $0x220] sm:$0xf]
  %v167 = vld [vmem:[%s1 + $0x224] sm:$0xf]
  %v168 = vld [vmem:[%s1 + $0x228] sm:$0xf]
  %v169 = vld [vmem:[%s1 + $0x22c] sm:$0xf]
  %v170 = vld [vmem:[%s1 + $0x230] sm:$0xf]
  %v171 = vld [vmem:[%s1 + $0x234] sm:$0xf]
  %v172 = vld [vmem:[%s1 + $0x238] sm:$0xf]
  %v173 = vld [vmem:[%s1 + $0x23c] sm:$0xf]
  %v174 = vld [vmem:[%s1 + $0x240] sm:$0xf]
  %v175 = vld [vmem:[%s1 + $0x244] sm:$0xf]
  %v176 = vld [vmem:[%s1 + $0x248] sm:$0xf]
  %v177 = vld [vmem:[%s1 + $0x24c] sm:$0xf]
  %v178 = vld [vmem:[%s1 + $0x250] sm:$0xf]
  %v179 = vld [vmem:[%s1 + $0x254] sm:$0xf]
  %v180 = vld [vmem:[%s1 + $0x258] sm:$0xf]
  %v181 = vld [vmem:[%s1 + $0x25c] sm:$0xf]
  %v182 = vld [vmem:[%s1 + $0x260] sm:$0xf]
  %v183 = vld [vmem:[%s1 + $0x264] sm:$0xf]
  %v184 = vld [vmem:[%s1 + $0x268] sm:$0xf]
  %v185 = vld [vmem:[%s1 + $0x26c] sm:$0xf]
  %v186 = vld [vmem:[%s1 + $0x270] sm:$0xf]
  %v187 = vld [vmem:[%s1 + $0x274] sm:$0xf]
  %v188 = vld [vmem:[%s1 + $0x278] sm:$0xf]
  %v189 = vld [vmem:[%s1 + $0x27c] sm:$0xf]
  %v190 = vld [vmem:[%s1 + $0x280] sm:$0xf]
  %v191 = vld [vmem:[%s1 + $0x284] sm:$0xf]
  %v192 = vld [vmem:[%s1 + $0x288] sm:$0xf]
  %v193 = vld [vmem:[%s1 + $0x28c] sm:$0xf]
  %v194 = vld [vmem:[%s1 + $0x290] sm:$0xf]
  %v195 = vld [vmem:[%s1 + $0x294] sm:$0xf]
  %v196 = vld [vmem:[%s1 + $0x298] sm:$0xf]
  %v197 = vld [vmem:[%s1 + $0x29c] sm:$0xf]
  %v198 = vld [vmem:[%s1 + $0x2a0] sm:$0xf]
  %v199 = vld [vmem:[%s1 + $0x2a4] sm:$0xf]
  %v200 = vld [vmem:[%s1 + $0x2a8] sm:$0xf]
  %v201 = vld [vmem:[%s1 + $0x2ac] sm:$0xf]
  %v202 = vld [vmem:[%s1 + $0x2b0] sm:$0xf]
  %v203 = vld [vmem:[%s1 + $0x2b4] sm:$0xf]
  %v204 = vld [vmem:[%s1 + $0x2b8] sm:$0xf]
  %v205 = vld [vmem:[%s1 + $0x2bc] sm:$0xf]
  %v206 = vld [vmem:[%s1 + $0x2c0] sm:$0xf]
  %v207 = vld [vmem:[%s1 + $0x2c4] sm:$0xf]
  %v208 = vld [vmem:[%s1 + $0x2c8] sm:$0xf]
  %v209 = vld [vmem:[%s1 + $0x2cc] sm:$0xf]
  %v210 = vld [vmem:[%s1 + $0x2d0] sm:$0xf]
  %v211 = vld [vmem:[%s1 + $0x2d4] sm:$0xf]
  %v212 = vld [vmem:[%s1 + $0x2d8] sm:$0xf]
  %v213 = vld [vmem:[%s1 + $0x2dc] sm:$0xf]
  %v214 = vld [vmem:[%s1 + $0x2e0] sm:$0xf]
  %v215 = vld [vmem:[%s1 + $0x2e4] sm:$0xf]
  %v216 = vld [vmem:[%s1 + $0x2e8] sm:$0xf]
  %v217 = vld [vmem:[%s1 + $0x2ec] sm:$0xf]
  %v218 = vld [vmem:[%s1 + $0x2f0] sm:$0xf]
  %v219 = vld [vmem:[%s1 + $0x2f4] sm:$0xf]
  %v220 = vld [vmem:[%s1 + $0x2f8] sm:$0xf]
  %v221 = vld [vmem:[%s1 + $0x2fc] sm:$0xf]
  %v222 = vld [vmem:[%s1 + $0x300] sm:$0xf]
  %v223 = vld [vmem:[%s1 + $0x304] sm:$0xf]
  %v224 = vld [vmem:[%s1 + $0x308] sm:$0xf]
  %v225 = vld [vmem:[%s1 + $0x30c] sm:$0xf]
  %v226 = vld [vmem:[%s1 + $0x310] sm:$0xf]
  %v227 = vld [vmem:[%s1 + $0x314] sm:$0xf]
  %v228 = vld [vmem:[%s1 + $0x318] sm:$0xf]
  %v229 = vld [vmem:[%s1 + $0x31c] sm:$0xf]
  %v230 = vld [vmem:[%s1 + $0x320] sm:$0xf]
  %v231 = vld [vmem:[%s1 + $0x324] sm:$0xf]
  %v232 = vld [vmem:[%s1 + $0x328] sm:$0xf]
  %v233 = vld [vmem:[%s1 + $0x32c] sm:$0xf]
  %v234 = vld [vmem:[%s1 + $0x330] sm:$0xf]
  %v235 = vld [vmem:[%s1 + $0x334] sm:$0xf]
  %v236 = vld [vmem:[%s1 + $0x338] sm:$0xf]
  %v237 = vld [vmem:[%s1 + $0x33c] sm:$0xf]
  %v238 = vld [vmem:[%s1 + $0x340] sm:$0xf]
  %v239 = vld [vmem:[%s1 + $0x344] sm:$0xf]
  %v240 = vld [vmem:[%s1 + $0x348] sm:$0xf]
  %v241 = vld [vmem:[%s1 + $0x34c] sm:$0xf]
  %v242 = vld [vmem:[%s1 + $0x350] sm:$0xf]
  %v243 = vld [vmem:[%s1 + $0x354] sm:$0xf]
  %v244 = vld [vmem:[%s1 + $0x358] sm:$0xf]
  %v245 = vld [vmem:[%s1 + $0x35c] sm:$0xf]
  %v246 = vld [vmem:[%s1 + $0x360] sm:$0xf]
  %v247 = vld [vmem:[%s1 + $0x364] sm:$0xf]
  %v248 = vld [vmem:[%s1 + $0x368] sm:$0xf]
  %v249 = vld [vmem:[%s1 + $0x36c] sm:$0xf]
  %v250 = vld [vmem:[%s1 + $0x370] sm:$0xf]
  %v251 = vld [vmem:[%s1 + $0x374] sm:$0xf]
  %v252 = vld [vmem:[%s1 + $0x378] sm:$0xf]
  %v253 = vld [vmem:[%s1 + $0x37c] sm:$0xf]
  %v254 = vld [vmem:[%s1 + $0x380] sm:$0xf]
  %v255 = vld [vmem:[%s1 + $0x384] sm:$0xf]
  %v256 = vld [vmem:[%s1 + $0x388] sm:$0xf]
  %v257 = vld [vmem:[%s1 + $0x38c] sm:$0xf]
  %v258 = vld [vmem:[%s1 + $0x390] sm:$0xf]
  %v259 = vld [vmem:[%s1 + $0x394] sm:$0xf]
  %v260 = vld [vmem:[%s1 + $0x398] sm:$0xf]
  %v261 = vld [vmem:[%s1 + $0x39c] sm:$0xf]
  %v262 = vld [vmem:[%s1 + $0x3a0] sm:$0xf]
  %v263 = vld [vmem:[%s1 + $0x3a4] sm:$0xf]
  %v264 = vld [vmem:[%s1 + $0x3a8] sm:$0xf]
  %v265 = vld [vmem:[%s1 + $0x3ac] sm:$0xf]
  %v266 = vld [vmem:[%s1 + $0x3b0] sm:$0xf]
  %v267 = vld [vmem:[%s1 + $0x3b4] sm:$0xf]
  %v268 = vld [vmem:[%s1 + $0x3b8] sm:$0xf]
  %v269 = vld [vmem:[%s1 + $0x3bc] sm:$0xf]
  %v270 = vld [vmem:[%s1 + $0x3c0] sm:$0xf]
  %v271 = vld [vmem:[%s1 + $0x3c4] sm:$0xf]
  %v272 = vld [vmem:[%s1 + $0x3c8] sm:$0xf]
  %v273 = vld [vmem:[%s1 + $0x3cc] sm:$0xf]
  %v274 = vld [vmem:[%s1 + $0x3d0] sm:$0xf]
  %v275 = vld [vmem:[%s1 + $0x3d4] sm:$0xf]
  %v276 = vld [vmem:[%s1 + $0x3d8] sm:$0xf]
  %v277 = vld [vmem:[%s1 + $0x3dc] sm:$0xf]
  %v278 = vld [vmem:[%s1 + $0x3e0] sm:$0xf]
  %v279 = vld [vmem:[%s1 + $0x3e4] sm:$0xf]
  %v280 = vld [vmem:[%s1 + $0x3e8] sm:$0xf]
  %v281 = vld [vmem:[%s1 + $0x3ec] sm:$0xf]
  %v282 = vld [vmem:[%s1 + $0x3f0] sm:$0xf]
  %v283 = vld [vmem:[%s1 + $0x3f4] sm:$0xf]
  %v284 = vld [vmem:[%s1 + $0x3f8] sm:$0xf]
  %v285 = vld [vmem:[%s1 + $0x3fc] sm:$0xf]
  %v286 = vld [vmem:[%s1 + $0x400] sm:$0xf]
  %v287 = vld [vmem:[%s1 + $0x404] sm:$0xf]
  %v288 = vld [vmem:[%s1 + $0x408] sm:$0xf]
  %v289 = vld [vmem:[%s1 + $0x40c] sm:$0xf]
  %v290 = vld [vmem:[%s1 + $0x410] sm:$0xf]
  %v291 = vld [vmem:[%s1 + $0x414] sm:$0xf]
  %v292 = vld [vmem:[%s1 + $0x418] sm:$0xf]
  %v293 = vld [vmem:[%s1 + $0x41c] sm:$0xf]
  %v294 = vld [vmem:[%s1 + $0x420] sm:$0xf]
  %v295 = vld [vmem:[%s1 + $0x424] sm:$0xf]
  %v296 = vld [vmem:[%s1 + $0x428] sm:$0xf]
  %v297 = vld [vmem:[%s1 + $0x42c] sm:$0xf]
  %v298 = vld [vmem:[%s1 + $0x430] sm:$0xf]
  %v299 = vld [vmem:[%s1 + $0x434] sm:$0xf]
  %v300 = vld [vmem:[%s1 + $0x438] sm:$0xf]
  %v301 = vld [vmem:[%s1 + $0x43c] sm:$0xf]
  %v302 = vld [vmem:[%s1 + $0x440] sm:$0xf]
  %v303 = vld [vmem:[%s1 + $0x444] sm:$0xf]
  %v304 = vld [vmem:[%s1 + $0x448] sm:$0xf]
  %v305 = vld [vmem:[%s1 + $0x44c] sm:$0xf]
  %v306 = vld [vmem:[%s1 + $0x450] sm:$0xf]
  %v307 = vld [vmem:[%s1 + $0x454] sm:$0xf]
  %v308 = vld [vmem:[%s1 + $0x458] sm:$0xf]
  %v309 = vld [vmem:[%s1 + $0x45c] sm:$0xf]
  %v310 = vld [vmem:[%s1 + $0x460] sm:$0xf]
  %v311 = vld [vmem:[%s1 + $0x464] sm:$0xf]
  %v312 = vld [vmem:[%s1 + $0x468] sm:$0xf]
  %v313 = vld [vmem:[%s1 + $0x46c] sm:$0xf]
  %v314 = vld [vmem:[%s1 + $0x470] sm:$0xf]
  %v315 = vld [vmem:[%s1 + $0x474] sm:$0xf]
  %v316 = vld [vmem:[%s1 + $0x478] sm:$0xf]
  %v317 = vld [vmem:[%s1 + $0x47c] sm:$0xf]
  %v318 = vld [vmem:[%s1 + $0x480] sm:$0xf]
  %v319 = vld [vmem:[%s1 + $0x484] sm:$0xf]
  %v320 = vld [vmem:[%s1 + $0x488] sm:$0xf]
  %v321 = vld [vmem:[%s1 + $0x48c] sm:$0xf]
  %v322 = vld [vmem:[%s1 + $0x490] sm:$0xf]
  %v323 = vld [vmem:[%s1 + $0x494] sm:$0xf]
  %v324 = vld [vmem:[%s1 + $0x498] sm:$0xf]
  %v325 = vld [vmem:[%s1 + $0x49c] sm:$0xf]
  %v326 = vld [vmem:[%s1 + $0x4a0] sm:$0xf]
  %v327 = vld [vmem:[%s1 + $0x4a4] sm:$0xf]
  %v328 = vld [vmem:[%s1 + $0x4a8] sm:$0xf]
  %v329 = vld [vmem:[%s1 + $0x4ac] sm:$0xf]
  %v330 = vld [vmem:[%s1 + $0x4b0] sm:$0xf]
  %v331 = vld [vmem:[%s1 + $0x4b4] sm:$0xf]
  %v332 = vld [vmem:[%s1 + $0x4b8] sm:$0xf]
  %v333 = vld [vmem:[%s1 + $0x4bc] sm:$0xf]
  %v334 = vld [vmem:[%s1 + $0x4c0] sm:$0xf]
  %v335 = vld [vmem:[%s1 + $0x4c4] sm:$0xf]
  %v336 = vld [vmem:[%s1 + $0x4c8] sm:$0xf]
  %v337 = vld [vmem:[%s1 + $0x4cc] sm:$0xf]
  %v338 = vld [vmem:[%s1 + $0x4d0] sm:$0xf]
  %v339 = vld [vmem:[%s1 + $0x4d4] sm:$0xf]
  %v340 = vld [vmem:[%s1 + $0x4d8] sm:$0xf]
  %v341 = vld [vmem:[%s1 + $0x4dc] sm:$0xf]
  %v342 = vld [vmem:[%s1 + $0x4e0] sm:$0xf]
  %v343 = vld [vmem:[%s1 + $0x4e4] sm:$0xf]
  %v344 = vld [vmem:[%s1 + $0x4e8] sm:$0xf]
  %v345 = vld [vmem:[%s1 + $0x4ec] sm:$0xf]
  %v346 = vld [vmem:[%s1 + $0x4f0] sm:$0xf]
  %v347 = vld [vmem:[%s1 + $0x4f4] sm:$0xf]
  %v348 = vld [vmem:[%s1 + $0x4f8] sm:$0xf]
  %v349 = vld [vmem:[%s1 + $0x4fc] sm:$0xf]
  %v350 = vld [vmem:[%s1 + $0x500] sm:$0xf]
  %v351 = vld [vmem:[%s1 + $0x504] sm:$0xf]
  %v352 = vld [vmem:[%s1 + $0x508] sm:$0xf]
  %v353 = vld [vmem:[%s1 + $0x50c] sm:$0xf]
  %v354 = vld [vmem:[%s1 + $0x510] sm:$0xf]
  %v355 = vld [vmem:[%s1 + $0x514] sm:$0xf]
  %v356 = vld [vmem:[%s1 + $0x518] sm:$0xf]
  %v357 = vld [vmem:[%s1 + $0x51c] sm:$0xf]
  %v358 = vld [vmem:[%s1 + $0x520] sm:$0xf]
  %v359 = vld [vmem:[%s1 + $0x524] sm:$0xf]
  %v360 = vld [vmem:[%s1 + $0x528] sm:$0xf]
  %v361 = vld [vmem:[%s1 + $0x52c] sm:$0xf]
  %v362 = vld [vmem:[%s1 + $0x530] sm:$0xf]
  %v363 = vld [vmem:[%s1 + $0x534] sm:$0xf]
  %v364 = vld [vmem:[%s1 + $0x538] sm:$0xf]
  %v365 = vld [vmem:[%s1 + $0x53c] sm:$0xf]
  %v366 = vld [vmem:[%s1 + $0x540] sm:$0xf]
  %v367 = vld [vmem:[%s1 + $0x544] sm:$0xf]
  %v368 = vld [vmem:[%s1 + $0x548] sm:$0xf]
  %v369 = vld [vmem:[%s1 + $0x54c] sm:$0xf]
  %v370 = vld [vmem:[%s1 + $0x550] sm:$0xf]
  %v371 = vld [vmem:[%s1 + $0x554] sm:$0xf]
  %v372 = vld [vmem:[%s1 + $0x558] sm:$0xf]
  %v373 = vld [vmem:[%s1 + $0x55c] sm:$0xf]
  %v374 = vld [vmem:[%s1 + $0x560] sm:$0xf]
  %v375 = vld [vmem:[%s1 + $0x564] sm:$0xf]
  %v376 = vld [vmem:[%s1 + $0x568] sm:$0xf]
  %v377 = vld [vmem:[%s1 + $0x56c] sm:$0xf]
  %v378 = vld [vmem:[%s1 + $0x570] sm:$0xf]
  %v379 = vld [vmem:[%s1 + $0x574] sm:$0xf]
  %v380 = vld [vmem:[%s1 + $0x578] sm:$0xf]
  %v381 = vld [vmem:[%s1 + $0x57c] sm:$0xf]
  %v382 = vld [vmem:[%s1 + $0x580] sm:$0xf]
  %v383 = vld [vmem:[%s1 + $0x584] sm:$0xf]
  %v384 = vld [vmem:[%s1 + $0x588] sm:$0xf]
  %v385 = vld [vmem:[%s1 + $0x58c] sm:$0xf]
  %v386 = vld [vmem:[%s1 + $0x590] sm:$0xf]
  %v387 = vld [vmem:[%s1 + $0x594] sm:$0xf]
  %v388 = vld [vmem:[%s1 + $0x598] sm:$0xf]
  %v389 = vld [vmem:[%s1 + $0x59c] sm:$0xf]
  %v390 = vld [vmem:[%s1 + $0x5a0] sm:$0xf]
  %v391 = vld [vmem:[%s1 + $0x5a4] sm:$0xf]
  %v392 = vld [vmem:[%s1 + $0x5a8] sm:$0xf]
  %v393 = vld [vmem:[%s1 + $0x5ac] sm:$0xf]
  %v394 = vld [vmem:[%s1 + $0x5b0] sm:$0xf]
  %v395 = vld [vmem:[%s1 + $0x5b4] sm:$0xf]
  %v396 = vld [vmem:[%s1 + $0x5b8] sm:$0xf]
  %v397 = vld [vmem:[%s1 + $0x5bc] sm:$0xf]
  %v398 = vld [vmem:[%s1 + $0x5c0] sm:$0xf]
  %v399 = vld [vmem:[%s1 + $0x5c4] sm:$0xf]
  %v400 = vld [vmem:[%s1 + $0x5c8] sm:$0xf]
  %v401 = vld [vmem:[%s1 + $0x5cc] sm:$0xf]
  %v402 = vld [vmem:[%s1 + $0x5d0] sm:$0xf]
  %v403 = vld [vmem:[%s1 + $0x5d4] sm:$0xf]
  %v404 = vld [vmem:[%s1 + $0x5d8] sm:$0xf]
  %v405 = vld [vmem:[%s1 + $0x5dc] sm:$0xf]
  %v406 = vld [vmem:[%s1 + $0x5e0] sm:$0xf]
  %v407 = vld [vmem:[%s1 + $0x5e4] sm:$0xf]
  %v408 = vld [vmem:[%s1 + $0x5e8] sm:$0xf]
  %v409 = vld [vmem:[%s1 + $0x5ec] sm:$0xf]
  %v410 = vld [vmem:[%s1 + $0x5f0] sm:$0xf]
  %v411 = vld [vmem:[%s1 + $0x5f4] sm:$0xf]
  %v412 = vld [vmem:[%s1 + $0x5f8] sm:$0xf]
  %v413 = vld [vmem:[%s1 + $0x5fc] sm:$0xf]
  %v414 = vld [vmem:[%s1 + $0x600] sm:$0xf]
  %v415 = vld [vmem:[%s1 + $0x604] sm:$0xf]
  %v416 = vld [vmem:[%s1 + $0x608] sm:$0xf]
  %v417 = vld [vmem:[%s1 + $0x60c] sm:$0xf]
  %v418 = vld [vmem:[%s1 + $0x610] sm:$0xf]
  %v419 = vld [vmem:[%s1 + $0x614] sm:$0xf]
  %v420 = vld [vmem:[%s1 + $0x618] sm:$0xf]
  %v421 = vld [vmem:[%s1 + $0x61c] sm:$0xf]
  %v422 = vld [vmem:[%s1 + $0x620] sm:$0xf]
  %v423 = vld [vmem:[%s1 + $0x624] sm:$0xf]
  %v424 = vld [vmem:[%s1 + $0x628] sm:$0xf]
  %v425 = vld [vmem:[%s1 + $0x62c] sm:$0xf]
  %v426 = vld [vmem:[%s1 + $0x630] sm:$0xf]
  %v427 = vld [vmem:[%s1 + $0x634] sm:$0xf]
  %v428 = vld [vmem:[%s1 + $0x638] sm:$0xf]
  %v429 = vld [vmem:[%s1 + $0x63c] sm:$0xf]
  %v430 = vld [vmem:[%s1 + $0x640] sm:$0xf]
  %v431 = vld [vmem:[%s1 + $0x644] sm:$0xf]
  %v432 = vld [vmem:[%s1 + $0x648] sm:$0xf]
  %v433 = vld [vmem:[%s1 + $0x64c] sm:$0xf]
  %v434 = vld [vmem:[%s1 + $0x650] sm:$0xf]
  %v435 = vld [vmem:[%s1 + $0x654] sm:$0xf]
  %v436 = vld [vmem:[%s1 + $0x658] sm:$0xf]
  %v437 = vld [vmem:[%s1 + $0x65c] sm:$0xf]
  %v438 = vld [vmem:[%s1 + $0x660] sm:$0xf]
  %v439 = vld [vmem:[%s1 + $0x664] sm:$0xf]
  %v440 = vld [vmem:[%s1 + $0x668] sm:$0xf]
  %v441 = vld [vmem:[%s1 + $0x66c] sm:$0xf]
  %v442 = vld [vmem:[%s1 + $0x670] sm:$0xf]
  %v443 = vld [vmem:[%s1 + $0x674] sm:$0xf]
  %v444 = vld [vmem:[%s1 + $0x678] sm:$0xf]
  %v445 = vld [vmem:[%s1 + $0x67c] sm:$0xf]
  %v446 = vld [vmem:[%s1 + $0x680] sm:$0xf]
  %v447 = vld [vmem:[%s1 + $0x684] sm:$0xf]
  %v448 = vld [vmem:[%s1 + $0x688] sm:$0xf]
  %v449 = vld [vmem:[%s1 + $0x68c] sm:$0xf]
  %v450 = vld [vmem:[%s1 + $0x690] sm:$0xf]
  %v451 = vld [vmem:[%s1 + $0x694] sm:$0xf]
  %v452 = vld [vmem:[%s1 + $0x698] sm:$0xf]
  %v453 = vld [vmem:[%s1 + $0x69c] sm:$0xf]
  %v454 = vld [vmem:[%s1 + $0x6a0] sm:$0xf]
  %v455 = vld [vmem:[%s1 + $0x6a4] sm:$0xf]
  %v456 = vld [vmem:[%s1 + $0x6a8] sm:$0xf]
  %v457 = vld [vmem:[%s1 + $0x6ac] sm:$0xf]
  %v458 = vld [vmem:[%s1 + $0x6b0] sm:$0xf]
  %v459 = vld [vmem:[%s1 + $0x6b4] sm:$0xf]
  %v460 = vld [vmem:[%s1 + $0x6b8] sm:$0xf]
  %v461 = vld [vmem:[%s1 + $0x6bc] sm:$0xf]
  %v462 = vld [vmem:[%s1 + $0x6c0] sm:$0xf]
  %v463 = vld [vmem:[%s1 + $0x6c4] sm:$0xf]
  %v464 = vld [vmem:[%s1 + $0x6c8] sm:$0xf]
  %v465 = vld [vmem:[%s1 + $0x6cc] sm:$0xf]
  %v466 = vld [vmem:[%s1 + $0x6d0] sm:$0xf]
  %v467 = vld [vmem:[%s1 + $0x6d4] sm:$0xf]
  %v468 = vld [vmem:[%s1 + $0x6d8] sm:$0xf]
  %v469 = vld [vmem:[%s1 + $0x6dc] sm:$0xf]
  %v470 = vld [vmem:[%s1 + $0x6e0] sm:$0xf]
  %v471 = vld [vmem:[%s1 + $0x6e4] sm:$0xf]
  %v472 = vld [vmem:[%s1 + $0x6e8] sm:$0xf]
  %v473 = vld [vmem:[%s1 + $0x6ec] sm:$0xf]
  %v474 = vld [vmem:[%s1 + $0x6f0] sm:$0xf]
  %v475 = vld [vmem:[%s1 + $0x6f4] sm:$0xf]
  %v476 = vld [vmem:[%s1 + $0x6f8] sm:$0xf]
  %v477 = vld [vmem:[%s1 + $0x6fc] sm:$0xf]
  %v478 = vld [vmem:[%s1 + $0x700] sm:$0xf]
  %v479 = vld [vmem:[%s1 + $0x704] sm:$0xf]
  %v480 = vld [vmem:[%s1 + $0x708] sm:$0xf]
  %v481 = vld [vmem:[%s1 + $0x70c] sm:$0xf]
  %v482 = vld [vmem:[%s1 + $0x710] sm:$0xf]
  %v483 = vld [vmem:[%s1 + $0x714] sm:$0xf]
  %v484 = vld [vmem:[%s1 + $0x718] sm:$0xf]
  %v485 = vld [vmem:[%s1 + $0x71c] sm:$0xf]
  %v486 = vld [vmem:[%s1 + $0x720] sm:$0xf]
  %v487 = vld [vmem:[%s1 + $0x724] sm:$0xf]
  %v488 = vld [vmem:[%s1 + $0x728] sm:$0xf]
  %v489 = vld [vmem:[%s1 + $0x72c] sm:$0xf]
  %v490 = vld [vmem:[%s1 + $0x730] sm:$0xf]
  %v491 = vld [vmem:[%s1 + $0x734] sm:$0xf]
  %v492 = vld [vmem:[%s1 + $0x738] sm:$0xf]
  %v493 = vld [vmem:[%s1 + $0x73c] sm:$0xf]
  %v494 = vld [vmem:[%s1 + $0x740] sm:$0xf]
  %v495 = vld [vmem:[%s1 + $0x744] sm:$0xf]
  %v496 = vld [vmem:[%s1 + $0x748] sm:$0xf]
  %v497 = vld [vmem:[%s1 + $0x74c] sm:$0xf]
  %v498 = vld [vmem:[%s1 + $0x750] sm:$0xf]
  %v499 = vld [vmem:[%s1 + $0x754] sm:$0xf]
  %v500 = vld [vmem:[%s1 + $0x758] sm:$0xf]
  %v501 = vld [vmem:[%s1 + $0x75c] sm:$0xf]
  %v502 = vld [vmem:[%s1 + $0x760] sm:$0xf]
  %v503 = vld [vmem:[%s1 + $0x764] sm:$0xf]
  %v504 = vld [vmem:[%s1 + $0x768] sm:$0xf]
  %v505 = vld [vmem:[%s1 + $0x76c] sm:$0xf]
  %v506 = vld [vmem:[%s1 + $0x770] sm:$0xf]
  %v507 = vld [vmem:[%s1 + $0x774] sm:$0xf]
  %v508 = vld [vmem:[%s1 + $0x778] sm:$0xf]
  %v509 = vld [vmem:[%s1 + $0x77c] sm:$0xf]
  %v510 = vld [vmem:[%s1 + $0x780] sm:$0xf]
  %v511 = vld [vmem:[%s1 + $0x784] sm:$0xf]
  %v512 = vld [vmem:[%s1 + $0x788] sm:$0xf]
  %v513 = vld [vmem:[%s1 + $0x78c] sm:$0xf]
  %v514 = vld [vmem:[%s1 + $0x790] sm:$0xf]
  %v515 = vld [vmem:[%s1 + $0x794] sm:$0xf]
  %v516 = vld [vmem:[%s1 + $0x798] sm:$0xf]
  %v517 = vld [vmem:[%s1 + $0x79c] sm:$0xf]
  %v518 = vld [vmem:[%s1 + $0x7a0] sm:$0xf]
  %v519 = vld [vmem:[%s1 + $0x7a4] sm:$0xf]
  %v520 = vld [vmem:[%s1 + $0x7a8] sm:$0xf]
  %v521 = vld [vmem:[%s1 + $0x7ac] sm:$0xf]
  %v522 = vld [vmem:[%s1 + $0x7b0] sm:$0xf]
  %v523 = vld [vmem:[%s1 + $0x7b4] sm:$0xf]
  %v524 = vld [vmem:[%s1 + $0x7b8] sm:$0xf]
  %v525 = vld [vmem:[%s1 + $0x7bc] sm:$0xf]
  %v526 = vld [vmem:[%s1 + $0x7c0] sm:$0xf]
  %v527 = vld [vmem:[%s1 + $0x7c4] sm:$0xf]
  %v528 = vld [vmem:[%s1 + $0x7c8] sm:$0xf]
  %v529 = vld [vmem:[%s1 + $0x7cc] sm:$0xf]
  %v530 = vld [vmem:[%s1 + $0x7d0] sm:$0xf]
  %v531 = vld [vmem:[%s1 + $0x7d4] sm:$0xf]
  %v532 = vld [vmem:[%s1 + $0x7d8] sm:$0xf]
  %v533 = vld [vmem:[%s1 + $0x7dc] sm:$0xf]
  %v534 = vld [vmem:[%s1 + $0x7e0] sm:$0xf]
  %v535 = vld [vmem:[%s1 + $0x7e4] sm:$0xf]
  %v536 = vld [vmem:[%s1 + $0x7e8] sm:$0xf]
  %v537 = vld [vmem:[%s1 + $0x7ec] sm:$0xf]
  %v538 = vld [vmem:[%s1 + $0x7f0] sm:$0xf]
  %v539 = vld [vmem:[%s1 + $0x7f4] sm:$0xf]
  %v540 = vld [vmem:[%s1 + $0x7f8] sm:$0xf]
  %v541 = vld [vmem:[%s1 + $0x7fc] sm:$0xf]
  %v542 = vld [vmem:[%s2] sm:$0x1]
  %v544 = vperm.slane %v542, 0
  %v562 = vunpack.c.l.b16 %v14
  %v563 = vunpack.c.h.b16 %v14
  %v564 = vunpack.c.l.b16 %v15
  %v565 = vunpack.c.h.b16 %v15
  %v566 = vunpack.c.l.b16 %v16
  %v567 = vunpack.c.h.b16 %v16
  %v568 = vunpack.c.l.b16 %v17
  %v569 = vunpack.c.h.b16 %v17
  %v570 = vunpack.c.l.b16 %v18
  %v571 = vunpack.c.h.b16 %v18
  %v572 = vunpack.c.l.b16 %v19
  %v573 = vunpack.c.h.b16 %v19
  %v574 = vunpack.c.l.b16 %v20
  %v575 = vunpack.c.h.b16 %v20
  %v576 = vunpack.c.l.b16 %v21
  %v577 = vunpack.c.h.b16 %v21
  %v578 = vunpack.c.l.b16 %v22
  %v579 = vunpack.c.h.b16 %v22
  %v580 = vunpack.c.l.b16 %v23
  %v581 = vunpack.c.h.b16 %v23
  %v582 = vunpack.c.l.b16 %v24
  %v583 = vunpack.c.h.b16 %v24
  %v584 = vunpack.c.l.b16 %v25
  %v585 = vunpack.c.h.b16 %v25
  %v586 = vunpack.c.l.b16 %v26
  %v587 = vunpack.c.h.b16 %v26
  %v588 = vunpack.c.l.b16 %v27
  %v589 = vunpack.c.h.b16 %v27
  %v590 = vunpack.c.l.b16 %v28
  %v591 = vunpack.c.h.b16 %v28
  %v592 = vunpack.c.l.b16 %v29
  %v593 = vunpack.c.h.b16 %v29
  %v594 = vpack.c.b16 %v562, %v562
  %v595 = vpack.c.b16 %v563, %v563
  %v596 = vpack.c.b16 %v564, %v564
  %v597 = vpack.c.b16 %v565, %v565
  %v598 = vpack.c.b16 %v566, %v566
  %v599 = vpack.c.b16 %v567, %v567
  %v600 = vpack.c.b16 %v568, %v568
  %v601 = vpack.c.b16 %v569, %v569
  %v602 = vpack.c.b16 %v570, %v570
  %v603 = vpack.c.b16 %v571, %v571
  %v604 = vpack.c.b16 %v572, %v572
  %v605 = vpack.c.b16 %v573, %v573
  %v606 = vpack.c.b16 %v574, %v574
  %v607 = vpack.c.b16 %v575, %v575
  %v608 = vpack.c.b16 %v576, %v576
  %v609 = vpack.c.b16 %v577, %v577
  %v610 = vpack.c.b16 %v578, %v578
  %v611 = vpack.c.b16 %v579, %v579
  %v612 = vpack.c.b16 %v580, %v580
  %v613 = vpack.c.b16 %v581, %v581
  %v614 = vpack.c.b16 %v582, %v582
  %v615 = vpack.c.b16 %v583, %v583
  %v616 = vpack.c.b16 %v584, %v584
  %v617 = vpack.c.b16 %v585, %v585
  %v618 = vpack.c.b16 %v586, %v586
  %v619 = vpack.c.b16 %v587, %v587
  %v620 = vpack.c.b16 %v588, %v588
  %v621 = vpack.c.b16 %v589, %v589
  %v622 = vpack.c.b16 %v590, %v590
  %v623 = vpack.c.b16 %v591, %v591
  %v624 = vpack.c.b16 %v592, %v592
  %v625 = vpack.c.b16 %v593, %v593
  %v1170 = vunpack.c.l.b16 %v30
  %v1171 = vunpack.c.l.b16 %v31
  %v1172 = vunpack.c.l.b16 %v32
  %v1173 = vunpack.c.l.b16 %v33
  %v1174 = vunpack.c.l.b16 %v34
  %v1175 = vunpack.c.l.b16 %v35
  %v1176 = vunpack.c.l.b16 %v36
  %v1177 = vunpack.c.l.b16 %v37
  %v1178 = vunpack.c.l.b16 %v38
  %v1179 = vunpack.c.l.b16 %v39
  %v1180 = vunpack.c.l.b16 %v40
  %v1181 = vunpack.c.l.b16 %v41
  %v1182 = vunpack.c.l.b16 %v42
  %v1183 = vunpack.c.l.b16 %v43
  %v1184 = vunpack.c.l.b16 %v44
  %v1185 = vunpack.c.l.b16 %v45
  %v1186 = vunpack.c.l.b16 %v46
  %v1187 = vunpack.c.l.b16 %v47
  %v1188 = vunpack.c.l.b16 %v48
  %v1189 = vunpack.c.l.b16 %v49
  %v1190 = vunpack.c.l.b16 %v50
  %v1191 = vunpack.c.l.b16 %v51
  %v1192 = vunpack.c.l.b16 %v52
  %v1193 = vunpack.c.l.b16 %v53
  %v1194 = vunpack.c.l.b16 %v54
  %v1195 = vunpack.c.l.b16 %v55
  %v1196 = vunpack.c.l.b16 %v56
  %v1197 = vunpack.c.l.b16 %v57
  %v1198 = vunpack.c.l.b16 %v58
  %v1199 = vunpack.c.l.b16 %v59
  %v1200 = vunpack.c.l.b16 %v60
  %v1201 = vunpack.c.l.b16 %v61
  %v1202 = vunpack.c.l.b16 %v62
  %v1203 = vunpack.c.l.b16 %v63
  %v1204 = vunpack.c.l.b16 %v64
  %v1205 = vunpack.c.l.b16 %v65
  %v1206 = vunpack.c.l.b16 %v66
  %v1207 = vunpack.c.l.b16 %v67
  %v1208 = vunpack.c.l.b16 %v68
  %v1209 = vunpack.c.l.b16 %v69
  %v1210 = vunpack.c.l.b16 %v70
  %v1211 = vunpack.c.l.b16 %v71
  %v1212 = vunpack.c.l.b16 %v72
  %v1213 = vunpack.c.l.b16 %v73
  %v1214 = vunpack.c.l.b16 %v74
  %v1215 = vunpack.c.l.b16 %v75
  %v1216 = vunpack.c.l.b16 %v76
  %v1217 = vunpack.c.l.b16 %v77
  %v1218 = vunpack.c.l.b16 %v78
  %v1219 = vunpack.c.l.b16 %v79
  %v1220 = vunpack.c.l.b16 %v80
  %v1221 = vunpack.c.l.b16 %v81
  %v1222 = vunpack.c.l.b16 %v82
  %v1223 = vunpack.c.l.b16 %v83
  %v1224 = vunpack.c.l.b16 %v84
  %v1225 = vunpack.c.l.b16 %v85
  %v1226 = vunpack.c.l.b16 %v86
  %v1227 = vunpack.c.l.b16 %v87
  %v1228 = vunpack.c.l.b16 %v88
  %v1229 = vunpack.c.l.b16 %v89
  %v1230 = vunpack.c.l.b16 %v90
  %v1231 = vunpack.c.l.b16 %v91
  %v1232 = vunpack.c.l.b16 %v92
  %v1233 = vunpack.c.l.b16 %v93
  %v1234 = vunpack.c.l.b16 %v94
  %v1235 = vunpack.c.l.b16 %v95
  %v1236 = vunpack.c.l.b16 %v96
  %v1237 = vunpack.c.l.b16 %v97
  %v1238 = vunpack.c.l.b16 %v98
  %v1239 = vunpack.c.l.b16 %v99
  %v1240 = vunpack.c.l.b16 %v100
  %v1241 = vunpack.c.l.b16 %v101
  %v1242 = vunpack.c.l.b16 %v102
  %v1243 = vunpack.c.l.b16 %v103
  %v1244 = vunpack.c.l.b16 %v104
  %v1245 = vunpack.c.l.b16 %v105
  %v1246 = vunpack.c.l.b16 %v106
  %v1247 = vunpack.c.l.b16 %v107
  %v1248 = vunpack.c.l.b16 %v108
  %v1249 = vunpack.c.l.b16 %v109
  %v1250 = vunpack.c.l.b16 %v110
  %v1251 = vunpack.c.l.b16 %v111
  %v1252 = vunpack.c.l.b16 %v112
  %v1253 = vunpack.c.l.b16 %v113
  %v1254 = vunpack.c.l.b16 %v114
  %v1255 = vunpack.c.l.b16 %v115
  %v1256 = vunpack.c.l.b16 %v116
  %v1257 = vunpack.c.l.b16 %v117
  %v1258 = vunpack.c.l.b16 %v118
  %v1259 = vunpack.c.l.b16 %v119
  %v1260 = vunpack.c.l.b16 %v120
  %v1261 = vunpack.c.l.b16 %v121
  %v1262 = vunpack.c.l.b16 %v122
  %v1263 = vunpack.c.l.b16 %v123
  %v1264 = vunpack.c.l.b16 %v124
  %v1265 = vunpack.c.l.b16 %v125
  %v1266 = vunpack.c.l.b16 %v126
  %v1267 = vunpack.c.l.b16 %v127
  %v1268 = vunpack.c.l.b16 %v128
  %v1269 = vunpack.c.l.b16 %v129
  %v1270 = vunpack.c.l.b16 %v130
  %v1271 = vunpack.c.l.b16 %v131
  %v1272 = vunpack.c.l.b16 %v132
  %v1273 = vunpack.c.l.b16 %v133
  %v1274 = vunpack.c.l.b16 %v134
  %v1275 = vunpack.c.l.b16 %v135
  %v1276 = vunpack.c.l.b16 %v136
  %v1277 = vunpack.c.l.b16 %v137
  %v1278 = vunpack.c.l.b16 %v138
  %v1279 = vunpack.c.l.b16 %v139
  %v1280 = vunpack.c.l.b16 %v140
  %v1281 = vunpack.c.l.b16 %v141
  %v1282 = vunpack.c.l.b16 %v142
  %v1283 = vunpack.c.l.b16 %v143
  %v1284 = vunpack.c.l.b16 %v144
  %v1285 = vunpack.c.l.b16 %v145
  %v1286 = vunpack.c.l.b16 %v146
  %v1287 = vunpack.c.l.b16 %v147
  %v1288 = vunpack.c.l.b16 %v148
  %v1289 = vunpack.c.l.b16 %v149
  %v1290 = vunpack.c.l.b16 %v150
  %v1291 = vunpack.c.l.b16 %v151
  %v1292 = vunpack.c.l.b16 %v152
  %v1293 = vunpack.c.l.b16 %v153
  %v1294 = vunpack.c.l.b16 %v154
  %v1295 = vunpack.c.l.b16 %v155
  %v1296 = vunpack.c.l.b16 %v156
  %v1297 = vunpack.c.l.b16 %v157
  %v1298 = vunpack.c.l.b16 %v158
  %v1299 = vunpack.c.l.b16 %v159
  %v1300 = vunpack.c.l.b16 %v160
  %v1301 = vunpack.c.l.b16 %v161
  %v1302 = vunpack.c.l.b16 %v162
  %v1303 = vunpack.c.l.b16 %v163
  %v1304 = vunpack.c.l.b16 %v164
  %v1305 = vunpack.c.l.b16 %v165
  %v1306 = vunpack.c.l.b16 %v166
  %v1307 = vunpack.c.l.b16 %v167
  %v1308 = vunpack.c.l.b16 %v168
  %v1309 = vunpack.c.l.b16 %v169
  %v1310 = vunpack.c.l.b16 %v170
  %v1311 = vunpack.c.l.b16 %v171
  %v1312 = vunpack.c.l.b16 %v172
  %v1313 = vunpack.c.l.b16 %v173
  %v1314 = vunpack.c.l.b16 %v174
  %v1315 = vunpack.c.l.b16 %v175
  %v1316 = vunpack.c.l.b16 %v176
  %v1317 = vunpack.c.l.b16 %v177
  %v1318 = vunpack.c.l.b16 %v178
  %v1319 = vunpack.c.l.b16 %v179
  %v1320 = vunpack.c.l.b16 %v180
  %v1321 = vunpack.c.l.b16 %v181
  %v1322 = vunpack.c.l.b16 %v182
  %v1323 = vunpack.c.l.b16 %v183
  %v1324 = vunpack.c.l.b16 %v184
  %v1325 = vunpack.c.l.b16 %v185
  %v1326 = vunpack.c.l.b16 %v186
  %v1327 = vunpack.c.l.b16 %v187
  %v1328 = vunpack.c.l.b16 %v188
  %v1329 = vunpack.c.l.b16 %v189
  %v1330 = vunpack.c.l.b16 %v190
  %v1331 = vunpack.c.l.b16 %v191
  %v1332 = vunpack.c.l.b16 %v192
  %v1333 = vunpack.c.l.b16 %v193
  %v1334 = vunpack.c.l.b16 %v194
  %v1335 = vunpack.c.l.b16 %v195
  %v1336 = vunpack.c.l.b16 %v196
  %v1337 = vunpack.c.l.b16 %v197
  %v1338 = vunpack.c.l.b16 %v198
  %v1339 = vunpack.c.l.b16 %v199
  %v1340 = vunpack.c.l.b16 %v200
  %v1341 = vunpack.c.l.b16 %v201
  %v1342 = vunpack.c.l.b16 %v202
  %v1343 = vunpack.c.l.b16 %v203
  %v1344 = vunpack.c.l.b16 %v204
  %v1345 = vunpack.c.l.b16 %v205
  %v1346 = vunpack.c.l.b16 %v206
  %v1347 = vunpack.c.l.b16 %v207
  %v1348 = vunpack.c.l.b16 %v208
  %v1349 = vunpack.c.l.b16 %v209
  %v1350 = vunpack.c.l.b16 %v210
  %v1351 = vunpack.c.l.b16 %v211
  %v1352 = vunpack.c.l.b16 %v212
  %v1353 = vunpack.c.l.b16 %v213
  %v1354 = vunpack.c.l.b16 %v214
  %v1355 = vunpack.c.l.b16 %v215
  %v1356 = vunpack.c.l.b16 %v216
  %v1357 = vunpack.c.l.b16 %v217
  %v1358 = vunpack.c.l.b16 %v218
  %v1359 = vunpack.c.l.b16 %v219
  %v1360 = vunpack.c.l.b16 %v220
  %v1361 = vunpack.c.l.b16 %v221
  %v1362 = vunpack.c.l.b16 %v222
  %v1363 = vunpack.c.l.b16 %v223
  %v1364 = vunpack.c.l.b16 %v224
  %v1365 = vunpack.c.l.b16 %v225
  %v1366 = vunpack.c.l.b16 %v226
  %v1367 = vunpack.c.l.b16 %v227
  %v1368 = vunpack.c.l.b16 %v228
  %v1369 = vunpack.c.l.b16 %v229
  %v1370 = vunpack.c.l.b16 %v230
  %v1371 = vunpack.c.l.b16 %v231
  %v1372 = vunpack.c.l.b16 %v232
  %v1373 = vunpack.c.l.b16 %v233
  %v1374 = vunpack.c.l.b16 %v234
  %v1375 = vunpack.c.l.b16 %v235
  %v1376 = vunpack.c.l.b16 %v236
  %v1377 = vunpack.c.l.b16 %v237
  %v1378 = vunpack.c.l.b16 %v238
  %v1379 = vunpack.c.l.b16 %v239
  %v1380 = vunpack.c.l.b16 %v240
  %v1381 = vunpack.c.l.b16 %v241
  %v1382 = vunpack.c.l.b16 %v242
  %v1383 = vunpack.c.l.b16 %v243
  %v1384 = vunpack.c.l.b16 %v244
  %v1385 = vunpack.c.l.b16 %v245
  %v1386 = vunpack.c.l.b16 %v246
  %v1387 = vunpack.c.l.b16 %v247
  %v1388 = vunpack.c.l.b16 %v248
  %v1389 = vunpack.c.l.b16 %v249
  %v1390 = vunpack.c.l.b16 %v250
  %v1391 = vunpack.c.l.b16 %v251
  %v1392 = vunpack.c.l.b16 %v252
  %v1393 = vunpack.c.l.b16 %v253
  %v1394 = vunpack.c.l.b16 %v254
  %v1395 = vunpack.c.l.b16 %v255
  %v1396 = vunpack.c.l.b16 %v256
  %v1397 = vunpack.c.l.b16 %v257
  %v1398 = vunpack.c.l.b16 %v258
  %v1399 = vunpack.c.l.b16 %v259
  %v1400 = vunpack.c.l.b16 %v260
  %v1401 = vunpack.c.l.b16 %v261
  %v1402 = vunpack.c.l.b16 %v262
  %v1403 = vunpack.c.l.b16 %v263
  %v1404 = vunpack.c.l.b16 %v264
  %v1405 = vunpack.c.l.b16 %v265
  %v1406 = vunpack.c.l.b16 %v266
  %v1407 = vunpack.c.l.b16 %v267
  %v1408 = vunpack.c.l.b16 %v268
  %v1409 = vunpack.c.l.b16 %v269
  %v1410 = vunpack.c.l.b16 %v270
  %v1411 = vunpack.c.l.b16 %v271
  %v1412 = vunpack.c.l.b16 %v272
  %v1413 = vunpack.c.l.b16 %v273
  %v1414 = vunpack.c.l.b16 %v274
  %v1415 = vunpack.c.l.b16 %v275
  %v1416 = vunpack.c.l.b16 %v276
  %v1417 = vunpack.c.l.b16 %v277
  %v1418 = vunpack.c.l.b16 %v278
  %v1419 = vunpack.c.l.b16 %v279
  %v1420 = vunpack.c.l.b16 %v280
  %v1421 = vunpack.c.l.b16 %v281
  %v1422 = vunpack.c.l.b16 %v282
  %v1423 = vunpack.c.l.b16 %v283
  %v1424 = vunpack.c.l.b16 %v284
  %v1425 = vunpack.c.l.b16 %v285
  %v1426 = vunpack.c.l.b16 %v286
  %v1427 = vunpack.c.l.b16 %v287
  %v1428 = vunpack.c.l.b16 %v288
  %v1429 = vunpack.c.l.b16 %v289
  %v1430 = vunpack.c.l.b16 %v290
  %v1431 = vunpack.c.l.b16 %v291
  %v1432 = vunpack.c.l.b16 %v292
  %v1433 = vunpack.c.l.b16 %v293
  %v1434 = vunpack.c.l.b16 %v294
  %v1435 = vunpack.c.l.b16 %v295
  %v1436 = vunpack.c.l.b16 %v296
  %v1437 = vunpack.c.l.b16 %v297
  %v1438 = vunpack.c.l.b16 %v298
  %v1439 = vunpack.c.l.b16 %v299
  %v1440 = vunpack.c.l.b16 %v300
  %v1441 = vunpack.c.l.b16 %v301
  %v1442 = vunpack.c.l.b16 %v302
  %v1443 = vunpack.c.l.b16 %v303
  %v1444 = vunpack.c.l.b16 %v304
  %v1445 = vunpack.c.l.b16 %v305
  %v1446 = vunpack.c.l.b16 %v306
  %v1447 = vunpack.c.l.b16 %v307
  %v1448 = vunpack.c.l.b16 %v308
  %v1449 = vunpack.c.l.b16 %v309
  %v1450 = vunpack.c.l.b16 %v310
  %v1451 = vunpack.c.l.b16 %v311
  %v1452 = vunpack.c.l.b16 %v312
  %v1453 = vunpack.c.l.b16 %v313
  %v1454 = vunpack.c.l.b16 %v314
  %v1455 = vunpack.c.l.b16 %v315
  %v1456 = vunpack.c.l.b16 %v316
  %v1457 = vunpack.c.l.b16 %v317
  %v1458 = vunpack.c.l.b16 %v318
  %v1459 = vunpack.c.l.b16 %v319
  %v1460 = vunpack.c.l.b16 %v320
  %v1461 = vunpack.c.l.b16 %v321
  %v1462 = vunpack.c.l.b16 %v322
  %v1463 = vunpack.c.l.b16 %v323
  %v1464 = vunpack.c.l.b16 %v324
  %v1465 = vunpack.c.l.b16 %v325
  %v1466 = vunpack.c.l.b16 %v326
  %v1467 = vunpack.c.l.b16 %v327
  %v1468 = vunpack.c.l.b16 %v328
  %v1469 = vunpack.c.l.b16 %v329
  %v1470 = vunpack.c.l.b16 %v330
  %v1471 = vunpack.c.l.b16 %v331
  %v1472 = vunpack.c.l.b16 %v332
  %v1473 = vunpack.c.l.b16 %v333
  %v1474 = vunpack.c.l.b16 %v334
  %v1475 = vunpack.c.l.b16 %v335
  %v1476 = vunpack.c.l.b16 %v336
  %v1477 = vunpack.c.l.b16 %v337
  %v1478 = vunpack.c.l.b16 %v338
  %v1479 = vunpack.c.l.b16 %v339
  %v1480 = vunpack.c.l.b16 %v340
  %v1481 = vunpack.c.l.b16 %v341
  %v1482 = vunpack.c.l.b16 %v342
  %v1483 = vunpack.c.l.b16 %v343
  %v1484 = vunpack.c.l.b16 %v344
  %v1485 = vunpack.c.l.b16 %v345
  %v1486 = vunpack.c.l.b16 %v346
  %v1487 = vunpack.c.l.b16 %v347
  %v1488 = vunpack.c.l.b16 %v348
  %v1489 = vunpack.c.l.b16 %v349
  %v1490 = vunpack.c.l.b16 %v350
  %v1491 = vunpack.c.l.b16 %v351
  %v1492 = vunpack.c.l.b16 %v352
  %v1493 = vunpack.c.l.b16 %v353
  %v1494 = vunpack.c.l.b16 %v354
  %v1495 = vunpack.c.l.b16 %v355
  %v1496 = vunpack.c.l.b16 %v356
  %v1497 = vunpack.c.l.b16 %v357
  %v1498 = vunpack.c.l.b16 %v358
  %v1499 = vunpack.c.l.b16 %v359
  %v1500 = vunpack.c.l.b16 %v360
  %v1501 = vunpack.c.l.b16 %v361
  %v1502 = vunpack.c.l.b16 %v362
  %v1503 = vunpack.c.l.b16 %v363
  %v1504 = vunpack.c.l.b16 %v364
  %v1505 = vunpack.c.l.b16 %v365
  %v1506 = vunpack.c.l.b16 %v366
  %v1507 = vunpack.c.l.b16 %v367
  %v1508 = vunpack.c.l.b16 %v368
  %v1509 = vunpack.c.l.b16 %v369
  %v1510 = vunpack.c.l.b16 %v370
  %v1511 = vunpack.c.l.b16 %v371
  %v1512 = vunpack.c.l.b16 %v372
  %v1513 = vunpack.c.l.b16 %v373
  %v1514 = vunpack.c.l.b16 %v374
  %v1515 = vunpack.c.l.b16 %v375
  %v1516 = vunpack.c.l.b16 %v376
  %v1517 = vunpack.c.l.b16 %v377
  %v1518 = vunpack.c.l.b16 %v378
  %v1519 = vunpack.c.l.b16 %v379
  %v1520 = vunpack.c.l.b16 %v380
  %v1521 = vunpack.c.l.b16 %v381
  %v1522 = vunpack.c.l.b16 %v382
  %v1523 = vunpack.c.l.b16 %v383
  %v1524 = vunpack.c.l.b16 %v384
  %v1525 = vunpack.c.l.b16 %v385
  %v1526 = vunpack.c.l.b16 %v386
  %v1527 = vunpack.c.l.b16 %v387
  %v1528 = vunpack.c.l.b16 %v388
  %v1529 = vunpack.c.l.b16 %v389
  %v1530 = vunpack.c.l.b16 %v390
  %v1531 = vunpack.c.l.b16 %v391
  %v1532 = vunpack.c.l.b16 %v392
  %v1533 = vunpack.c.l.b16 %v393
  %v1534 = vunpack.c.l.b16 %v394
  %v1535 = vunpack.c.l.b16 %v395
  %v1536 = vunpack.c.l.b16 %v396
  %v1537 = vunpack.c.l.b16 %v397
  %v1538 = vunpack.c.l.b16 %v398
  %v1539 = vunpack.c.l.b16 %v399
  %v1540 = vunpack.c.l.b16 %v400
  %v1541 = vunpack.c.l.b16 %v401
  %v1542 = vunpack.c.l.b16 %v402
  %v1543 = vunpack.c.l.b16 %v403
  %v1544 = vunpack.c.l.b16 %v404
  %v1545 = vunpack.c.l.b16 %v405
  %v1546 = vunpack.c.l.b16 %v406
  %v1547 = vunpack.c.l.b16 %v407
  %v1548 = vunpack.c.l.b16 %v408
  %v1549 = vunpack.c.l.b16 %v409
  %v1550 = vunpack.c.l.b16 %v410
  %v1551 = vunpack.c.l.b16 %v411
  %v1552 = vunpack.c.l.b16 %v412
  %v1553 = vunpack.c.l.b16 %v413
  %v1554 = vunpack.c.l.b16 %v414
  %v1555 = vunpack.c.l.b16 %v415
  %v1556 = vunpack.c.l.b16 %v416
  %v1557 = vunpack.c.l.b16 %v417
  %v1558 = vunpack.c.l.b16 %v418
  %v1559 = vunpack.c.l.b16 %v419
  %v1560 = vunpack.c.l.b16 %v420
  %v1561 = vunpack.c.l.b16 %v421
  %v1562 = vunpack.c.l.b16 %v422
  %v1563 = vunpack.c.l.b16 %v423
  %v1564 = vunpack.c.l.b16 %v424
  %v1565 = vunpack.c.l.b16 %v425
  %v1566 = vunpack.c.l.b16 %v426
  %v1567 = vunpack.c.l.b16 %v427
  %v1568 = vunpack.c.l.b16 %v428
  %v1569 = vunpack.c.l.b16 %v429
  %v1570 = vunpack.c.l.b16 %v430
  %v1571 = vunpack.c.l.b16 %v431
  %v1572 = vunpack.c.l.b16 %v432
  %v1573 = vunpack.c.l.b16 %v433
  %v1574 = vunpack.c.l.b16 %v434
  %v1575 = vunpack.c.l.b16 %v435
  %v1576 = vunpack.c.l.b16 %v436
  %v1577 = vunpack.c.l.b16 %v437
  %v1578 = vunpack.c.l.b16 %v438
  %v1579 = vunpack.c.l.b16 %v439
  %v1580 = vunpack.c.l.b16 %v440
  %v1581 = vunpack.c.l.b16 %v441
  %v1582 = vunpack.c.l.b16 %v442
  %v1583 = vunpack.c.l.b16 %v443
  %v1584 = vunpack.c.l.b16 %v444
  %v1585 = vunpack.c.l.b16 %v445
  %v1586 = vunpack.c.l.b16 %v446
  %v1587 = vunpack.c.l.b16 %v447
  %v1588 = vunpack.c.l.b16 %v448
  %v1589 = vunpack.c.l.b16 %v449
  %v1590 = vunpack.c.l.b16 %v450
  %v1591 = vunpack.c.l.b16 %v451
  %v1592 = vunpack.c.l.b16 %v452
  %v1593 = vunpack.c.l.b16 %v453
  %v1594 = vunpack.c.l.b16 %v454
  %v1595 = vunpack.c.l.b16 %v455
  %v1596 = vunpack.c.l.b16 %v456
  %v1597 = vunpack.c.l.b16 %v457
  %v1598 = vunpack.c.l.b16 %v458
  %v1599 = vunpack.c.l.b16 %v459
  %v1600 = vunpack.c.l.b16 %v460
  %v1601 = vunpack.c.l.b16 %v461
  %v1602 = vunpack.c.l.b16 %v462
  %v1603 = vunpack.c.l.b16 %v463
  %v1604 = vunpack.c.l.b16 %v464
  %v1605 = vunpack.c.l.b16 %v465
  %v1606 = vunpack.c.l.b16 %v466
  %v1607 = vunpack.c.l.b16 %v467
  %v1608 = vunpack.c.l.b16 %v468
  %v1609 = vunpack.c.l.b16 %v469
  %v1610 = vunpack.c.l.b16 %v470
  %v1611 = vunpack.c.l.b16 %v471
  %v1612 = vunpack.c.l.b16 %v472
  %v1613 = vunpack.c.l.b16 %v473
  %v1614 = vunpack.c.l.b16 %v474
  %v1615 = vunpack.c.l.b16 %v475
  %v1616 = vunpack.c.l.b16 %v476
  %v1617 = vunpack.c.l.b16 %v477
  %v1618 = vunpack.c.l.b16 %v478
  %v1619 = vunpack.c.l.b16 %v479
  %v1620 = vunpack.c.l.b16 %v480
  %v1621 = vunpack.c.l.b16 %v481
  %v1622 = vunpack.c.l.b16 %v482
  %v1623 = vunpack.c.l.b16 %v483
  %v1624 = vunpack.c.l.b16 %v484
  %v1625 = vunpack.c.l.b16 %v485
  %v1626 = vunpack.c.l.b16 %v486
  %v1627 = vunpack.c.l.b16 %v487
  %v1628 = vunpack.c.l.b16 %v488
  %v1629 = vunpack.c.l.b16 %v489
  %v1630 = vunpack.c.l.b16 %v490
  %v1631 = vunpack.c.l.b16 %v491
  %v1632 = vunpack.c.l.b16 %v492
  %v1633 = vunpack.c.l.b16 %v493
  %v1634 = vunpack.c.l.b16 %v494
  %v1635 = vunpack.c.l.b16 %v495
  %v1636 = vunpack.c.l.b16 %v496
  %v1637 = vunpack.c.l.b16 %v497
  %v1638 = vunpack.c.l.b16 %v498
  %v1639 = vunpack.c.l.b16 %v499
  %v1640 = vunpack.c.l.b16 %v500
  %v1641 = vunpack.c.l.b16 %v501
  %v1642 = vunpack.c.l.b16 %v502
  %v1643 = vunpack.c.l.b16 %v503
  %v1644 = vunpack.c.l.b16 %v504
  %v1645 = vunpack.c.l.b16 %v505
  %v1646 = vunpack.c.l.b16 %v506
  %v1647 = vunpack.c.l.b16 %v507
  %v1648 = vunpack.c.l.b16 %v508
  %v1649 = vunpack.c.l.b16 %v509
  %v1650 = vunpack.c.l.b16 %v510
  %v1651 = vunpack.c.l.b16 %v511
  %v1652 = vunpack.c.l.b16 %v512
  %v1653 = vunpack.c.l.b16 %v513
  %v1654 = vunpack.c.l.b16 %v514
  %v1655 = vunpack.c.l.b16 %v515
  %v1656 = vunpack.c.l.b16 %v516
  %v1657 = vunpack.c.l.b16 %v517
  %v1658 = vunpack.c.l.b16 %v518
  %v1659 = vunpack.c.l.b16 %v519
  %v1660 = vunpack.c.l.b16 %v520
  %v1661 = vunpack.c.l.b16 %v521
  %v1662 = vunpack.c.l.b16 %v522
  %v1663 = vunpack.c.l.b16 %v523
  %v1664 = vunpack.c.l.b16 %v524
  %v1665 = vunpack.c.l.b16 %v525
  %v1666 = vunpack.c.l.b16 %v526
  %v1667 = vunpack.c.l.b16 %v527
  %v1668 = vunpack.c.l.b16 %v528
  %v1669 = vunpack.c.l.b16 %v529
  %v1670 = vunpack.c.l.b16 %v530
  %v1671 = vunpack.c.l.b16 %v531
  %v1672 = vunpack.c.l.b16 %v532
  %v1673 = vunpack.c.l.b16 %v533
  %v1674 = vunpack.c.l.b16 %v534
  %v1675 = vunpack.c.l.b16 %v535
  %v1676 = vunpack.c.l.b16 %v536
  %v1677 = vunpack.c.l.b16 %v537
  %v1678 = vunpack.c.l.b16 %v538
  %v1679 = vunpack.c.l.b16 %v539
  %v1680 = vunpack.c.l.b16 %v540
  %v1681 = vunpack.c.l.b16 %v541
  %v1682 = vpack.c.b16 %v1171, %v1170
  %v1683 = vpack.c.b16 %v1173, %v1172
  %v1684 = vpack.c.b16 %v1175, %v1174
  %v1685 = vpack.c.b16 %v1177, %v1176
  %v1686 = vpack.c.b16 %v1179, %v1178
  %v1687 = vpack.c.b16 %v1181, %v1180
  %v1688 = vpack.c.b16 %v1183, %v1182
  %v1689 = vpack.c.b16 %v1185, %v1184
  %v1690 = vpack.c.b16 %v1187, %v1186
  %v1691 = vpack.c.b16 %v1189, %v1188
  %v1692 = vpack.c.b16 %v1191, %v1190
  %v1693 = vpack.c.b16 %v1193, %v1192
  %v1694 = vpack.c.b16 %v1195, %v1194
  %v1695 = vpack.c.b16 %v1197, %v1196
  %v1696 = vpack.c.b16 %v1199, %v1198
  %v1697 = vpack.c.b16 %v1201, %v1200
  %v1698 = vpack.c.b16 %v1203, %v1202
  %v1699 = vpack.c.b16 %v1205, %v1204
  %v1700 = vpack.c.b16 %v1207, %v1206
  %v1701 = vpack.c.b16 %v1209, %v1208
  %v1702 = vpack.c.b16 %v1211, %v1210
  %v1703 = vpack.c.b16 %v1213, %v1212
  %v1704 = vpack.c.b16 %v1215, %v1214
  %v1705 = vpack.c.b16 %v1217, %v1216
  %v1706 = vpack.c.b16 %v1219, %v1218
  %v1707 = vpack.c.b16 %v1221, %v1220
  %v1708 = vpack.c.b16 %v1223, %v1222
  %v1709 = vpack.c.b16 %v1225, %v1224
  %v1710 = vpack.c.b16 %v1227, %v1226
  %v1711 = vpack.c.b16 %v1229, %v1228
  %v1712 = vpack.c.b16 %v1231, %v1230
  %v1713 = vpack.c.b16 %v1233, %v1232
  %v1714 = vpack.c.b16 %v1235, %v1234
  %v1715 = vpack.c.b16 %v1237, %v1236
  %v1716 = vpack.c.b16 %v1239, %v1238
  %v1717 = vpack.c.b16 %v1241, %v1240
  %v1718 = vpack.c.b16 %v1243, %v1242
  %v1719 = vpack.c.b16 %v1245, %v1244
  %v1720 = vpack.c.b16 %v1247, %v1246
  %v1721 = vpack.c.b16 %v1249, %v1248
  %v1722 = vpack.c.b16 %v1251, %v1250
  %v1723 = vpack.c.b16 %v1253, %v1252
  %v1724 = vpack.c.b16 %v1255, %v1254
  %v1725 = vpack.c.b16 %v1257, %v1256
  %v1726 = vpack.c.b16 %v1259, %v1258
  %v1727 = vpack.c.b16 %v1261, %v1260
  %v1728 = vpack.c.b16 %v1263, %v1262
  %v1729 = vpack.c.b16 %v1265, %v1264
  %v1730 = vpack.c.b16 %v1267, %v1266
  %v1731 = vpack.c.b16 %v1269, %v1268
  %v1732 = vpack.c.b16 %v1271, %v1270
  %v1733 = vpack.c.b16 %v1273, %v1272
  %v1734 = vpack.c.b16 %v1275, %v1274
  %v1735 = vpack.c.b16 %v1277, %v1276
  %v1736 = vpack.c.b16 %v1279, %v1278
  %v1737 = vpack.c.b16 %v1281, %v1280
  %v1738 = vpack.c.b16 %v1283, %v1282
  %v1739 = vpack.c.b16 %v1285, %v1284
  %v1740 = vpack.c.b16 %v1287, %v1286
  %v1741 = vpack.c.b16 %v1289, %v1288
  %v1742 = vpack.c.b16 %v1291, %v1290
  %v1743 = vpack.c.b16 %v1293, %v1292
  %v1744 = vpack.c.b16 %v1295, %v1294
  %v1745 = vpack.c.b16 %v1297, %v1296
  %v1746 = vpack.c.b16 %v1299, %v1298
  %v1747 = vpack.c.b16 %v1301, %v1300
  %v1748 = vpack.c.b16 %v1303, %v1302
  %v1749 = vpack.c.b16 %v1305, %v1304
  %v1750 = vpack.c.b16 %v1307, %v1306
  %v1751 = vpack.c.b16 %v1309, %v1308
  %v1752 = vpack.c.b16 %v1311, %v1310
  %v1753 = vpack.c.b16 %v1313, %v1312
  %v1754 = vpack.c.b16 %v1315, %v1314
  %v1755 = vpack.c.b16 %v1317, %v1316
  %v1756 = vpack.c.b16 %v1319, %v1318
  %v1757 = vpack.c.b16 %v1321, %v1320
  %v1758 = vpack.c.b16 %v1323, %v1322
  %v1759 = vpack.c.b16 %v1325, %v1324
  %v1760 = vpack.c.b16 %v1327, %v1326
  %v1761 = vpack.c.b16 %v1329, %v1328
  %v1762 = vpack.c.b16 %v1331, %v1330
  %v1763 = vpack.c.b16 %v1333, %v1332
  %v1764 = vpack.c.b16 %v1335, %v1334
  %v1765 = vpack.c.b16 %v1337, %v1336
  %v1766 = vpack.c.b16 %v1339, %v1338
  %v1767 = vpack.c.b16 %v1341, %v1340
  %v1768 = vpack.c.b16 %v1343, %v1342
  %v1769 = vpack.c.b16 %v1345, %v1344
  %v1770 = vpack.c.b16 %v1347, %v1346
  %v1771 = vpack.c.b16 %v1349, %v1348
  %v1772 = vpack.c.b16 %v1351, %v1350
  %v1773 = vpack.c.b16 %v1353, %v1352
  %v1774 = vpack.c.b16 %v1355, %v1354
  %v1775 = vpack.c.b16 %v1357, %v1356
  %v1776 = vpack.c.b16 %v1359, %v1358
  %v1777 = vpack.c.b16 %v1361, %v1360
  %v1778 = vpack.c.b16 %v1363, %v1362
  %v1779 = vpack.c.b16 %v1365, %v1364
  %v1780 = vpack.c.b16 %v1367, %v1366
  %v1781 = vpack.c.b16 %v1369, %v1368
  %v1782 = vpack.c.b16 %v1371, %v1370
  %v1783 = vpack.c.b16 %v1373, %v1372
  %v1784 = vpack.c.b16 %v1375, %v1374
  %v1785 = vpack.c.b16 %v1377, %v1376
  %v1786 = vpack.c.b16 %v1379, %v1378
  %v1787 = vpack.c.b16 %v1381, %v1380
  %v1788 = vpack.c.b16 %v1383, %v1382
  %v1789 = vpack.c.b16 %v1385, %v1384
  %v1790 = vpack.c.b16 %v1387, %v1386
  %v1791 = vpack.c.b16 %v1389, %v1388
  %v1792 = vpack.c.b16 %v1391, %v1390
  %v1793 = vpack.c.b16 %v1393, %v1392
  %v1794 = vpack.c.b16 %v1395, %v1394
  %v1795 = vpack.c.b16 %v1397, %v1396
  %v1796 = vpack.c.b16 %v1399, %v1398
  %v1797 = vpack.c.b16 %v1401, %v1400
  %v1798 = vpack.c.b16 %v1403, %v1402
  %v1799 = vpack.c.b16 %v1405, %v1404
  %v1800 = vpack.c.b16 %v1407, %v1406
  %v1801 = vpack.c.b16 %v1409, %v1408
  %v1802 = vpack.c.b16 %v1411, %v1410
  %v1803 = vpack.c.b16 %v1413, %v1412
  %v1804 = vpack.c.b16 %v1415, %v1414
  %v1805 = vpack.c.b16 %v1417, %v1416
  %v1806 = vpack.c.b16 %v1419, %v1418
  %v1807 = vpack.c.b16 %v1421, %v1420
  %v1808 = vpack.c.b16 %v1423, %v1422
  %v1809 = vpack.c.b16 %v1425, %v1424
  %v1810 = vpack.c.b16 %v1427, %v1426
  %v1811 = vpack.c.b16 %v1429, %v1428
  %v1812 = vpack.c.b16 %v1431, %v1430
  %v1813 = vpack.c.b16 %v1433, %v1432
  %v1814 = vpack.c.b16 %v1435, %v1434
  %v1815 = vpack.c.b16 %v1437, %v1436
  %v1816 = vpack.c.b16 %v1439, %v1438
  %v1817 = vpack.c.b16 %v1441, %v1440
  %v1818 = vpack.c.b16 %v1443, %v1442
  %v1819 = vpack.c.b16 %v1445, %v1444
  %v1820 = vpack.c.b16 %v1447, %v1446
  %v1821 = vpack.c.b16 %v1449, %v1448
  %v1822 = vpack.c.b16 %v1451, %v1450
  %v1823 = vpack.c.b16 %v1453, %v1452
  %v1824 = vpack.c.b16 %v1455, %v1454
  %v1825 = vpack.c.b16 %v1457, %v1456
  %v1826 = vpack.c.b16 %v1459, %v1458
  %v1827 = vpack.c.b16 %v1461, %v1460
  %v1828 = vpack.c.b16 %v1463, %v1462
  %v1829 = vpack.c.b16 %v1465, %v1464
  %v1830 = vpack.c.b16 %v1467, %v1466
  %v1831 = vpack.c.b16 %v1469, %v1468
  %v1832 = vpack.c.b16 %v1471, %v1470
  %v1833 = vpack.c.b16 %v1473, %v1472
  %v1834 = vpack.c.b16 %v1475, %v1474
  %v1835 = vpack.c.b16 %v1477, %v1476
  %v1836 = vpack.c.b16 %v1479, %v1478
  %v1837 = vpack.c.b16 %v1481, %v1480
  %v1838 = vpack.c.b16 %v1483, %v1482
  %v1839 = vpack.c.b16 %v1485, %v1484
  %v1840 = vpack.c.b16 %v1487, %v1486
  %v1841 = vpack.c.b16 %v1489, %v1488
  %v1842 = vpack.c.b16 %v1491, %v1490
  %v1843 = vpack.c.b16 %v1493, %v1492
  %v1844 = vpack.c.b16 %v1495, %v1494
  %v1845 = vpack.c.b16 %v1497, %v1496
  %v1846 = vpack.c.b16 %v1499, %v1498
  %v1847 = vpack.c.b16 %v1501, %v1500
  %v1848 = vpack.c.b16 %v1503, %v1502
  %v1849 = vpack.c.b16 %v1505, %v1504
  %v1850 = vpack.c.b16 %v1507, %v1506
  %v1851 = vpack.c.b16 %v1509, %v1508
  %v1852 = vpack.c.b16 %v1511, %v1510
  %v1853 = vpack.c.b16 %v1513, %v1512
  %v1854 = vpack.c.b16 %v1515, %v1514
  %v1855 = vpack.c.b16 %v1517, %v1516
  %v1856 = vpack.c.b16 %v1519, %v1518
  %v1857 = vpack.c.b16 %v1521, %v1520
  %v1858 = vpack.c.b16 %v1523, %v1522
  %v1859 = vpack.c.b16 %v1525, %v1524
  %v1860 = vpack.c.b16 %v1527, %v1526
  %v1861 = vpack.c.b16 %v1529, %v1528
  %v1862 = vpack.c.b16 %v1531, %v1530
  %v1863 = vpack.c.b16 %v1533, %v1532
  %v1864 = vpack.c.b16 %v1535, %v1534
  %v1865 = vpack.c.b16 %v1537, %v1536
  %v1866 = vpack.c.b16 %v1539, %v1538
  %v1867 = vpack.c.b16 %v1541, %v1540
  %v1868 = vpack.c.b16 %v1543, %v1542
  %v1869 = vpack.c.b16 %v1545, %v1544
  %v1870 = vpack.c.b16 %v1547, %v1546
  %v1871 = vpack.c.b16 %v1549, %v1548
  %v1872 = vpack.c.b16 %v1551, %v1550
  %v1873 = vpack.c.b16 %v1553, %v1552
  %v1874 = vpack.c.b16 %v1555, %v1554
  %v1875 = vpack.c.b16 %v1557, %v1556
  %v1876 = vpack.c.b16 %v1559, %v1558
  %v1877 = vpack.c.b16 %v1561, %v1560
  %v1878 = vpack.c.b16 %v1563, %v1562
  %v1879 = vpack.c.b16 %v1565, %v1564
  %v1880 = vpack.c.b16 %v1567, %v1566
  %v1881 = vpack.c.b16 %v1569, %v1568
  %v1882 = vpack.c.b16 %v1571, %v1570
  %v1883 = vpack.c.b16 %v1573, %v1572
  %v1884 = vpack.c.b16 %v1575, %v1574
  %v1885 = vpack.c.b16 %v1577, %v1576
  %v1886 = vpack.c.b16 %v1579, %v1578
  %v1887 = vpack.c.b16 %v1581, %v1580
  %v1888 = vpack.c.b16 %v1583, %v1582
  %v1889 = vpack.c.b16 %v1585, %v1584
  %v1890 = vpack.c.b16 %v1587, %v1586
  %v1891 = vpack.c.b16 %v1589, %v1588
  %v1892 = vpack.c.b16 %v1591, %v1590
  %v1893 = vpack.c.b16 %v1593, %v1592
  %v1894 = vpack.c.b16 %v1595, %v1594
  %v1895 = vpack.c.b16 %v1597, %v1596
  %v1896 = vpack.c.b16 %v1599, %v1598
  %v1897 = vpack.c.b16 %v1601, %v1600
  %v1898 = vpack.c.b16 %v1603, %v1602
  %v1899 = vpack.c.b16 %v1605, %v1604
  %v1900 = vpack.c.b16 %v1607, %v1606
  %v1901 = vpack.c.b16 %v1609, %v1608
  %v1902 = vpack.c.b16 %v1611, %v1610
  %v1903 = vpack.c.b16 %v1613, %v1612
  %v1904 = vpack.c.b16 %v1615, %v1614
  %v1905 = vpack.c.b16 %v1617, %v1616
  %v1906 = vpack.c.b16 %v1619, %v1618
  %v1907 = vpack.c.b16 %v1621, %v1620
  %v1908 = vpack.c.b16 %v1623, %v1622
  %v1909 = vpack.c.b16 %v1625, %v1624
  %v1910 = vpack.c.b16 %v1627, %v1626
  %v1911 = vpack.c.b16 %v1629, %v1628
  %v1912 = vpack.c.b16 %v1631, %v1630
  %v1913 = vpack.c.b16 %v1633, %v1632
  %v1914 = vpack.c.b16 %v1635, %v1634
  %v1915 = vpack.c.b16 %v1637, %v1636
  %v1916 = vpack.c.b16 %v1639, %v1638
  %v1917 = vpack.c.b16 %v1641, %v1640
  %v1918 = vpack.c.b16 %v1643, %v1642
  %v1919 = vpack.c.b16 %v1645, %v1644
  %v1920 = vpack.c.b16 %v1647, %v1646
  %v1921 = vpack.c.b16 %v1649, %v1648
  %v1922 = vpack.c.b16 %v1651, %v1650
  %v1923 = vpack.c.b16 %v1653, %v1652
  %v1924 = vpack.c.b16 %v1655, %v1654
  %v1925 = vpack.c.b16 %v1657, %v1656
  %v1926 = vpack.c.b16 %v1659, %v1658
  %v1927 = vpack.c.b16 %v1661, %v1660
  %v1928 = vpack.c.b16 %v1663, %v1662
  %v1929 = vpack.c.b16 %v1665, %v1664
  %v1930 = vpack.c.b16 %v1667, %v1666
  %v1931 = vpack.c.b16 %v1669, %v1668
  %v1932 = vpack.c.b16 %v1671, %v1670
  %v1933 = vpack.c.b16 %v1673, %v1672
  %v1934 = vpack.c.b16 %v1675, %v1674
  %v1935 = vpack.c.b16 %v1677, %v1676
  %v1936 = vpack.c.b16 %v1679, %v1678
  %v1937 = vpack.c.b16 %v1681, %v1680
  %2194 = vmatpush.bf16.msra.mxu0 %v1689
  %2195 = vmatpush.bf16.msra.mxu0 %v1688
  %2196 = vmatpush.bf16.msra.mxu0 %v1687
  %2197 = vmatpush.bf16.msra.mxu0 %v1686
  %2198 = vmatpush.bf16.msra.mxu0 %v1685
  %2199 = vmatpush.bf16.msra.mxu0 %v1684
  %2200 = vmatpush.bf16.msra.mxu0 %v1683
  %2201 = vmatpush.bf16.msra.mxu0 %v1682
  %2202 = vmatmul.bf16.gmra.mxu0 %v594
  %v2203 = vpop.f32.mrf.mxu0
  %v2204 = vadd.f32 %v544, %v2203
  %v2205 = vpop.f32.mrf.mxu0
  %2206 = vdwg.mxu0
  %2207 = vmatpush.bf16.msra.mxu0 %v1697
  %2208 = vmatpush.bf16.msra.mxu0 %v1696
  %2209 = vmatpush.bf16.msra.mxu0 %v1695
  %2210 = vmatpush.bf16.msra.mxu0 %v1694
  %2211 = vmatpush.bf16.msra.mxu0 %v1693
  %2212 = vmatpush.bf16.msra.mxu0 %v1692
  %2213 = vmatpush.bf16.msra.mxu0 %v1691
  %2214 = vmatpush.bf16.msra.mxu0 %v1690
  %2215 = vmatmul.bf16.gmra.mxu0 %v595
  %v2216 = vpop.f32.mrf.mxu0
  %v2217 = vadd.f32 %v2204, %v2216
  %v2218 = vpop.f32.mrf.mxu0
  %2219 = vdwg.mxu0
  %2220 = vmatpush.bf16.msra.mxu0 %v1705
  %2221 = vmatpush.bf16.msra.mxu0 %v1704
  %2222 = vmatpush.bf16.msra.mxu0 %v1703
  %2223 = vmatpush.bf16.msra.mxu0 %v1702
  %2224 = vmatpush.bf16.msra.mxu0 %v1701
  %2225 = vmatpush.bf16.msra.mxu0 %v1700
  %2226 = vmatpush.bf16.msra.mxu0 %v1699
  %2227 = vmatpush.bf16.msra.mxu0 %v1698
  %2228 = vmatmul.bf16.gmra.mxu0 %v596
  %v2229 = vpop.f32.mrf.mxu0
  %v2230 = vadd.f32 %v2217, %v2229
  %v2231 = vpop.f32.mrf.mxu0
  %2232 = vdwg.mxu0
  %2233 = vmatpush.bf16.msra.mxu0 %v1713
  %2234 = vmatpush.bf16.msra.mxu0 %v1712
  %2235 = vmatpush.bf16.msra.mxu0 %v1711
  %2236 = vmatpush.bf16.msra.mxu0 %v1710
  %2237 = vmatpush.bf16.msra.mxu0 %v1709
  %2238 = vmatpush.bf16.msra.mxu0 %v1708
  %2239 = vmatpush.bf16.msra.mxu0 %v1707
  %2240 = vmatpush.bf16.msra.mxu0 %v1706
  %2241 = vmatmul.bf16.gmra.mxu0 %v597
  %v2242 = vpop.f32.mrf.mxu0
  %v2243 = vadd.f32 %v2230, %v2242
  %v2244 = vpop.f32.mrf.mxu0
  %2245 = vdwg.mxu0
  %2246 = vmatpush.bf16.msra.mxu0 %v1721
  %2247 = vmatpush.bf16.msra.mxu0 %v1720
  %2248 = vmatpush.bf16.msra.mxu0 %v1719
  %2249 = vmatpush.bf16.msra.mxu0 %v1718
  %2250 = vmatpush.bf16.msra.mxu0 %v1717
  %2251 = vmatpush.bf16.msra.mxu0 %v1716
  %2252 = vmatpush.bf16.msra.mxu0 %v1715
  %2253 = vmatpush.bf16.msra.mxu0 %v1714
  %2254 = vmatmul.bf16.gmra.mxu0 %v598
  %v2255 = vpop.f32.mrf.mxu0
  %v2256 = vadd.f32 %v2243, %v2255
  %v2257 = vpop.f32.mrf.mxu0
  %2258 = vdwg.mxu0
  %2259 = vmatpush.bf16.msra.mxu0 %v1729
  %2260 = vmatpush.bf16.msra.mxu0 %v1728
  %2261 = vmatpush.bf16.msra.mxu0 %v1727
  %2262 = vmatpush.bf16.msra.mxu0 %v1726
  %2263 = vmatpush.bf16.msra.mxu0 %v1725
  %2264 = vmatpush.bf16.msra.mxu0 %v1724
  %2265 = vmatpush.bf16.msra.mxu0 %v1723
  %2266 = vmatpush.bf16.msra.mxu0 %v1722
  %2267 = vmatmul.bf16.gmra.mxu0 %v599
  %v2268 = vpop.f32.mrf.mxu0
  %v2269 = vadd.f32 %v2256, %v2268
  %v2270 = vpop.f32.mrf.mxu0
  %2271 = vdwg.mxu0
  %2272 = vmatpush.bf16.msra.mxu0 %v1737
  %2273 = vmatpush.bf16.msra.mxu0 %v1736
  %2274 = vmatpush.bf16.msra.mxu0 %v1735
  %2275 = vmatpush.bf16.msra.mxu0 %v1734
  %2276 = vmatpush.bf16.msra.mxu0 %v1733
  %2277 = vmatpush.bf16.msra.mxu0 %v1732
  %2278 = vmatpush.bf16.msra.mxu0 %v1731
  %2279 = vmatpush.bf16.msra.mxu0 %v1730
  %2280 = vmatmul.bf16.gmra.mxu0 %v600
  %v2281 = vpop.f32.mrf.mxu0
  %v2282 = vadd.f32 %v2269, %v2281
  %v2283 = vpop.f32.mrf.mxu0
  %2284 = vdwg.mxu0
  %2285 = vmatpush.bf16.msra.mxu0 %v1745
  %2286 = vmatpush.bf16.msra.mxu0 %v1744
  %2287 = vmatpush.bf16.msra.mxu0 %v1743
  %2288 = vmatpush.bf16.msra.mxu0 %v1742
  %2289 = vmatpush.bf16.msra.mxu0 %v1741
  %2290 = vmatpush.bf16.msra.mxu0 %v1740
  %2291 = vmatpush.bf16.msra.mxu0 %v1739
  %2292 = vmatpush.bf16.msra.mxu0 %v1738
  %2293 = vmatmul.bf16.gmra.mxu0 %v601
  %v2294 = vpop.f32.mrf.mxu0
  %v2295 = vadd.f32 %v2282, %v2294
  %v2296 = vpop.f32.mrf.mxu0
  %2297 = vdwg.mxu0
  %2298 = vmatpush.bf16.msra.mxu0 %v1753
  %2299 = vmatpush.bf16.msra.mxu0 %v1752
  %2300 = vmatpush.bf16.msra.mxu0 %v1751
  %2301 = vmatpush.bf16.msra.mxu0 %v1750
  %2302 = vmatpush.bf16.msra.mxu0 %v1749
  %2303 = vmatpush.bf16.msra.mxu0 %v1748
  %2304 = vmatpush.bf16.msra.mxu0 %v1747
  %2305 = vmatpush.bf16.msra.mxu0 %v1746
  %2306 = vmatmul.bf16.gmra.mxu0 %v602
  %v2307 = vpop.f32.mrf.mxu0
  %v2308 = vadd.f32 %v2295, %v2307
  %v2309 = vpop.f32.mrf.mxu0
  %2310 = vdwg.mxu0
  %2311 = vmatpush.bf16.msra.mxu0 %v1761
  %2312 = vmatpush.bf16.msra.mxu0 %v1760
  %2313 = vmatpush.bf16.msra.mxu0 %v1759
  %2314 = vmatpush.bf16.msra.mxu0 %v1758
  %2315 = vmatpush.bf16.msra.mxu0 %v1757
  %2316 = vmatpush.bf16.msra.mxu0 %v1756
  %2317 = vmatpush.bf16.msra.mxu0 %v1755
  %2318 = vmatpush.bf16.msra.mxu0 %v1754
  %2319 = vmatmul.bf16.gmra.mxu0 %v603
  %v2320 = vpop.f32.mrf.mxu0
  %v2321 = vadd.f32 %v2308, %v2320
  %v2322 = vpop.f32.mrf.mxu0
  %2323 = vdwg.mxu0
  %2324 = vmatpush.bf16.msra.mxu0 %v1769
  %2325 = vmatpush.bf16.msra.mxu0 %v1768
  %2326 = vmatpush.bf16.msra.mxu0 %v1767
  %2327 = vmatpush.bf16.msra.mxu0 %v1766
  %2328 = vmatpush.bf16.msra.mxu0 %v1765
  %2329 = vmatpush.bf16.msra.mxu0 %v1764
  %2330 = vmatpush.bf16.msra.mxu0 %v1763
  %2331 = vmatpush.bf16.msra.mxu0 %v1762
  %2332 = vmatmul.bf16.gmra.mxu0 %v604
  %v2333 = vpop.f32.mrf.mxu0
  %v2334 = vadd.f32 %v2321, %v2333
  %v2335 = vpop.f32.mrf.mxu0
  %2336 = vdwg.mxu0
  %2337 = vmatpush.bf16.msra.mxu0 %v1777
  %2338 = vmatpush.bf16.msra.mxu0 %v1776
  %2339 = vmatpush.bf16.msra.mxu0 %v1775
  %2340 = vmatpush.bf16.msra.mxu0 %v1774
  %2341 = vmatpush.bf16.msra.mxu0 %v1773
  %2342 = vmatpush.bf16.msra.mxu0 %v1772
  %2343 = vmatpush.bf16.msra.mxu0 %v1771
  %2344 = vmatpush.bf16.msra.mxu0 %v1770
  %2345 = vmatmul.bf16.gmra.mxu0 %v605
  %v2346 = vpop.f32.mrf.mxu0
  %v2347 = vadd.f32 %v2334, %v2346
  %v2348 = vpop.f32.mrf.mxu0
  %2349 = vdwg.mxu0
  %2350 = vmatpush.bf16.msra.mxu0 %v1785
  %2351 = vmatpush.bf16.msra.mxu0 %v1784
  %2352 = vmatpush.bf16.msra.mxu0 %v1783
  %2353 = vmatpush.bf16.msra.mxu0 %v1782
  %2354 = vmatpush.bf16.msra.mxu0 %v1781
  %2355 = vmatpush.bf16.msra.mxu0 %v1780
  %2356 = vmatpush.bf16.msra.mxu0 %v1779
  %2357 = vmatpush.bf16.msra.mxu0 %v1778
  %2358 = vmatmul.bf16.gmra.mxu0 %v606
  %v2359 = vpop.f32.mrf.mxu0
  %v2360 = vadd.f32 %v2347, %v2359
  %v2361 = vpop.f32.mrf.mxu0
  %2362 = vdwg.mxu0
  %2363 = vmatpush.bf16.msra.mxu0 %v1793
  %2364 = vmatpush.bf16.msra.mxu0 %v1792
  %2365 = vmatpush.bf16.msra.mxu0 %v1791
  %2366 = vmatpush.bf16.msra.mxu0 %v1790
  %2367 = vmatpush.bf16.msra.mxu0 %v1789
  %2368 = vmatpush.bf16.msra.mxu0 %v1788
  %2369 = vmatpush.bf16.msra.mxu0 %v1787
  %2370 = vmatpush.bf16.msra.mxu0 %v1786
  %2371 = vmatmul.bf16.gmra.mxu0 %v607
  %v2372 = vpop.f32.mrf.mxu0
  %v2373 = vadd.f32 %v2360, %v2372
  %v2374 = vpop.f32.mrf.mxu0
  %2375 = vdwg.mxu0
  %2376 = vmatpush.bf16.msra.mxu0 %v1801
  %2377 = vmatpush.bf16.msra.mxu0 %v1800
  %2378 = vmatpush.bf16.msra.mxu0 %v1799
  %2379 = vmatpush.bf16.msra.mxu0 %v1798
  %2380 = vmatpush.bf16.msra.mxu0 %v1797
  %2381 = vmatpush.bf16.msra.mxu0 %v1796
  %2382 = vmatpush.bf16.msra.mxu0 %v1795
  %2383 = vmatpush.bf16.msra.mxu0 %v1794
  %2384 = vmatmul.bf16.gmra.mxu0 %v608
  %v2385 = vpop.f32.mrf.mxu0
  %v2386 = vadd.f32 %v2373, %v2385
  %v2387 = vpop.f32.mrf.mxu0
  %2388 = vdwg.mxu0
  %2389 = vmatpush.bf16.msra.mxu0 %v1809
  %2390 = vmatpush.bf16.msra.mxu0 %v1808
  %2391 = vmatpush.bf16.msra.mxu0 %v1807
  %2392 = vmatpush.bf16.msra.mxu0 %v1806
  %2393 = vmatpush.bf16.msra.mxu0 %v1805
  %2394 = vmatpush.bf16.msra.mxu0 %v1804
  %2395 = vmatpush.bf16.msra.mxu0 %v1803
  %2396 = vmatpush.bf16.msra.mxu0 %v1802
  %2397 = vmatmul.bf16.gmra.mxu0 %v609
  %v2398 = vpop.f32.mrf.mxu0
  %v2399 = vadd.f32 %v2386, %v2398
  %v2400 = vpop.f32.mrf.mxu0
  %2401 = vdwg.mxu0
  %2402 = vmatpush.bf16.msra.mxu0 %v1817
  %2403 = vmatpush.bf16.msra.mxu0 %v1816
  %2404 = vmatpush.bf16.msra.mxu0 %v1815
  %2405 = vmatpush.bf16.msra.mxu0 %v1814
  %2406 = vmatpush.bf16.msra.mxu0 %v1813
  %2407 = vmatpush.bf16.msra.mxu0 %v1812
  %2408 = vmatpush.bf16.msra.mxu0 %v1811
  %2409 = vmatpush.bf16.msra.mxu0 %v1810
  %2410 = vmatmul.bf16.gmra.mxu0 %v610
  %v2411 = vpop.f32.mrf.mxu0
  %v2412 = vadd.f32 %v2399, %v2411
  %v2413 = vpop.f32.mrf.mxu0
  %2414 = vdwg.mxu0
  %2415 = vmatpush.bf16.msra.mxu0 %v1825
  %2416 = vmatpush.bf16.msra.mxu0 %v1824
  %2417 = vmatpush.bf16.msra.mxu0 %v1823
  %2418 = vmatpush.bf16.msra.mxu0 %v1822
  %2419 = vmatpush.bf16.msra.mxu0 %v1821
  %2420 = vmatpush.bf16.msra.mxu0 %v1820
  %2421 = vmatpush.bf16.msra.mxu0 %v1819
  %2422 = vmatpush.bf16.msra.mxu0 %v1818
  %2423 = vmatmul.bf16.gmra.mxu0 %v611
  %v2424 = vpop.f32.mrf.mxu0
  %v2425 = vadd.f32 %v2412, %v2424
  %v2426 = vpop.f32.mrf.mxu0
  %2427 = vdwg.mxu0
  %2428 = vmatpush.bf16.msra.mxu0 %v1833
  %2429 = vmatpush.bf16.msra.mxu0 %v1832
  %2430 = vmatpush.bf16.msra.mxu0 %v1831
  %2431 = vmatpush.bf16.msra.mxu0 %v1830
  %2432 = vmatpush.bf16.msra.mxu0 %v1829
  %2433 = vmatpush.bf16.msra.mxu0 %v1828
  %2434 = vmatpush.bf16.msra.mxu0 %v1827
  %2435 = vmatpush.bf16.msra.mxu0 %v1826
  %2436 = vmatmul.bf16.gmra.mxu0 %v612
  %v2437 = vpop.f32.mrf.mxu0
  %v2438 = vadd.f32 %v2425, %v2437
  %v2439 = vpop.f32.mrf.mxu0
  %2440 = vdwg.mxu0
  %2441 = vmatpush.bf16.msra.mxu0 %v1841
  %2442 = vmatpush.bf16.msra.mxu0 %v1840
  %2443 = vmatpush.bf16.msra.mxu0 %v1839
  %2444 = vmatpush.bf16.msra.mxu0 %v1838
  %2445 = vmatpush.bf16.msra.mxu0 %v1837
  %2446 = vmatpush.bf16.msra.mxu0 %v1836
  %2447 = vmatpush.bf16.msra.mxu0 %v1835
  %2448 = vmatpush.bf16.msra.mxu0 %v1834
  %2449 = vmatmul.bf16.gmra.mxu0 %v613
  %v2450 = vpop.f32.mrf.mxu0
  %v2451 = vadd.f32 %v2438, %v2450
  %v2452 = vpop.f32.mrf.mxu0
  %2453 = vdwg.mxu0
  %2454 = vmatpush.bf16.msra.mxu0 %v1849
  %2455 = vmatpush.bf16.msra.mxu0 %v1848
  %2456 = vmatpush.bf16.msra.mxu0 %v1847
  %2457 = vmatpush.bf16.msra.mxu0 %v1846
  %2458 = vmatpush.bf16.msra.mxu0 %v1845
  %2459 = vmatpush.bf16.msra.mxu0 %v1844
  %2460 = vmatpush.bf16.msra.mxu0 %v1843
  %2461 = vmatpush.bf16.msra.mxu0 %v1842
  %2462 = vmatmul.bf16.gmra.mxu0 %v614
  %v2463 = vpop.f32.mrf.mxu0
  %v2464 = vadd.f32 %v2451, %v2463
  %v2465 = vpop.f32.mrf.mxu0
  %2466 = vdwg.mxu0
  %2467 = vmatpush.bf16.msra.mxu0 %v1857
  %2468 = vmatpush.bf16.msra.mxu0 %v1856
  %2469 = vmatpush.bf16.msra.mxu0 %v1855
  %2470 = vmatpush.bf16.msra.mxu0 %v1854
  %2471 = vmatpush.bf16.msra.mxu0 %v1853
  %2472 = vmatpush.bf16.msra.mxu0 %v1852
  %2473 = vmatpush.bf16.msra.mxu0 %v1851
  %2474 = vmatpush.bf16.msra.mxu0 %v1850
  %2475 = vmatmul.bf16.gmra.mxu0 %v615
  %v2476 = vpop.f32.mrf.mxu0
  %v2477 = vadd.f32 %v2464, %v2476
  %v2478 = vpop.f32.mrf.mxu0
  %2479 = vdwg.mxu0
  %2480 = vmatpush.bf16.msra.mxu0 %v1865
  %2481 = vmatpush.bf16.msra.mxu0 %v1864
  %2482 = vmatpush.bf16.msra.mxu0 %v1863
  %2483 = vmatpush.bf16.msra.mxu0 %v1862
  %2484 = vmatpush.bf16.msra.mxu0 %v1861
  %2485 = vmatpush.bf16.msra.mxu0 %v1860
  %2486 = vmatpush.bf16.msra.mxu0 %v1859
  %2487 = vmatpush.bf16.msra.mxu0 %v1858
  %2488 = vmatmul.bf16.gmra.mxu0 %v616
  %v2489 = vpop.f32.mrf.mxu0
  %v2490 = vadd.f32 %v2477, %v2489
  %v2491 = vpop.f32.mrf.mxu0
  %2492 = vdwg.mxu0
  %2493 = vmatpush.bf16.msra.mxu0 %v1873
  %2494 = vmatpush.bf16.msra.mxu0 %v1872
  %2495 = vmatpush.bf16.msra.mxu0 %v1871
  %2496 = vmatpush.bf16.msra.mxu0 %v1870
  %2497 = vmatpush.bf16.msra.mxu0 %v1869
  %2498 = vmatpush.bf16.msra.mxu0 %v1868
  %2499 = vmatpush.bf16.msra.mxu0 %v1867
  %2500 = vmatpush.bf16.msra.mxu0 %v1866
  %2501 = vmatmul.bf16.gmra.mxu0 %v617
  %v2502 = vpop.f32.mrf.mxu0
  %v2503 = vadd.f32 %v2490, %v2502
  %v2504 = vpop.f32.mrf.mxu0
  %2505 = vdwg.mxu0
  %2506 = vmatpush.bf16.msra.mxu0 %v1881
  %2507 = vmatpush.bf16.msra.mxu0 %v1880
  %2508 = vmatpush.bf16.msra.mxu0 %v1879
  %2509 = vmatpush.bf16.msra.mxu0 %v1878
  %2510 = vmatpush.bf16.msra.mxu0 %v1877
  %2511 = vmatpush.bf16.msra.mxu0 %v1876
  %2512 = vmatpush.bf16.msra.mxu0 %v1875
  %2513 = vmatpush.bf16.msra.mxu0 %v1874
  %2514 = vmatmul.bf16.gmra.mxu0 %v618
  %v2515 = vpop.f32.mrf.mxu0
  %v2516 = vadd.f32 %v2503, %v2515
  %v2517 = vpop.f32.mrf.mxu0
  %2518 = vdwg.mxu0
  %2519 = vmatpush.bf16.msra.mxu0 %v1889
  %2520 = vmatpush.bf16.msra.mxu0 %v1888
  %2521 = vmatpush.bf16.msra.mxu0 %v1887
  %2522 = vmatpush.bf16.msra.mxu0 %v1886
  %2523 = vmatpush.bf16.msra.mxu0 %v1885
  %2524 = vmatpush.bf16.msra.mxu0 %v1884
  %2525 = vmatpush.bf16.msra.mxu0 %v1883
  %2526 = vmatpush.bf16.msra.mxu0 %v1882
  %2527 = vmatmul.bf16.gmra.mxu0 %v619
  %v2528 = vpop.f32.mrf.mxu0
  %v2529 = vadd.f32 %v2516, %v2528
  %v2530 = vpop.f32.mrf.mxu0
  %2531 = vdwg.mxu0
  %2532 = vmatpush.bf16.msra.mxu0 %v1897
  %2533 = vmatpush.bf16.msra.mxu0 %v1896
  %2534 = vmatpush.bf16.msra.mxu0 %v1895
  %2535 = vmatpush.bf16.msra.mxu0 %v1894
  %2536 = vmatpush.bf16.msra.mxu0 %v1893
  %2537 = vmatpush.bf16.msra.mxu0 %v1892
  %2538 = vmatpush.bf16.msra.mxu0 %v1891
  %2539 = vmatpush.bf16.msra.mxu0 %v1890
  %2540 = vmatmul.bf16.gmra.mxu0 %v620
  %v2541 = vpop.f32.mrf.mxu0
  %v2542 = vadd.f32 %v2529, %v2541
  %v2543 = vpop.f32.mrf.mxu0
  %2544 = vdwg.mxu0
  %2545 = vmatpush.bf16.msra.mxu0 %v1905
  %2546 = vmatpush.bf16.msra.mxu0 %v1904
  %2547 = vmatpush.bf16.msra.mxu0 %v1903
  %2548 = vmatpush.bf16.msra.mxu0 %v1902
  %2549 = vmatpush.bf16.msra.mxu0 %v1901
  %2550 = vmatpush.bf16.msra.mxu0 %v1900
  %2551 = vmatpush.bf16.msra.mxu0 %v1899
  %2552 = vmatpush.bf16.msra.mxu0 %v1898
  %2553 = vmatmul.bf16.gmra.mxu0 %v621
  %v2554 = vpop.f32.mrf.mxu0
  %v2555 = vadd.f32 %v2542, %v2554
  %v2556 = vpop.f32.mrf.mxu0
  %2557 = vdwg.mxu0
  %2558 = vmatpush.bf16.msra.mxu0 %v1913
  %2559 = vmatpush.bf16.msra.mxu0 %v1912
  %2560 = vmatpush.bf16.msra.mxu0 %v1911
  %2561 = vmatpush.bf16.msra.mxu0 %v1910
  %2562 = vmatpush.bf16.msra.mxu0 %v1909
  %2563 = vmatpush.bf16.msra.mxu0 %v1908
  %2564 = vmatpush.bf16.msra.mxu0 %v1907
  %2565 = vmatpush.bf16.msra.mxu0 %v1906
  %2566 = vmatmul.bf16.gmra.mxu0 %v622
  %v2567 = vpop.f32.mrf.mxu0
  %v2568 = vadd.f32 %v2555, %v2567
  %v2569 = vpop.f32.mrf.mxu0
  %2570 = vdwg.mxu0
  %2571 = vmatpush.bf16.msra.mxu0 %v1921
  %2572 = vmatpush.bf16.msra.mxu0 %v1920
  %2573 = vmatpush.bf16.msra.mxu0 %v1919
  %2574 = vmatpush.bf16.msra.mxu0 %v1918
  %2575 = vmatpush.bf16.msra.mxu0 %v1917
  %2576 = vmatpush.bf16.msra.mxu0 %v1916
  %2577 = vmatpush.bf16.msra.mxu0 %v1915
  %2578 = vmatpush.bf16.msra.mxu0 %v1914
  %2579 = vmatmul.bf16.gmra.mxu0 %v623
  %v2580 = vpop.f32.mrf.mxu0
  %v2581 = vadd.f32 %v2568, %v2580
  %v2582 = vpop.f32.mrf.mxu0
  %2583 = vdwg.mxu0
  %2584 = vmatpush.bf16.msra.mxu0 %v1929
  %2585 = vmatpush.bf16.msra.mxu0 %v1928
  %2586 = vmatpush.bf16.msra.mxu0 %v1927
  %2587 = vmatpush.bf16.msra.mxu0 %v1926
  %2588 = vmatpush.bf16.msra.mxu0 %v1925
  %2589 = vmatpush.bf16.msra.mxu0 %v1924
  %2590 = vmatpush.bf16.msra.mxu0 %v1923
  %2591 = vmatpush.bf16.msra.mxu0 %v1922
  %2592 = vmatmul.bf16.gmra.mxu0 %v624
  %v2593 = vpop.f32.mrf.mxu0
  %v2594 = vadd.f32 %v2581, %v2593
  %v2595 = vpop.f32.mrf.mxu0
  %2596 = vdwg.mxu0
  %2597 = vmatpush.bf16.msra.mxu0 %v1937
  %2598 = vmatpush.bf16.msra.mxu0 %v1936
  %2599 = vmatpush.bf16.msra.mxu0 %v1935
  %2600 = vmatpush.bf16.msra.mxu0 %v1934
  %2601 = vmatpush.bf16.msra.mxu0 %v1933
  %2602 = vmatpush.bf16.msra.mxu0 %v1932
  %2603 = vmatpush.bf16.msra.mxu0 %v1931
  %2604 = vmatpush.bf16.msra.mxu0 %v1930
  %2605 = vmatmul.bf16.gmra.mxu0 %v625
  %v2606 = vpop.f32.mrf.mxu0
  %v2607 = vadd.f32 %v2594, %v2606
  %v2608 = vpop.f32.mrf.mxu0
  %2609 = vdwg.mxu0
  %2610 = vst [vmem:[%s3] sm:$0xff] %v2607
  // Predicated region
  $region14: #{discriminator_forward.11} parent=0 // pred_check
    _
  $region15: #{discriminator_forward.11} parent=0 // pred_check_branch
    %2612 = sbr.rel (0) target = $region17
  $region16: #{discriminator_forward.11} parent=0 // pred_region
    _
  $region17: #{discriminator_forward.11} parent=0 // pred_fallthru
    _
  // Predicated region
  $region18: #{discriminator_forward.11} parent=0 // pred_check
    _
  $region19: #{discriminator_forward.11} parent=0 // pred_check_branch
    %2614 = sbr.rel (0) target = $region21
  $region20: #{discriminator_forward.11} parent=0 // pred_region
    _
  $region21: #{discriminator_forward.11} parent=0 // pred_fallthru
    _

</llo_original>
